<compile_context>
chip_gen: v5e
topology: v5e:2x2
jax: 0.10.0
libtpu: 0.0.40
codegen_flags: <defaults>
</compile_context>

<pallas_src>
import functools

import jax
import jax.numpy as jnp
from jax.experimental import pallas as pl
from jax.experimental.pallas import tpu as pltpu

F32 = jnp.float32


# ----------------------------------------------------------------------------
# Compiler params (VMEM limit gated by the actual chip instead of hard-coded)
# ----------------------------------------------------------------------------
def _vmem_limit_bytes():
    try:
        cap = pltpu.get_tpu_info().vmem_capacity_bytes
        # leave headroom for pipeline buffers; ~48 MiB on v7x, capped at 96 MiB elsewhere.
        return min(int(cap * 3 // 4), 96 * 1024 * 1024)
    except Exception:
        return None  # fall back to the compiler default


_VMEM_LIMIT = _vmem_limit_bytes()


def _compiler_params():
    kwargs = dict(dimension_semantics=("parallel",))
    if _VMEM_LIMIT is not None:
        kwargs["vmem_limit_bytes"] = _VMEM_LIMIT
    return pltpu.CompilerParams(**kwargs)


# ----------------------------------------------------------------------------
# Pallas kernels
# ----------------------------------------------------------------------------
def _pool_argmax_kernel(cells_ref, cls_ref, exists_ref, *, num_classes):
    """cells: (tb, d, p) int32 pixel class-ids (p = ds*ds pixels per pooled cell).

    Writes:
      cls:    (tb, d, 1)  int32 majority class per cell (ties -> smallest id, matching
              torch.argmax), reproducing one-hot -> AvgPool -> argmax without a
              (tb, nc, p) intermediate.
      exists: (tb, 1, nc) f32, 1.0 iff the class is the winner of at least one cell
              (== reference's  binary_masks.sum(-1) > 0.001 ).
    """
    cells = cells_ref[...]                                   # (tb, d, p) int32
    tb, d, _ = cells.shape
    init = (jnp.full((tb, d, 1), -1.0, F32),                 # best count so far
            jnp.zeros((tb, d, 1), jnp.int32))                # best class so far

    def body(c, carry):
        best_cnt, best_cls = carry
        cnt = jnp.sum((cells == c).astype(F32), axis=-1, keepdims=True)   # (tb, d, 1)
        better = cnt > best_cnt        # strict '>' keeps the first max (argmax tie-break)
        return (jnp.where(better, cnt, best_cnt),
                jnp.where(better, c, best_cls))

    _, best_cls = jax.lax.fori_loop(0, num_classes, body, init, unroll=True)
    cls_ref[...] = best_cls                                  # (tb, d, 1)

    class_iota = jax.lax.broadcasted_iota(jnp.int32, (1, 1, num_classes), 2)
    hits = (best_cls == class_iota).astype(F32)              # (tb, d, nc)
    exists_ref[...] = jnp.max(hits, axis=1, keepdims=True)   # (tb, 1, nc)


def _sample_norm_kernel(cls_ref, ids_ref, out_ref):
    """cls: (tb, 1, d) int32 majority class per cell; ids: (tb, S, 1) int32 sampled ids.

    Writes (tb, S, d): binary masks (cell class == sampled id) divided by max(area, 1).
    The one-hot is formed here, where it is consumed.
    """
    cls = cls_ref[...]                                       # (tb, 1, d)
    ids = ids_ref[...]                                       # (tb, S, 1)
    binary = (ids == cls).astype(F32)                        # (tb, S, d)
    area = jnp.sum(binary, axis=-1, keepdims=True)           # (tb, S, 1)
    out_ref[...] = binary / jnp.maximum(area, 1.0)


# ----------------------------------------------------------------------------
# Forward pass
# ----------------------------------------------------------------------------
def _cells_from_masks(masks, downsample):
    """(B, 1, H, W) class-id map -> (B, d, p) with d = pooled cells, p = ds*ds pixels."""
    if masks.ndim == 3:
        masks = masks[:, None]
    B, _, H, W = masks.shape
    Hd, Wd = H // downsample, W // downsample
    d, p = Hd * Wd, downsample * downsample
    c = masks[:, 0].astype(jnp.int32)
    c = c.reshape(B, Hd, downsample, Wd, downsample)
    c = c.transpose(0, 1, 3, 2, 4).reshape(B, d, p)
    return c, d, p


def mask_pooling_forward(masks, key, *, num_classes, num_samples=16, downsample=32):
    """MaskPooling.forward: returns (sampled_masks (B, ns, d), sampled_mask_ids (B, ns))."""
    cells, d, p = _cells_from_masks(masks, downsample)
    B = cells.shape[0]
    tb = min(B, 8)                       # batch tile: amortize per-grid-step overhead
    grid = (pl.cdiv(B, tb),)

    # --- pool_masks: majority class per pooled cell + per-class existence (Pallas) ---
    cls, exists = pl.pallas_call(
        functools.partial(_pool_argmax_kernel, num_classes=num_classes),
        out_shape=(jax.ShapeDtypeStruct((B, d, 1), jnp.int32),
                   jax.ShapeDtypeStruct((B, 1, num_classes), F32)),
        grid=grid,
        in_specs=[pl.BlockSpec((tb, d, p), lambda b: (b, 0, 0))],
        out_specs=(pl.BlockSpec((tb, d, 1), lambda b: (b, 0, 0)),
                   pl.BlockSpec((tb, 1, num_classes), lambda b: (b, 0, 0))),
        compiler_params=_compiler_params(),
    )(cells)
    cls_flat = cls.reshape(B, d)

    # --- sample_masks: torch.multinomial(mask_exists + 1e-11, ns, replacement=False)
    # replicated in distribution via Gumbel top-k (same 1e-11 floor as the reference).
    # TODO(synk): no Pallas primitive for multinomial-without-replacement; this tiny
    #             (B, num_classes) sampling step stays in plain JAX.
    sel = exists.reshape(B, num_classes) + 1e-11
    g = jax.random.gumbel(key, sel.shape, F32)
    _, mask_ids = jax.lax.top_k(jnp.log(sel) + g, num_samples)          # (B, ns) int32

    # --- gather + area-normalize the sampled binary masks (Pallas, batch-parallel) ---
    sampled = pl.pallas_call(
        _sample_norm_kernel,
        out_shape=jax.ShapeDtypeStruct((B, num_samples, d), F32),
        grid=grid,
        in_specs=[pl.BlockSpec((tb, 1, d), lambda b: (b, 0, 0)),
                  pl.BlockSpec((tb, num_samples, 1), lambda b: (b, 0, 0))],
        out_specs=pl.BlockSpec((tb, num_samples, d), lambda b: (b, 0, 0)),
        compiler_params=_compiler_params(),
    )(cls_flat.reshape(B, 1, d), mask_ids.reshape(B, num_samples, 1))
    return sampled, mask_ids


# ----------------------------------------------------------------------------
# Pure-JAX reference (mirrors the PyTorch module) for correctness checking
# ----------------------------------------------------------------------------
def _reference_forward(masks, key, *, num_classes, num_samples, downsample):
    if masks.ndim == 3:
        masks = masks[:, None]
    B, _, H, W = masks.shape
    Hd, Wd = H // downsample, W // downsample
    onehot = (masks[:, 0, :, :, None] == jnp.arange(num_classes)).astype(F32)   # (B,H,W,nc)
    pooled = onehot.reshape(B, Hd, downsample, Wd, downsample, num_classes).mean(axis=(2, 4))
    pooled = pooled.reshape(B, Hd * Wd, num_classes)                             # (B, d, nc)
    cls = jnp.argmax(pooled, axis=-1)                                            # (B, d)
    binary = jax.nn.one_hot(cls, num_classes, dtype=F32).transpose(0, 2, 1)      # (B, nc, d)
    sel = (binary.sum(-1) > 0.001).astype(F32) + 1e-11
    g = jax.random.gumbel(key, sel.shape, F32)
    _, ids = jax.lax.top_k(jnp.log(sel) + g, num_samples)
    sampled = jnp.take_along_axis(binary, ids[:, :, None], axis=1)
    area = sampled.sum(-1, keepdims=True)
    return sampled / jnp.maximum(area, 1.0), ids


# ----------------------------------------------------------------------------
if __name__ == "__main__":
    key = jax.random.PRNGKey(0)
    mkey, skey = jax.random.split(key)

    B, H, W = 2, 64, 64
    num_classes, num_samples, downsample = 23, 16, 32
    d = (H // downsample) * (W // downsample)

    masks = jax.random.randint(mkey, (B, 1, H, W), 0, num_classes).astype(jnp.int32)

    fwd = jax.jit(functools.partial(mask_pooling_forward,
                                    num_classes=num_classes,
                                    num_samples=num_samples,
                                    downsample=downsample))
    sampled, mids = fwd(masks, skey)
    jax.block_until_ready((sampled, mids))

    assert sampled.shape == (B, num_samples, d)
    assert mids.shape == (B, num_samples)
    assert bool(jnp.all(jnp.isfinite(sampled)))
    assert bool(jnp.all((mids >= 0) & (mids < num_classes)))
    row_sums = jnp.sum(sampled, axis=-1)
    assert bool(jnp.all((jnp.abs(row_sums - 1.0) < 1e-5) | (row_sums == 0.0)))

    ref_sampled, ref_ids = _reference_forward(masks, skey,
                                              num_classes=num_classes,
                                              num_samples=num_samples,
                                              downsample=downsample)
    assert bool(jnp.all(mids == ref_ids))
    assert bool(jnp.allclose(sampled, ref_sampled, atol=1e-6))

    print("KERNEL_OK")
</pallas_src>

<mosaic_0001>
module attributes {stable_mosaic.version = 11 : i64} {
  func.func @_pool_argmax_kernel(%arg0: i32, %arg1: memref<2x4x1024xi32, #tpu.memory_space<vmem>>, %arg2: memref<2x4x1xi32, #tpu.memory_space<vmem>>, %arg3: memref<2x1x23xf32, #tpu.memory_space<vmem>>) attributes {dimension_semantics = [#tpu.dimension_semantics<parallel>], iteration_bounds = array<i64: 1>, scalar_prefetch = 0 : i64, scratch_operands = 0 : i64, tpu.core_type = #tpu.core_type<tc>, window_params = [{transform_indices = @transform_0, window_bounds = array<i64: 2, 4, 1024>}, {transform_indices = @transform_1, window_bounds = array<i64: 2, 4, 1>}, {transform_indices = @transform_2, window_bounds = array<i64: 2, 1, 23>}]} {
    %c0 = arith.constant 0 : index
    %c0_0 = arith.constant 0 : index
    %c0_1 = arith.constant 0 : index
    %0 = vector.load %arg1[%c0, %c0_0, %c0_1] : memref<2x4x1024xi32, #tpu.memory_space<vmem>>, vector<2x4x1024xi32>
    %cst = arith.constant -1.000000e+00 : f32
    %1 = vector.broadcast %cst : f32 to vector<2x4x1xf32>
    %c0_i32 = arith.constant 0 : i32
    %2 = vector.broadcast %c0_i32 : i32 to vector<2x4x1xi32>
    %c0_i32_2 = arith.constant 0 : i32
    %3 = vector.broadcast %c0_i32_2 : i32 to vector<2x4x1024xi32>
    %4 = arith.cmpi eq, %0, %3 : vector<2x4x1024xi32>
    %5 = arith.extui %4 : vector<2x4x1024xi1> to vector<2x4x1024xi32>
    %6 = arith.sitofp %5 : vector<2x4x1024xi32> to vector<2x4x1024xf32>
    %cst_3 = arith.constant dense<0.000000e+00> : vector<2x4xf32>
    %7 = vector.multi_reduction <add>, %6, %cst_3 [2] : vector<2x4x1024xf32> to vector<2x4xf32>
    %8 = vector.shape_cast %7 : vector<2x4xf32> to vector<2x4x1xf32>
    %9 = arith.cmpf ogt, %8, %1 : vector<2x4x1xf32>
    %10 = arith.select %9, %8, %1 : vector<2x4x1xi1>, vector<2x4x1xf32>
    %11 = vector.broadcast %c0_i32_2 : i32 to vector<2x4x1xi32>
    %12 = arith.select %9, %11, %2 : vector<2x4x1xi1>, vector<2x4x1xi32>
    %c1_i32 = arith.constant 1 : i32
    %13 = vector.broadcast %c1_i32 : i32 to vector<2x4x1024xi32>
    %14 = arith.cmpi eq, %0, %13 : vector<2x4x1024xi32>
    %15 = arith.extui %14 : vector<2x4x1024xi1> to vector<2x4x1024xi32>
    %16 = arith.sitofp %15 : vector<2x4x1024xi32> to vector<2x4x1024xf32>
    %cst_4 = arith.constant dense<0.000000e+00> : vector<2x4xf32>
    %17 = vector.multi_reduction <add>, %16, %cst_4 [2] : vector<2x4x1024xf32> to vector<2x4xf32>
    %18 = vector.shape_cast %17 : vector<2x4xf32> to vector<2x4x1xf32>
    %19 = arith.cmpf ogt, %18, %10 : vector<2x4x1xf32>
    %20 = arith.select %19, %18, %10 : vector<2x4x1xi1>, vector<2x4x1xf32>
    %21 = vector.broadcast %c1_i32 : i32 to vector<2x4x1xi32>
    %22 = arith.select %19, %21, %12 : vector<2x4x1xi1>, vector<2x4x1xi32>
    %c2_i32 = arith.constant 2 : i32
    %23 = vector.broadcast %c2_i32 : i32 to vector<2x4x1024xi32>
    %24 = arith.cmpi eq, %0, %23 : vector<2x4x1024xi32>
    %25 = arith.extui %24 : vector<2x4x1024xi1> to vector<2x4x1024xi32>
    %26 = arith.sitofp %25 : vector<2x4x1024xi32> to vector<2x4x1024xf32>
    %cst_5 = arith.constant dense<0.000000e+00> : vector<2x4xf32>
    %27 = vector.multi_reduction <add>, %26, %cst_5 [2] : vector<2x4x1024xf32> to vector<2x4xf32>
    %28 = vector.shape_cast %27 : vector<2x4xf32> to vector<2x4x1xf32>
    %29 = arith.cmpf ogt, %28, %20 : vector<2x4x1xf32>
    %30 = arith.select %29, %28, %20 : vector<2x4x1xi1>, vector<2x4x1xf32>
    %31 = vector.broadcast %c2_i32 : i32 to vector<2x4x1xi32>
    %32 = arith.select %29, %31, %22 : vector<2x4x1xi1>, vector<2x4x1xi32>
    %c3_i32 = arith.constant 3 : i32
    %33 = vector.broadcast %c3_i32 : i32 to vector<2x4x1024xi32>
    %34 = arith.cmpi eq, %0, %33 : vector<2x4x1024xi32>
    %35 = arith.extui %34 : vector<2x4x1024xi1> to vector<2x4x1024xi32>
    %36 = arith.sitofp %35 : vector<2x4x1024xi32> to vector<2x4x1024xf32>
    %cst_6 = arith.constant dense<0.000000e+00> : vector<2x4xf32>
    %37 = vector.multi_reduction <add>, %36, %cst_6 [2] : vector<2x4x1024xf32> to vector<2x4xf32>
    %38 = vector.shape_cast %37 : vector<2x4xf32> to vector<2x4x1xf32>
    %39 = arith.cmpf ogt, %38, %30 : vector<2x4x1xf32>
    %40 = arith.select %39, %38, %30 : vector<2x4x1xi1>, vector<2x4x1xf32>
    %41 = vector.broadcast %c3_i32 : i32 to vector<2x4x1xi32>
    %42 = arith.select %39, %41, %32 : vector<2x4x1xi1>, vector<2x4x1xi32>
    %c4_i32 = arith.constant 4 : i32
    %43 = vector.broadcast %c4_i32 : i32 to vector<2x4x1024xi32>
    %44 = arith.cmpi eq, %0, %43 : vector<2x4x1024xi32>
    %45 = arith.extui %44 : vector<2x4x1024xi1> to vector<2x4x1024xi32>
    %46 = arith.sitofp %45 : vector<2x4x1024xi32> to vector<2x4x1024xf32>
    %cst_7 = arith.constant dense<0.000000e+00> : vector<2x4xf32>
    %47 = vector.multi_reduction <add>, %46, %cst_7 [2] : vector<2x4x1024xf32> to vector<2x4xf32>
    %48 = vector.shape_cast %47 : vector<2x4xf32> to vector<2x4x1xf32>
    %49 = arith.cmpf ogt, %48, %40 : vector<2x4x1xf32>
    %50 = arith.select %49, %48, %40 : vector<2x4x1xi1>, vector<2x4x1xf32>
    %51 = vector.broadcast %c4_i32 : i32 to vector<2x4x1xi32>
    %52 = arith.select %49, %51, %42 : vector<2x4x1xi1>, vector<2x4x1xi32>
    %c5_i32 = arith.constant 5 : i32
    %53 = vector.broadcast %c5_i32 : i32 to vector<2x4x1024xi32>
    %54 = arith.cmpi eq, %0, %53 : vector<2x4x1024xi32>
    %55 = arith.extui %54 : vector<2x4x1024xi1> to vector<2x4x1024xi32>
    %56 = arith.sitofp %55 : vector<2x4x1024xi32> to vector<2x4x1024xf32>
    %cst_8 = arith.constant dense<0.000000e+00> : vector<2x4xf32>
    %57 = vector.multi_reduction <add>, %56, %cst_8 [2] : vector<2x4x1024xf32> to vector<2x4xf32>
    %58 = vector.shape_cast %57 : vector<2x4xf32> to vector<2x4x1xf32>
    %59 = arith.cmpf ogt, %58, %50 : vector<2x4x1xf32>
    %60 = arith.select %59, %58, %50 : vector<2x4x1xi1>, vector<2x4x1xf32>
    %61 = vector.broadcast %c5_i32 : i32 to vector<2x4x1xi32>
    %62 = arith.select %59, %61, %52 : vector<2x4x1xi1>, vector<2x4x1xi32>
    %c6_i32 = arith.constant 6 : i32
    %63 = vector.broadcast %c6_i32 : i32 to vector<2x4x1024xi32>
    %64 = arith.cmpi eq, %0, %63 : vector<2x4x1024xi32>
    %65 = arith.extui %64 : vector<2x4x1024xi1> to vector<2x4x1024xi32>
    %66 = arith.sitofp %65 : vector<2x4x1024xi32> to vector<2x4x1024xf32>
    %cst_9 = arith.constant dense<0.000000e+00> : vector<2x4xf32>
    %67 = vector.multi_reduction <add>, %66, %cst_9 [2] : vector<2x4x1024xf32> to vector<2x4xf32>
    %68 = vector.shape_cast %67 : vector<2x4xf32> to vector<2x4x1xf32>
    %69 = arith.cmpf ogt, %68, %60 : vector<2x4x1xf32>
    %70 = arith.select %69, %68, %60 : vector<2x4x1xi1>, vector<2x4x1xf32>
    %71 = vector.broadcast %c6_i32 : i32 to vector<2x4x1xi32>
    %72 = arith.select %69, %71, %62 : vector<2x4x1xi1>, vector<2x4x1xi32>
    %c7_i32 = arith.constant 7 : i32
    %73 = vector.broadcast %c7_i32 : i32 to vector<2x4x1024xi32>
    %74 = arith.cmpi eq, %0, %73 : vector<2x4x1024xi32>
    %75 = arith.extui %74 : vector<2x4x1024xi1> to vector<2x4x1024xi32>
    %76 = arith.sitofp %75 : vector<2x4x1024xi32> to vector<2x4x1024xf32>
    %cst_10 = arith.constant dense<0.000000e+00> : vector<2x4xf32>
    %77 = vector.multi_reduction <add>, %76, %cst_10 [2] : vector<2x4x1024xf32> to vector<2x4xf32>
    %78 = vector.shape_cast %77 : vector<2x4xf32> to vector<2x4x1xf32>
    %79 = arith.cmpf ogt, %78, %70 : vector<2x4x1xf32>
    %80 = arith.select %79, %78, %70 : vector<2x4x1xi1>, vector<2x4x1xf32>
    %81 = vector.broadcast %c7_i32 : i32 to vector<2x4x1xi32>
    %82 = arith.select %79, %81, %72 : vector<2x4x1xi1>, vector<2x4x1xi32>
    %c8_i32 = arith.constant 8 : i32
    %83 = vector.broadcast %c8_i32 : i32 to vector<2x4x1024xi32>
    %84 = arith.cmpi eq, %0, %83 : vector<2x4x1024xi32>
    %85 = arith.extui %84 : vector<2x4x1024xi1> to vector<2x4x1024xi32>
    %86 = arith.sitofp %85 : vector<2x4x1024xi32> to vector<2x4x1024xf32>
    %cst_11 = arith.constant dense<0.000000e+00> : vector<2x4xf32>
    %87 = vector.multi_reduction <add>, %86, %cst_11 [2] : vector<2x4x1024xf32> to vector<2x4xf32>
    %88 = vector.shape_cast %87 : vector<2x4xf32> to vector<2x4x1xf32>
    %89 = arith.cmpf ogt, %88, %80 : vector<2x4x1xf32>
    %90 = arith.select %89, %88, %80 : vector<2x4x1xi1>, vector<2x4x1xf32>
    %91 = vector.broadcast %c8_i32 : i32 to vector<2x4x1xi32>
    %92 = arith.select %89, %91, %82 : vector<2x4x1xi1>, vector<2x4x1xi32>
    %c9_i32 = arith.constant 9 : i32
    %93 = vector.broadcast %c9_i32 : i32 to vector<2x4x1024xi32>
    %94 = arith.cmpi eq, %0, %93 : vector<2x4x1024xi32>
    %95 = arith.extui %94 : vector<2x4x1024xi1> to vector<2x4x1024xi32>
    %96 = arith.sitofp %95 : vector<2x4x1024xi32> to vector<2x4x1024xf32>
    %cst_12 = arith.constant dense<0.000000e+00> : vector<2x4xf32>
    %97 = vector.multi_reduction <add>, %96, %cst_12 [2] : vector<2x4x1024xf32> to vector<2x4xf32>
    %98 = vector.shape_cast %97 : vector<2x4xf32> to vector<2x4x1xf32>
    %99 = arith.cmpf ogt, %98, %90 : vector<2x4x1xf32>
    %100 = arith.select %99, %98, %90 : vector<2x4x1xi1>, vector<2x4x1xf32>
    %101 = vector.broadcast %c9_i32 : i32 to vector<2x4x1xi32>
    %102 = arith.select %99, %101, %92 : vector<2x4x1xi1>, vector<2x4x1xi32>
    %c10_i32 = arith.constant 10 : i32
    %103 = vector.broadcast %c10_i32 : i32 to vector<2x4x1024xi32>
    %104 = arith.cmpi eq, %0, %103 : vector<2x4x1024xi32>
    %105 = arith.extui %104 : vector<2x4x1024xi1> to vector<2x4x1024xi32>
    %106 = arith.sitofp %105 : vector<2x4x1024xi32> to vector<2x4x1024xf32>
    %cst_13 = arith.constant dense<0.000000e+00> : vector<2x4xf32>
    %107 = vector.multi_reduction <add>, %106, %cst_13 [2] : vector<2x4x1024xf32> to vector<2x4xf32>
    %108 = vector.shape_cast %107 : vector<2x4xf32> to vector<2x4x1xf32>
    %109 = arith.cmpf ogt, %108, %100 : vector<2x4x1xf32>
    %110 = arith.select %109, %108, %100 : vector<2x4x1xi1>, vector<2x4x1xf32>
    %111 = vector.broadcast %c10_i32 : i32 to vector<2x4x1xi32>
    %112 = arith.select %109, %111, %102 : vector<2x4x1xi1>, vector<2x4x1xi32>
    %c11_i32 = arith.constant 11 : i32
    %113 = vector.broadcast %c11_i32 : i32 to vector<2x4x1024xi32>
    %114 = arith.cmpi eq, %0, %113 : vector<2x4x1024xi32>
    %115 = arith.extui %114 : vector<2x4x1024xi1> to vector<2x4x1024xi32>
    %116 = arith.sitofp %115 : vector<2x4x1024xi32> to vector<2x4x1024xf32>
    %cst_14 = arith.constant dense<0.000000e+00> : vector<2x4xf32>
    %117 = vector.multi_reduction <add>, %116, %cst_14 [2] : vector<2x4x1024xf32> to vector<2x4xf32>
    %118 = vector.shape_cast %117 : vector<2x4xf32> to vector<2x4x1xf32>
    %119 = arith.cmpf ogt, %118, %110 : vector<2x4x1xf32>
    %120 = arith.select %119, %118, %110 : vector<2x4x1xi1>, vector<2x4x1xf32>
    %121 = vector.broadcast %c11_i32 : i32 to vector<2x4x1xi32>
    %122 = arith.select %119, %121, %112 : vector<2x4x1xi1>, vector<2x4x1xi32>
    %c12_i32 = arith.constant 12 : i32
    %123 = vector.broadcast %c12_i32 : i32 to vector<2x4x1024xi32>
    %124 = arith.cmpi eq, %0, %123 : vector<2x4x1024xi32>
    %125 = arith.extui %124 : vector<2x4x1024xi1> to vector<2x4x1024xi32>
    %126 = arith.sitofp %125 : vector<2x4x1024xi32> to vector<2x4x1024xf32>
    %cst_15 = arith.constant dense<0.000000e+00> : vector<2x4xf32>
    %127 = vector.multi_reduction <add>, %126, %cst_15 [2] : vector<2x4x1024xf32> to vector<2x4xf32>
    %128 = vector.shape_cast %127 : vector<2x4xf32> to vector<2x4x1xf32>
    %129 = arith.cmpf ogt, %128, %120 : vector<2x4x1xf32>
    %130 = arith.select %129, %128, %120 : vector<2x4x1xi1>, vector<2x4x1xf32>
    %131 = vector.broadcast %c12_i32 : i32 to vector<2x4x1xi32>
    %132 = arith.select %129, %131, %122 : vector<2x4x1xi1>, vector<2x4x1xi32>
    %c13_i32 = arith.constant 13 : i32
    %133 = vector.broadcast %c13_i32 : i32 to vector<2x4x1024xi32>
    %134 = arith.cmpi eq, %0, %133 : vector<2x4x1024xi32>
    %135 = arith.extui %134 : vector<2x4x1024xi1> to vector<2x4x1024xi32>
    %136 = arith.sitofp %135 : vector<2x4x1024xi32> to vector<2x4x1024xf32>
    %cst_16 = arith.constant dense<0.000000e+00> : vector<2x4xf32>
    %137 = vector.multi_reduction <add>, %136, %cst_16 [2] : vector<2x4x1024xf32> to vector<2x4xf32>
    %138 = vector.shape_cast %137 : vector<2x4xf32> to vector<2x4x1xf32>
    %139 = arith.cmpf ogt, %138, %130 : vector<2x4x1xf32>
    %140 = arith.select %139, %138, %130 : vector<2x4x1xi1>, vector<2x4x1xf32>
    %141 = vector.broadcast %c13_i32 : i32 to vector<2x4x1xi32>
    %142 = arith.select %139, %141, %132 : vector<2x4x1xi1>, vector<2x4x1xi32>
    %c14_i32 = arith.constant 14 : i32
    %143 = vector.broadcast %c14_i32 : i32 to vector<2x4x1024xi32>
    %144 = arith.cmpi eq, %0, %143 : vector<2x4x1024xi32>
    %145 = arith.extui %144 : vector<2x4x1024xi1> to vector<2x4x1024xi32>
    %146 = arith.sitofp %145 : vector<2x4x1024xi32> to vector<2x4x1024xf32>
    %cst_17 = arith.constant dense<0.000000e+00> : vector<2x4xf32>
    %147 = vector.multi_reduction <add>, %146, %cst_17 [2] : vector<2x4x1024xf32> to vector<2x4xf32>
    %148 = vector.shape_cast %147 : vector<2x4xf32> to vector<2x4x1xf32>
    %149 = arith.cmpf ogt, %148, %140 : vector<2x4x1xf32>
    %150 = arith.select %149, %148, %140 : vector<2x4x1xi1>, vector<2x4x1xf32>
    %151 = vector.broadcast %c14_i32 : i32 to vector<2x4x1xi32>
    %152 = arith.select %149, %151, %142 : vector<2x4x1xi1>, vector<2x4x1xi32>
    %c15_i32 = arith.constant 15 : i32
    %153 = vector.broadcast %c15_i32 : i32 to vector<2x4x1024xi32>
    %154 = arith.cmpi eq, %0, %153 : vector<2x4x1024xi32>
    %155 = arith.extui %154 : vector<2x4x1024xi1> to vector<2x4x1024xi32>
    %156 = arith.sitofp %155 : vector<2x4x1024xi32> to vector<2x4x1024xf32>
    %cst_18 = arith.constant dense<0.000000e+00> : vector<2x4xf32>
    %157 = vector.multi_reduction <add>, %156, %cst_18 [2] : vector<2x4x1024xf32> to vector<2x4xf32>
    %158 = vector.shape_cast %157 : vector<2x4xf32> to vector<2x4x1xf32>
    %159 = arith.cmpf ogt, %158, %150 : vector<2x4x1xf32>
    %160 = arith.select %159, %158, %150 : vector<2x4x1xi1>, vector<2x4x1xf32>
    %161 = vector.broadcast %c15_i32 : i32 to vector<2x4x1xi32>
    %162 = arith.select %159, %161, %152 : vector<2x4x1xi1>, vector<2x4x1xi32>
    %c16_i32 = arith.constant 16 : i32
    %163 = vector.broadcast %c16_i32 : i32 to vector<2x4x1024xi32>
    %164 = arith.cmpi eq, %0, %163 : vector<2x4x1024xi32>
    %165 = arith.extui %164 : vector<2x4x1024xi1> to vector<2x4x1024xi32>
    %166 = arith.sitofp %165 : vector<2x4x1024xi32> to vector<2x4x1024xf32>
    %cst_19 = arith.constant dense<0.000000e+00> : vector<2x4xf32>
    %167 = vector.multi_reduction <add>, %166, %cst_19 [2] : vector<2x4x1024xf32> to vector<2x4xf32>
    %168 = vector.shape_cast %167 : vector<2x4xf32> to vector<2x4x1xf32>
    %169 = arith.cmpf ogt, %168, %160 : vector<2x4x1xf32>
    %170 = arith.select %169, %168, %160 : vector<2x4x1xi1>, vector<2x4x1xf32>
    %171 = vector.broadcast %c16_i32 : i32 to vector<2x4x1xi32>
    %172 = arith.select %169, %171, %162 : vector<2x4x1xi1>, vector<2x4x1xi32>
    %c17_i32 = arith.constant 17 : i32
    %173 = vector.broadcast %c17_i32 : i32 to vector<2x4x1024xi32>
    %174 = arith.cmpi eq, %0, %173 : vector<2x4x1024xi32>
    %175 = arith.extui %174 : vector<2x4x1024xi1> to vector<2x4x1024xi32>
    %176 = arith.sitofp %175 : vector<2x4x1024xi32> to vector<2x4x1024xf32>
    %cst_20 = arith.constant dense<0.000000e+00> : vector<2x4xf32>
    %177 = vector.multi_reduction <add>, %176, %cst_20 [2] : vector<2x4x1024xf32> to vector<2x4xf32>
    %178 = vector.shape_cast %177 : vector<2x4xf32> to vector<2x4x1xf32>
    %179 = arith.cmpf ogt, %178, %170 : vector<2x4x1xf32>
    %180 = arith.select %179, %178, %170 : vector<2x4x1xi1>, vector<2x4x1xf32>
    %181 = vector.broadcast %c17_i32 : i32 to vector<2x4x1xi32>
    %182 = arith.select %179, %181, %172 : vector<2x4x1xi1>, vector<2x4x1xi32>
    %c18_i32 = arith.constant 18 : i32
    %183 = vector.broadcast %c18_i32 : i32 to vector<2x4x1024xi32>
    %184 = arith.cmpi eq, %0, %183 : vector<2x4x1024xi32>
    %185 = arith.extui %184 : vector<2x4x1024xi1> to vector<2x4x1024xi32>
    %186 = arith.sitofp %185 : vector<2x4x1024xi32> to vector<2x4x1024xf32>
    %cst_21 = arith.constant dense<0.000000e+00> : vector<2x4xf32>
    %187 = vector.multi_reduction <add>, %186, %cst_21 [2] : vector<2x4x1024xf32> to vector<2x4xf32>
    %188 = vector.shape_cast %187 : vector<2x4xf32> to vector<2x4x1xf32>
    %189 = arith.cmpf ogt, %188, %180 : vector<2x4x1xf32>
    %190 = arith.select %189, %188, %180 : vector<2x4x1xi1>, vector<2x4x1xf32>
    %191 = vector.broadcast %c18_i32 : i32 to vector<2x4x1xi32>
    %192 = arith.select %189, %191, %182 : vector<2x4x1xi1>, vector<2x4x1xi32>
    %c19_i32 = arith.constant 19 : i32
    %193 = vector.broadcast %c19_i32 : i32 to vector<2x4x1024xi32>
    %194 = arith.cmpi eq, %0, %193 : vector<2x4x1024xi32>
    %195 = arith.extui %194 : vector<2x4x1024xi1> to vector<2x4x1024xi32>
    %196 = arith.sitofp %195 : vector<2x4x1024xi32> to vector<2x4x1024xf32>
    %cst_22 = arith.constant dense<0.000000e+00> : vector<2x4xf32>
    %197 = vector.multi_reduction <add>, %196, %cst_22 [2] : vector<2x4x1024xf32> to vector<2x4xf32>
    %198 = vector.shape_cast %197 : vector<2x4xf32> to vector<2x4x1xf32>
    %199 = arith.cmpf ogt, %198, %190 : vector<2x4x1xf32>
    %200 = arith.select %199, %198, %190 : vector<2x4x1xi1>, vector<2x4x1xf32>
    %201 = vector.broadcast %c19_i32 : i32 to vector<2x4x1xi32>
    %202 = arith.select %199, %201, %192 : vector<2x4x1xi1>, vector<2x4x1xi32>
    %c20_i32 = arith.constant 20 : i32
    %203 = vector.broadcast %c20_i32 : i32 to vector<2x4x1024xi32>
    %204 = arith.cmpi eq, %0, %203 : vector<2x4x1024xi32>
    %205 = arith.extui %204 : vector<2x4x1024xi1> to vector<2x4x1024xi32>
    %206 = arith.sitofp %205 : vector<2x4x1024xi32> to vector<2x4x1024xf32>
    %cst_23 = arith.constant dense<0.000000e+00> : vector<2x4xf32>
    %207 = vector.multi_reduction <add>, %206, %cst_23 [2] : vector<2x4x1024xf32> to vector<2x4xf32>
    %208 = vector.shape_cast %207 : vector<2x4xf32> to vector<2x4x1xf32>
    %209 = arith.cmpf ogt, %208, %200 : vector<2x4x1xf32>
    %210 = arith.select %209, %208, %200 : vector<2x4x1xi1>, vector<2x4x1xf32>
    %211 = vector.broadcast %c20_i32 : i32 to vector<2x4x1xi32>
    %212 = arith.select %209, %211, %202 : vector<2x4x1xi1>, vector<2x4x1xi32>
    %c21_i32 = arith.constant 21 : i32
    %213 = vector.broadcast %c21_i32 : i32 to vector<2x4x1024xi32>
    %214 = arith.cmpi eq, %0, %213 : vector<2x4x1024xi32>
    %215 = arith.extui %214 : vector<2x4x1024xi1> to vector<2x4x1024xi32>
    %216 = arith.sitofp %215 : vector<2x4x1024xi32> to vector<2x4x1024xf32>
    %cst_24 = arith.constant dense<0.000000e+00> : vector<2x4xf32>
    %217 = vector.multi_reduction <add>, %216, %cst_24 [2] : vector<2x4x1024xf32> to vector<2x4xf32>
    %218 = vector.shape_cast %217 : vector<2x4xf32> to vector<2x4x1xf32>
    %219 = arith.cmpf ogt, %218, %210 : vector<2x4x1xf32>
    %220 = arith.select %219, %218, %210 : vector<2x4x1xi1>, vector<2x4x1xf32>
    %221 = vector.broadcast %c21_i32 : i32 to vector<2x4x1xi32>
    %222 = arith.select %219, %221, %212 : vector<2x4x1xi1>, vector<2x4x1xi32>
    %c22_i32 = arith.constant 22 : i32
    %223 = vector.broadcast %c22_i32 : i32 to vector<2x4x1024xi32>
    %224 = arith.cmpi eq, %0, %223 : vector<2x4x1024xi32>
    %225 = arith.extui %224 : vector<2x4x1024xi1> to vector<2x4x1024xi32>
    %226 = arith.sitofp %225 : vector<2x4x1024xi32> to vector<2x4x1024xf32>
    %cst_25 = arith.constant dense<0.000000e+00> : vector<2x4xf32>
    %227 = vector.multi_reduction <add>, %226, %cst_25 [2] : vector<2x4x1024xf32> to vector<2x4xf32>
    %228 = vector.shape_cast %227 : vector<2x4xf32> to vector<2x4x1xf32>
    %229 = arith.cmpf ogt, %228, %220 : vector<2x4x1xf32>
    %230 = arith.select %229, %228, %220 : vector<2x4x1xi1>, vector<2x4x1xf32>
    %231 = vector.broadcast %c22_i32 : i32 to vector<2x4x1xi32>
    %232 = arith.select %229, %231, %222 : vector<2x4x1xi1>, vector<2x4x1xi32>
    %c23_i32 = arith.constant 23 : i32
    %c0_26 = arith.constant 0 : index
    %c0_27 = arith.constant 0 : index
    %c0_28 = arith.constant 0 : index
    %233 = vector.load %arg2[%c0_26, %c0_27, %c0_28] : memref<2x4x1xi32, #tpu.memory_space<vmem>>, vector<2x4x1xi32>
    tpu.vector_store %arg2[%c0_26, %c0_27, %c0_28], %232 {strides = array<i32>} : memref<2x4x1xi32, #tpu.memory_space<vmem>>, vector<2x4x1xi32>,
    %234 = tpu.iota {dimensions = array<i32: 2>} : vector<1x1x23xi32>
    %235 = vector.broadcast %232 : vector<2x4x1xi32> to vector<2x4x23xi32>
    %236 = vector.broadcast %234 : vector<1x1x23xi32> to vector<2x4x23xi32>
    %237 = arith.cmpi eq, %235, %236 : vector<2x4x23xi32>
    %238 = arith.extui %237 : vector<2x4x23xi1> to vector<2x4x23xi32>
    %239 = arith.sitofp %238 : vector<2x4x23xi32> to vector<2x4x23xf32>
    %cst_29 = arith.constant dense<0xFF800000> : vector<2x23xf32>
    %240 = vector.multi_reduction <maximumf>, %239, %cst_29 [1] : vector<2x4x23xf32> to vector<2x23xf32>
    %241 = vector.shape_cast %240 : vector<2x23xf32> to vector<2x1x23xf32>
    %c0_30 = arith.constant 0 : index
    %c0_31 = arith.constant 0 : index
    %c0_32 = arith.constant 0 : index
    %242 = vector.load %arg3[%c0_30, %c0_31, %c0_32] : memref<2x1x23xf32, #tpu.memory_space<vmem>>, vector<2x1x23xf32>
    tpu.vector_store %arg3[%c0_30, %c0_31, %c0_32], %241 {strides = array<i32>} : memref<2x1x23xf32, #tpu.memory_space<vmem>>, vector<2x1x23xf32>,
    return
  }
  func.func @transform_0(%arg0: i32) -> (i32, i32, i32) {
    %c0_i32 = arith.constant 0 : i32
    %c0_i32_0 = arith.constant 0 : i32
    %c0_i32_1 = arith.constant 0 : i32
    return %arg0, %c0_i32, %c0_i32_0 : i32, i32, i32
  }
  func.func @transform_1(%arg0: i32) -> (i32, i32, i32) {
    %c0_i32 = arith.constant 0 : i32
    %c0_i32_0 = arith.constant 0 : i32
    %c0_i32_1 = arith.constant 0 : i32
    return %arg0, %c0_i32, %c0_i32_0 : i32, i32, i32
  }
  func.func @transform_2(%arg0: i32) -> (i32, i32, i32) {
    %c0_i32 = arith.constant 0 : i32
    %c0_i32_0 = arith.constant 0 : i32
    %c0_i32_1 = arith.constant 0 : i32
    return %arg0, %c0_i32, %c0_i32_0 : i32, i32, i32
  }
}

module attributes {stable_mosaic.version = 11 : i64} {
  func.func @_sample_norm_kernel(%arg0: i32, %arg1: memref<2x1x4xi32, #tpu.memory_space<vmem>>, %arg2: memref<2x16x1xi32, #tpu.memory_space<vmem>>, %arg3: memref<2x16x4xf32, #tpu.memory_space<vmem>>) attributes {dimension_semantics = [#tpu.dimension_semantics<parallel>], iteration_bounds = array<i64: 1>, scalar_prefetch = 0 : i64, scratch_operands = 0 : i64, tpu.core_type = #tpu.core_type<tc>, window_params = [{transform_indices = @transform_0, window_bounds = array<i64: 2, 1, 4>}, {transform_indices = @transform_1, window_bounds = array<i64: 2, 16, 1>}, {transform_indices = @transform_2, window_bounds = array<i64: 2, 16, 4>}]} {
    %c0 = arith.constant 0 : index
    %c0_0 = arith.constant 0 : index
    %c0_1 = arith.constant 0 : index
    %0 = vector.load %arg1[%c0, %c0_0, %c0_1] : memref<2x1x4xi32, #tpu.memory_space<vmem>>, vector<2x1x4xi32>
    %c0_2 = arith.constant 0 : index
    %c0_3 = arith.constant 0 : index
    %c0_4 = arith.constant 0 : index
    %1 = vector.load %arg2[%c0_2, %c0_3, %c0_4] : memref<2x16x1xi32, #tpu.memory_space<vmem>>, vector<2x16x1xi32>
    %2 = vector.broadcast %1 : vector<2x16x1xi32> to vector<2x16x4xi32>
    %3 = vector.broadcast %0 : vector<2x1x4xi32> to vector<2x16x4xi32>
    %4 = arith.cmpi eq, %2, %3 : vector<2x16x4xi32>
    %5 = arith.extui %4 : vector<2x16x4xi1> to vector<2x16x4xi32>
    %6 = arith.sitofp %5 : vector<2x16x4xi32> to vector<2x16x4xf32>
    %cst = arith.constant dense<0.000000e+00> : vector<2x16xf32>
    %7 = vector.multi_reduction <add>, %6, %cst [2] : vector<2x16x4xf32> to vector<2x16xf32>
    %8 = vector.shape_cast %7 : vector<2x16xf32> to vector<2x16x1xf32>
    %cst_5 = arith.constant 1.000000e+00 : f32
    %9 = vector.broadcast %cst_5 : f32 to vector<2x16x1xf32>
    %10 = arith.maximumf %8, %9 : vector<2x16x1xf32>
    %11 = vector.broadcast %10 : vector<2x16x1xf32> to vector<2x16x4xf32>
    %12 = arith.divf %6, %11 : vector<2x16x4xf32>
    %c0_6 = arith.constant 0 : index
    %c0_7 = arith.constant 0 : index
    %c0_8 = arith.constant 0 : index
    %13 = vector.load %arg3[%c0_6, %c0_7, %c0_8] : memref<2x16x4xf32, #tpu.memory_space<vmem>>, vector<2x16x4xf32>
    tpu.vector_store %arg3[%c0_6, %c0_7, %c0_8], %12 {strides = array<i32>} : memref<2x16x4xf32, #tpu.memory_space<vmem>>, vector<2x16x4xf32>,
    return
  }
  func.func @transform_0(%arg0: i32) -> (i32, i32, i32) {
    %c0_i32 = arith.constant 0 : i32
    %c0_i32_0 = arith.constant 0 : i32
    %c0_i32_1 = arith.constant 0 : i32
    return %arg0, %c0_i32, %c0_i32_0 : i32, i32, i32
  }
  func.func @transform_1(%arg0: i32) -> (i32, i32, i32) {
    %c0_i32 = arith.constant 0 : i32
    %c0_i32_0 = arith.constant 0 : i32
    %c0_i32_1 = arith.constant 0 : i32
    return %arg0, %c0_i32, %c0_i32_0 : i32, i32, i32
  }
  func.func @transform_2(%arg0: i32) -> (i32, i32, i32) {
    %c0_i32 = arith.constant 0 : i32
    %c0_i32_0 = arith.constant 0 : i32
    %c0_i32_1 = arith.constant 0 : i32
    return %arg0, %c0_i32, %c0_i32_0 : i32, i32, i32
  }
}

</mosaic_0001>

<llo_original>
// kernel: squeeze.5
$region0: #{squeeze.5}
  %s0 = inlined_call_operand.hbm [shape: s32[2,1,64,64], index: 0, kind: input, shape index: {}]
  %s1 = inlined_call_operand.vmem [shape: s32[2,2,32,2,32], index: 1, kind: output, shape index: {}]
  $region1: #{squeeze.5} parent=0
    #allocation0 [shape = 'u8[65536]{0}', space=vmem, size = 0x10000, scoped, tag = 'operand span for operand 0']
    #allocation1 [shape = 's32[1]{0}', space=sflag, size = 0x4, scoped, tag = 'scoped memory for squeeze.5']
    #allocation2 [shape = 'u8[524288]{0}', space=vmem, size = 0x80000, scoped, tag = 'scoped mem for output reshape']
    %2 = vsyncpa [#allocation1], 0
    %4 = vsyncadd [#allocation1], 0
    %s6 = sshll.u32 %s0, 4
    %s7 = int_to_ptr.hbm [resolvable:$true] %s6
    %s8 = sshll.u32 [#allocation0], 4
    %s9 = int_to_ptr.vmem [resolvable:$true] %s8
    %11 = dma.hbm_to_vmem [thread:$0]  %s7, 2048, %s9, [#allocation1]
    %13 = dma.done [#allocation1], 2048
    %v14 = vld [vmem:[#allocation0] sm:$0xff]
    %vm15 = vcmask 261120
    %16 = vst.msk [vmem:[#allocation2] ss:$8 sm:$0xf] %vm15, %v14
    %17 = vst.msk [vmem:[#allocation2] ss:$8 sm:$0xf0] %vm15, %v14
    %s18 = scalar_lea.vmem [#allocation0], 8
    %v19 = vld [vmem:[%s18] sm:$0xff]
    %vm20 = vcmask 261120
    %s21 = scalar_lea.vmem [#allocation2], 64
    %22 = vst.msk [vmem:[%s21] ss:$8 sm:$0xf] %vm20, %v19
    %s23 = scalar_lea.vmem [#allocation2], 64
    %24 = vst.msk [vmem:[%s23] ss:$8 sm:$0xf0] %vm20, %v19
    %s25 = scalar_lea.vmem [#allocation0], 16
    %v26 = vld [vmem:[%s25] sm:$0xff]
    %vm27 = vcmask 261120
    %s28 = scalar_lea.vmem [#allocation2], 128
    %29 = vst.msk [vmem:[%s28] ss:$8 sm:$0xf] %vm27, %v26
    %s30 = scalar_lea.vmem [#allocation2], 128
    %31 = vst.msk [vmem:[%s30] ss:$8 sm:$0xf0] %vm27, %v26
    %s32 = scalar_lea.vmem [#allocation0], 24
    %v33 = vld [vmem:[%s32] sm:$0xff]
    %vm34 = vcmask 261120
    %s35 = scalar_lea.vmem [#allocation2], 192
    %36 = vst.msk [vmem:[%s35] ss:$8 sm:$0xf] %vm34, %v33
    %s37 = scalar_lea.vmem [#allocation2], 192
    %38 = vst.msk [vmem:[%s37] ss:$8 sm:$0xf0] %vm34, %v33
    %s39 = scalar_lea.vmem [#allocation0], 32
    %v40 = vld [vmem:[%s39] sm:$0xff]
    %vm41 = vcmask 261120
    %s42 = scalar_lea.vmem [#allocation2], 256
    %43 = vst.msk [vmem:[%s42] ss:$8 sm:$0xf] %vm41, %v40
    %s44 = scalar_lea.vmem [#allocation2], 256
    %45 = vst.msk [vmem:[%s44] ss:$8 sm:$0xf0] %vm41, %v40
    %s46 = scalar_lea.vmem [#allocation0], 40
    %v47 = vld [vmem:[%s46] sm:$0xff]
    %vm48 = vcmask 261120
    %s49 = scalar_lea.vmem [#allocation2], 320
    %50 = vst.msk [vmem:[%s49] ss:$8 sm:$0xf] %vm48, %v47
    %s51 = scalar_lea.vmem [#allocation2], 320
    %52 = vst.msk [vmem:[%s51] ss:$8 sm:$0xf0] %vm48, %v47
    %s53 = scalar_lea.vmem [#allocation0], 48
    %v54 = vld [vmem:[%s53] sm:$0xff]
    %vm55 = vcmask 261120
    %s56 = scalar_lea.vmem [#allocation2], 384
    %57 = vst.msk [vmem:[%s56] ss:$8 sm:$0xf] %vm55, %v54
    %s58 = scalar_lea.vmem [#allocation2], 384
    %59 = vst.msk [vmem:[%s58] ss:$8 sm:$0xf0] %vm55, %v54
    %s60 = scalar_lea.vmem [#allocation0], 56
    %v61 = vld [vmem:[%s60] sm:$0xff]
    %vm62 = vcmask 261120
    %s63 = scalar_lea.vmem [#allocation2], 448
    %64 = vst.msk [vmem:[%s63] ss:$8 sm:$0xf] %vm62, %v61
    %s65 = scalar_lea.vmem [#allocation2], 448
    %66 = vst.msk [vmem:[%s65] ss:$8 sm:$0xf0] %vm62, %v61
    %s67 = scalar_lea.vmem [#allocation0], 64
    %v68 = vld [vmem:[%s67] sm:$0xff]
    %vm69 = vcmask 261120
    %s70 = scalar_lea.vmem [#allocation2], 512
    %71 = vst.msk [vmem:[%s70] ss:$8 sm:$0xf] %vm69, %v68
    %s72 = scalar_lea.vmem [#allocation2], 512
    %73 = vst.msk [vmem:[%s72] ss:$8 sm:$0xf0] %vm69, %v68
    %s74 = scalar_lea.vmem [#allocation0], 72
    %v75 = vld [vmem:[%s74] sm:$0xff]
    %vm76 = vcmask 261120
    %s77 = scalar_lea.vmem [#allocation2], 576
    %78 = vst.msk [vmem:[%s77] ss:$8 sm:$0xf] %vm76, %v75
    %s79 = scalar_lea.vmem [#allocation2], 576
    %80 = vst.msk [vmem:[%s79] ss:$8 sm:$0xf0] %vm76, %v75
    %s81 = scalar_lea.vmem [#allocation0], 80
    %v82 = vld [vmem:[%s81] sm:$0xff]
    %vm83 = vcmask 261120
    %s84 = scalar_lea.vmem [#allocation2], 640
    %85 = vst.msk [vmem:[%s84] ss:$8 sm:$0xf] %vm83, %v82
    %s86 = scalar_lea.vmem [#allocation2], 640
    %87 = vst.msk [vmem:[%s86] ss:$8 sm:$0xf0] %vm83, %v82
    %s88 = scalar_lea.vmem [#allocation0], 88
    %v89 = vld [vmem:[%s88] sm:$0xff]
    %vm90 = vcmask 261120
    %s91 = scalar_lea.vmem [#allocation2], 704
    %92 = vst.msk [vmem:[%s91] ss:$8 sm:$0xf] %vm90, %v89
    %s93 = scalar_lea.vmem [#allocation2], 704
    %94 = vst.msk [vmem:[%s93] ss:$8 sm:$0xf0] %vm90, %v89
    %s95 = scalar_lea.vmem [#allocation0], 96
    %v96 = vld [vmem:[%s95] sm:$0xff]
    %vm97 = vcmask 261120
    %s98 = scalar_lea.vmem [#allocation2], 768
    %99 = vst.msk [vmem:[%s98] ss:$8 sm:$0xf] %vm97, %v96
    %s100 = scalar_lea.vmem [#allocation2], 768
    %101 = vst.msk [vmem:[%s100] ss:$8 sm:$0xf0] %vm97, %v96
    %s102 = scalar_lea.vmem [#allocation0], 104
    %v103 = vld [vmem:[%s102] sm:$0xff]
    %vm104 = vcmask 261120
    %s105 = scalar_lea.vmem [#allocation2], 832
    %106 = vst.msk [vmem:[%s105] ss:$8 sm:$0xf] %vm104, %v103
    %s107 = scalar_lea.vmem [#allocation2], 832
    %108 = vst.msk [vmem:[%s107] ss:$8 sm:$0xf0] %vm104, %v103
    %s109 = scalar_lea.vmem [#allocation0], 112
    %v110 = vld [vmem:[%s109] sm:$0xff]
    %vm111 = vcmask 261120
    %s112 = scalar_lea.vmem [#allocation2], 896
    %113 = vst.msk [vmem:[%s112] ss:$8 sm:$0xf] %vm111, %v110
    %s114 = scalar_lea.vmem [#allocation2], 896
    %115 = vst.msk [vmem:[%s114] ss:$8 sm:$0xf0] %vm111, %v110
    %s116 = scalar_lea.vmem [#allocation0], 120
    %v117 = vld [vmem:[%s116] sm:$0xff]
    %vm118 = vcmask 261120
    %s119 = scalar_lea.vmem [#allocation2], 960
    %120 = vst.msk [vmem:[%s119] ss:$8 sm:$0xf] %vm118, %v117
    %s121 = scalar_lea.vmem [#allocation2], 960
    %122 = vst.msk [vmem:[%s121] ss:$8 sm:$0xf0] %vm118, %v117
    %v123 = vld [vmem:[#allocation0] sm:$0xff]
    %124 = vrot.lane.b32.xlu0 %v123, 96
    %v125 = vpop.permute.xlu0 %124
    %vm126 = vcmask 261120
    %s127 = scalar_lea.vmem [#allocation2], 1
    %128 = vst.msk [vmem:[%s127] ss:$8 sm:$0xf] %vm126, %v125
    %s129 = scalar_lea.vmem [#allocation2], 1
    %130 = vst.msk [vmem:[%s129] ss:$8 sm:$0xf0] %vm126, %v125
    %s131 = scalar_lea.vmem [#allocation0], 8
    %v132 = vld [vmem:[%s131] sm:$0xff]
    %133 = vrot.lane.b32.xlu0 %v132, 96
    %v134 = vpop.permute.xlu0 %133
    %vm135 = vcmask 261120
    %s136 = scalar_lea.vmem [#allocation2], 65
    %137 = vst.msk [vmem:[%s136] ss:$8 sm:$0xf] %vm135, %v134
    %s138 = scalar_lea.vmem [#allocation2], 65
    %139 = vst.msk [vmem:[%s138] ss:$8 sm:$0xf0] %vm135, %v134
    %s140 = scalar_lea.vmem [#allocation0], 16
    %v141 = vld [vmem:[%s140] sm:$0xff]
    %142 = vrot.lane.b32.xlu0 %v141, 96
    %v143 = vpop.permute.xlu0 %142
    %vm144 = vcmask 261120
    %s145 = scalar_lea.vmem [#allocation2], 129
    %146 = vst.msk [vmem:[%s145] ss:$8 sm:$0xf] %vm144, %v143
    %s147 = scalar_lea.vmem [#allocation2], 129
    %148 = vst.msk [vmem:[%s147] ss:$8 sm:$0xf0] %vm144, %v143
    %s149 = scalar_lea.vmem [#allocation0], 24
    %v150 = vld [vmem:[%s149] sm:$0xff]
    %151 = vrot.lane.b32.xlu0 %v150, 96
    %v152 = vpop.permute.xlu0 %151
    %vm153 = vcmask 261120
    %s154 = scalar_lea.vmem [#allocation2], 193
    %155 = vst.msk [vmem:[%s154] ss:$8 sm:$0xf] %vm153, %v152
    %s156 = scalar_lea.vmem [#allocation2], 193
    %157 = vst.msk [vmem:[%s156] ss:$8 sm:$0xf0] %vm153, %v152
    %s158 = scalar_lea.vmem [#allocation0], 32
    %v159 = vld [vmem:[%s158] sm:$0xff]
    %160 = vrot.lane.b32.xlu0 %v159, 96
    %v161 = vpop.permute.xlu0 %160
    %vm162 = vcmask 261120
    %s163 = scalar_lea.vmem [#allocation2], 257
    %164 = vst.msk [vmem:[%s163] ss:$8 sm:$0xf] %vm162, %v161
    %s165 = scalar_lea.vmem [#allocation2], 257
    %166 = vst.msk [vmem:[%s165] ss:$8 sm:$0xf0] %vm162, %v161
    %s167 = scalar_lea.vmem [#allocation0], 40
    %v168 = vld [vmem:[%s167] sm:$0xff]
    %169 = vrot.lane.b32.xlu0 %v168, 96
    %v170 = vpop.permute.xlu0 %169
    %vm171 = vcmask 261120
    %s172 = scalar_lea.vmem [#allocation2], 321
    %173 = vst.msk [vmem:[%s172] ss:$8 sm:$0xf] %vm171, %v170
    %s174 = scalar_lea.vmem [#allocation2], 321
    %175 = vst.msk [vmem:[%s174] ss:$8 sm:$0xf0] %vm171, %v170
    %s176 = scalar_lea.vmem [#allocation0], 48
    %v177 = vld [vmem:[%s176] sm:$0xff]
    %178 = vrot.lane.b32.xlu0 %v177, 96
    %v179 = vpop.permute.xlu0 %178
    %vm180 = vcmask 261120
    %s181 = scalar_lea.vmem [#allocation2], 385
    %182 = vst.msk [vmem:[%s181] ss:$8 sm:$0xf] %vm180, %v179
    %s183 = scalar_lea.vmem [#allocation2], 385
    %184 = vst.msk [vmem:[%s183] ss:$8 sm:$0xf0] %vm180, %v179
    %s185 = scalar_lea.vmem [#allocation0], 56
    %v186 = vld [vmem:[%s185] sm:$0xff]
    %187 = vrot.lane.b32.xlu0 %v186, 96
    %v188 = vpop.permute.xlu0 %187
    %vm189 = vcmask 261120
    %s190 = scalar_lea.vmem [#allocation2], 449
    %191 = vst.msk [vmem:[%s190] ss:$8 sm:$0xf] %vm189, %v188
    %s192 = scalar_lea.vmem [#allocation2], 449
    %193 = vst.msk [vmem:[%s192] ss:$8 sm:$0xf0] %vm189, %v188
    %s194 = scalar_lea.vmem [#allocation0], 64
    %v195 = vld [vmem:[%s194] sm:$0xff]
    %196 = vrot.lane.b32.xlu0 %v195, 96
    %v197 = vpop.permute.xlu0 %196
    %vm198 = vcmask 261120
    %s199 = scalar_lea.vmem [#allocation2], 513
    %200 = vst.msk [vmem:[%s199] ss:$8 sm:$0xf] %vm198, %v197
    %s201 = scalar_lea.vmem [#allocation2], 513
    %202 = vst.msk [vmem:[%s201] ss:$8 sm:$0xf0] %vm198, %v197
    %s203 = scalar_lea.vmem [#allocation0], 72
    %v204 = vld [vmem:[%s203] sm:$0xff]
    %205 = vrot.lane.b32.xlu0 %v204, 96
    %v206 = vpop.permute.xlu0 %205
    %vm207 = vcmask 261120
    %s208 = scalar_lea.vmem [#allocation2], 577
    %209 = vst.msk [vmem:[%s208] ss:$8 sm:$0xf] %vm207, %v206
    %s210 = scalar_lea.vmem [#allocation2], 577
    %211 = vst.msk [vmem:[%s210] ss:$8 sm:$0xf0] %vm207, %v206
    %s212 = scalar_lea.vmem [#allocation0], 80
    %v213 = vld [vmem:[%s212] sm:$0xff]
    %214 = vrot.lane.b32.xlu0 %v213, 96
    %v215 = vpop.permute.xlu0 %214
    %vm216 = vcmask 261120
    %s217 = scalar_lea.vmem [#allocation2], 641
    %218 = vst.msk [vmem:[%s217] ss:$8 sm:$0xf] %vm216, %v215
    %s219 = scalar_lea.vmem [#allocation2], 641
    %220 = vst.msk [vmem:[%s219] ss:$8 sm:$0xf0] %vm216, %v215
    %s221 = scalar_lea.vmem [#allocation0], 88
    %v222 = vld [vmem:[%s221] sm:$0xff]
    %223 = vrot.lane.b32.xlu0 %v222, 96
    %v224 = vpop.permute.xlu0 %223
    %vm225 = vcmask 261120
    %s226 = scalar_lea.vmem [#allocation2], 705
    %227 = vst.msk [vmem:[%s226] ss:$8 sm:$0xf] %vm225, %v224
    %s228 = scalar_lea.vmem [#allocation2], 705
    %229 = vst.msk [vmem:[%s228] ss:$8 sm:$0xf0] %vm225, %v224
    %s230 = scalar_lea.vmem [#allocation0], 96
    %v231 = vld [vmem:[%s230] sm:$0xff]
    %232 = vrot.lane.b32.xlu0 %v231, 96
    %v233 = vpop.permute.xlu0 %232
    %vm234 = vcmask 261120
    %s235 = scalar_lea.vmem [#allocation2], 769
    %236 = vst.msk [vmem:[%s235] ss:$8 sm:$0xf] %vm234, %v233
    %s237 = scalar_lea.vmem [#allocation2], 769
    %238 = vst.msk [vmem:[%s237] ss:$8 sm:$0xf0] %vm234, %v233
    %s239 = scalar_lea.vmem [#allocation0], 104
    %v240 = vld [vmem:[%s239] sm:$0xff]
    %241 = vrot.lane.b32.xlu0 %v240, 96
    %v242 = vpop.permute.xlu0 %241
    %vm243 = vcmask 261120
    %s244 = scalar_lea.vmem [#allocation2], 833
    %245 = vst.msk [vmem:[%s244] ss:$8 sm:$0xf] %vm243, %v242
    %s246 = scalar_lea.vmem [#allocation2], 833
    %247 = vst.msk [vmem:[%s246] ss:$8 sm:$0xf0] %vm243, %v242
    %s248 = scalar_lea.vmem [#allocation0], 112
    %v249 = vld [vmem:[%s248] sm:$0xff]
    %250 = vrot.lane.b32.xlu0 %v249, 96
    %v251 = vpop.permute.xlu0 %250
    %vm252 = vcmask 261120
    %s253 = scalar_lea.vmem [#allocation2], 897
    %254 = vst.msk [vmem:[%s253] ss:$8 sm:$0xf] %vm252, %v251
    %s255 = scalar_lea.vmem [#allocation2], 897
    %256 = vst.msk [vmem:[%s255] ss:$8 sm:$0xf0] %vm252, %v251
    %s257 = scalar_lea.vmem [#allocation0], 120
    %v258 = vld [vmem:[%s257] sm:$0xff]
    %259 = vrot.lane.b32.xlu0 %v258, 96
    %v260 = vpop.permute.xlu0 %259
    %vm261 = vcmask 261120
    %s262 = scalar_lea.vmem [#allocation2], 961
    %263 = vst.msk [vmem:[%s262] ss:$8 sm:$0xf] %vm261, %v260
    %s264 = scalar_lea.vmem [#allocation2], 961
    %265 = vst.msk [vmem:[%s264] ss:$8 sm:$0xf0] %vm261, %v260
    %s267 = ssub.s32 4, 1
    %v268 = vld [vmem:[#allocation2] sm:%s267]
    %s270 = ssub.s32 4, 1
    %271 = vst [vmem:[%s1] sm:%s270] %v268
    %s272 = scalar_lea.vmem [#allocation2], 8
    %v273 = vld [vmem:[%s272] sm:%s267]
    %s275 = ssub.s32 4, 1
    %s276 = scalar_lea.vmem %s1, 2
    %277 = vst [vmem:[%s276] sm:%s275] %v273
    %s278 = scalar_lea.vmem [#allocation2], 16
    %v279 = vld [vmem:[%s278] sm:%s267]
    %s281 = ssub.s32 4, 1
    %s282 = scalar_lea.vmem %s1, 4
    %283 = vst [vmem:[%s282] sm:%s281] %v279
    %s284 = scalar_lea.vmem [#allocation2], 24
    %v285 = vld [vmem:[%s284] sm:%s267]
    %s287 = ssub.s32 4, 1
    %s288 = scalar_lea.vmem %s1, 6
    %289 = vst [vmem:[%s288] sm:%s287] %v285
    %s290 = scalar_lea.vmem [#allocation2], 32
    %v291 = vld [vmem:[%s290] sm:%s267]
    %s293 = ssub.s32 4, 1
    %s294 = scalar_lea.vmem %s1, 8
    %295 = vst [vmem:[%s294] sm:%s293] %v291
    %s296 = scalar_lea.vmem [#allocation2], 40
    %v297 = vld [vmem:[%s296] sm:%s267]
    %s299 = ssub.s32 4, 1
    %s300 = scalar_lea.vmem %s1, 10
    %301 = vst [vmem:[%s300] sm:%s299] %v297
    %s302 = scalar_lea.vmem [#allocation2], 48
    %v303 = vld [vmem:[%s302] sm:%s267]
    %s305 = ssub.s32 4, 1
    %s306 = scalar_lea.vmem %s1, 12
    %307 = vst [vmem:[%s306] sm:%s305] %v303
    %s308 = scalar_lea.vmem [#allocation2], 56
    %v309 = vld [vmem:[%s308] sm:%s267]
    %s311 = ssub.s32 4, 1
    %s312 = scalar_lea.vmem %s1, 14
    %313 = vst [vmem:[%s312] sm:%s311] %v309
    %s314 = scalar_lea.vmem [#allocation2], 64
    %v315 = vld [vmem:[%s314] sm:%s267]
    %s317 = ssub.s32 4, 1
    %s318 = scalar_lea.vmem %s1, 16
    %319 = vst [vmem:[%s318] sm:%s317] %v315
    %s320 = scalar_lea.vmem [#allocation2], 72
    %v321 = vld [vmem:[%s320] sm:%s267]
    %s323 = ssub.s32 4, 1
    %s324 = scalar_lea.vmem %s1, 18
    %325 = vst [vmem:[%s324] sm:%s323] %v321
    %s326 = scalar_lea.vmem [#allocation2], 80
    %v327 = vld [vmem:[%s326] sm:%s267]
    %s329 = ssub.s32 4, 1
    %s330 = scalar_lea.vmem %s1, 20
    %331 = vst [vmem:[%s330] sm:%s329] %v327
    %s332 = scalar_lea.vmem [#allocation2], 88
    %v333 = vld [vmem:[%s332] sm:%s267]
    %s335 = ssub.s32 4, 1
    %s336 = scalar_lea.vmem %s1, 22
    %337 = vst [vmem:[%s336] sm:%s335] %v333
    %s338 = scalar_lea.vmem [#allocation2], 96
    %v339 = vld [vmem:[%s338] sm:%s267]
    %s341 = ssub.s32 4, 1
    %s342 = scalar_lea.vmem %s1, 24
    %343 = vst [vmem:[%s342] sm:%s341] %v339
    %s344 = scalar_lea.vmem [#allocation2], 104
    %v345 = vld [vmem:[%s344] sm:%s267]
    %s347 = ssub.s32 4, 1
    %s348 = scalar_lea.vmem %s1, 26
    %349 = vst [vmem:[%s348] sm:%s347] %v345
    %s350 = scalar_lea.vmem [#allocation2], 112
    %v351 = vld [vmem:[%s350] sm:%s267]
    %s353 = ssub.s32 4, 1
    %s354 = scalar_lea.vmem %s1, 28
    %355 = vst [vmem:[%s354] sm:%s353] %v351
    %s356 = scalar_lea.vmem [#allocation2], 120
    %v357 = vld [vmem:[%s356] sm:%s267]
    %s359 = ssub.s32 4, 1
    %s360 = scalar_lea.vmem %s1, 30
    %361 = vst [vmem:[%s360] sm:%s359] %v357
    %s362 = scalar_lea.vmem [#allocation2], 128
    %v363 = vld [vmem:[%s362] sm:%s267]
    %s365 = ssub.s32 4, 1
    %s366 = scalar_lea.vmem %s1, 32
    %367 = vst [vmem:[%s366] sm:%s365] %v363
    %s368 = scalar_lea.vmem [#allocation2], 136
    %v369 = vld [vmem:[%s368] sm:%s267]
    %s371 = ssub.s32 4, 1
    %s372 = scalar_lea.vmem %s1, 34
    %373 = vst [vmem:[%s372] sm:%s371] %v369
    %s374 = scalar_lea.vmem [#allocation2], 144
    %v375 = vld [vmem:[%s374] sm:%s267]
    %s377 = ssub.s32 4, 1
    %s378 = scalar_lea.vmem %s1, 36
    %379 = vst [vmem:[%s378] sm:%s377] %v375
    %s380 = scalar_lea.vmem [#allocation2], 152
    %v381 = vld [vmem:[%s380] sm:%s267]
    %s383 = ssub.s32 4, 1
    %s384 = scalar_lea.vmem %s1, 38
    %385 = vst [vmem:[%s384] sm:%s383] %v381
    %s386 = scalar_lea.vmem [#allocation2], 160
    %v387 = vld [vmem:[%s386] sm:%s267]
    %s389 = ssub.s32 4, 1
    %s390 = scalar_lea.vmem %s1, 40
    %391 = vst [vmem:[%s390] sm:%s389] %v387
    %s392 = scalar_lea.vmem [#allocation2], 168
    %v393 = vld [vmem:[%s392] sm:%s267]
    %s395 = ssub.s32 4, 1
    %s396 = scalar_lea.vmem %s1, 42
    %397 = vst [vmem:[%s396] sm:%s395] %v393
    %s398 = scalar_lea.vmem [#allocation2], 176
    %v399 = vld [vmem:[%s398] sm:%s267]
    %s401 = ssub.s32 4, 1
    %s402 = scalar_lea.vmem %s1, 44
    %403 = vst [vmem:[%s402] sm:%s401] %v399
    %s404 = scalar_lea.vmem [#allocation2], 184
    %v405 = vld [vmem:[%s404] sm:%s267]
    %s407 = ssub.s32 4, 1
    %s408 = scalar_lea.vmem %s1, 46
    %409 = vst [vmem:[%s408] sm:%s407] %v405
    %s410 = scalar_lea.vmem [#allocation2], 192
    %v411 = vld [vmem:[%s410] sm:%s267]
    %s413 = ssub.s32 4, 1
    %s414 = scalar_lea.vmem %s1, 48
    %415 = vst [vmem:[%s414] sm:%s413] %v411
    %s416 = scalar_lea.vmem [#allocation2], 200
    %v417 = vld [vmem:[%s416] sm:%s267]
    %s419 = ssub.s32 4, 1
    %s420 = scalar_lea.vmem %s1, 50
    %421 = vst [vmem:[%s420] sm:%s419] %v417
    %s422 = scalar_lea.vmem [#allocation2], 208
    %v423 = vld [vmem:[%s422] sm:%s267]
    %s425 = ssub.s32 4, 1
    %s426 = scalar_lea.vmem %s1, 52
    %427 = vst [vmem:[%s426] sm:%s425] %v423
    %s428 = scalar_lea.vmem [#allocation2], 216
    %v429 = vld [vmem:[%s428] sm:%s267]
    %s431 = ssub.s32 4, 1
    %s432 = scalar_lea.vmem %s1, 54
    %433 = vst [vmem:[%s432] sm:%s431] %v429
    %s434 = scalar_lea.vmem [#allocation2], 224
    %v435 = vld [vmem:[%s434] sm:%s267]
    %s437 = ssub.s32 4, 1
    %s438 = scalar_lea.vmem %s1, 56
    %439 = vst [vmem:[%s438] sm:%s437] %v435
    %s440 = scalar_lea.vmem [#allocation2], 232
    %v441 = vld [vmem:[%s440] sm:%s267]
    %s443 = ssub.s32 4, 1
    %s444 = scalar_lea.vmem %s1, 58
    %445 = vst [vmem:[%s444] sm:%s443] %v441
    %s446 = scalar_lea.vmem [#allocation2], 240
    %v447 = vld [vmem:[%s446] sm:%s267]
    %s449 = ssub.s32 4, 1
    %s450 = scalar_lea.vmem %s1, 60
    %451 = vst [vmem:[%s450] sm:%s449] %v447
    %s452 = scalar_lea.vmem [#allocation2], 248
    %v453 = vld [vmem:[%s452] sm:%s267]
    %s455 = ssub.s32 4, 1
    %s456 = scalar_lea.vmem %s1, 62
    %457 = vst [vmem:[%s456] sm:%s455] %v453
    %s458 = scalar_lea.vmem [#allocation2], 256
    %v459 = vld [vmem:[%s458] sm:%s267]
    %s461 = ssub.s32 4, 1
    %s462 = scalar_lea.vmem %s1, 64
    %463 = vst [vmem:[%s462] sm:%s461] %v459
    %s464 = scalar_lea.vmem [#allocation2], 264
    %v465 = vld [vmem:[%s464] sm:%s267]
    %s467 = ssub.s32 4, 1
    %s468 = scalar_lea.vmem %s1, 66
    %469 = vst [vmem:[%s468] sm:%s467] %v465
    %s470 = scalar_lea.vmem [#allocation2], 272
    %v471 = vld [vmem:[%s470] sm:%s267]
    %s473 = ssub.s32 4, 1
    %s474 = scalar_lea.vmem %s1, 68
    %475 = vst [vmem:[%s474] sm:%s473] %v471
    %s476 = scalar_lea.vmem [#allocation2], 280
    %v477 = vld [vmem:[%s476] sm:%s267]
    %s479 = ssub.s32 4, 1
    %s480 = scalar_lea.vmem %s1, 70
    %481 = vst [vmem:[%s480] sm:%s479] %v477
    %s482 = scalar_lea.vmem [#allocation2], 288
    %v483 = vld [vmem:[%s482] sm:%s267]
    %s485 = ssub.s32 4, 1
    %s486 = scalar_lea.vmem %s1, 72
    %487 = vst [vmem:[%s486] sm:%s485] %v483
    %s488 = scalar_lea.vmem [#allocation2], 296
    %v489 = vld [vmem:[%s488] sm:%s267]
    %s491 = ssub.s32 4, 1
    %s492 = scalar_lea.vmem %s1, 74
    %493 = vst [vmem:[%s492] sm:%s491] %v489
    %s494 = scalar_lea.vmem [#allocation2], 304
    %v495 = vld [vmem:[%s494] sm:%s267]
    %s497 = ssub.s32 4, 1
    %s498 = scalar_lea.vmem %s1, 76
    %499 = vst [vmem:[%s498] sm:%s497] %v495
    %s500 = scalar_lea.vmem [#allocation2], 312
    %v501 = vld [vmem:[%s500] sm:%s267]
    %s503 = ssub.s32 4, 1
    %s504 = scalar_lea.vmem %s1, 78
    %505 = vst [vmem:[%s504] sm:%s503] %v501
    %s506 = scalar_lea.vmem [#allocation2], 320
    %v507 = vld [vmem:[%s506] sm:%s267]
    %s509 = ssub.s32 4, 1
    %s510 = scalar_lea.vmem %s1, 80
    %511 = vst [vmem:[%s510] sm:%s509] %v507
    %s512 = scalar_lea.vmem [#allocation2], 328
    %v513 = vld [vmem:[%s512] sm:%s267]
    %s515 = ssub.s32 4, 1
    %s516 = scalar_lea.vmem %s1, 82
    %517 = vst [vmem:[%s516] sm:%s515] %v513
    %s518 = scalar_lea.vmem [#allocation2], 336
    %v519 = vld [vmem:[%s518] sm:%s267]
    %s521 = ssub.s32 4, 1
    %s522 = scalar_lea.vmem %s1, 84
    %523 = vst [vmem:[%s522] sm:%s521] %v519
    %s524 = scalar_lea.vmem [#allocation2], 344
    %v525 = vld [vmem:[%s524] sm:%s267]
    %s527 = ssub.s32 4, 1
    %s528 = scalar_lea.vmem %s1, 86
    %529 = vst [vmem:[%s528] sm:%s527] %v525
    %s530 = scalar_lea.vmem [#allocation2], 352
    %v531 = vld [vmem:[%s530] sm:%s267]
    %s533 = ssub.s32 4, 1
    %s534 = scalar_lea.vmem %s1, 88
    %535 = vst [vmem:[%s534] sm:%s533] %v531
    %s536 = scalar_lea.vmem [#allocation2], 360
    %v537 = vld [vmem:[%s536] sm:%s267]
    %s539 = ssub.s32 4, 1
    %s540 = scalar_lea.vmem %s1, 90
    %541 = vst [vmem:[%s540] sm:%s539] %v537
    %s542 = scalar_lea.vmem [#allocation2], 368
    %v543 = vld [vmem:[%s542] sm:%s267]
    %s545 = ssub.s32 4, 1
    %s546 = scalar_lea.vmem %s1, 92
    %547 = vst [vmem:[%s546] sm:%s545] %v543
    %s548 = scalar_lea.vmem [#allocation2], 376
    %v549 = vld [vmem:[%s548] sm:%s267]
    %s551 = ssub.s32 4, 1
    %s552 = scalar_lea.vmem %s1, 94
    %553 = vst [vmem:[%s552] sm:%s551] %v549
    %s554 = scalar_lea.vmem [#allocation2], 384
    %v555 = vld [vmem:[%s554] sm:%s267]
    %s557 = ssub.s32 4, 1
    %s558 = scalar_lea.vmem %s1, 96
    %559 = vst [vmem:[%s558] sm:%s557] %v555
    %s560 = scalar_lea.vmem [#allocation2], 392
    %v561 = vld [vmem:[%s560] sm:%s267]
    %s563 = ssub.s32 4, 1
    %s564 = scalar_lea.vmem %s1, 98
    %565 = vst [vmem:[%s564] sm:%s563] %v561
    %s566 = scalar_lea.vmem [#allocation2], 400
    %v567 = vld [vmem:[%s566] sm:%s267]
    %s569 = ssub.s32 4, 1
    %s570 = scalar_lea.vmem %s1, 100
    %571 = vst [vmem:[%s570] sm:%s569] %v567
    %s572 = scalar_lea.vmem [#allocation2], 408
    %v573 = vld [vmem:[%s572] sm:%s267]
    %s575 = ssub.s32 4, 1
    %s576 = scalar_lea.vmem %s1, 102
    %577 = vst [vmem:[%s576] sm:%s575] %v573
    %s578 = scalar_lea.vmem [#allocation2], 416
    %v579 = vld [vmem:[%s578] sm:%s267]
    %s581 = ssub.s32 4, 1
    %s582 = scalar_lea.vmem %s1, 104
    %583 = vst [vmem:[%s582] sm:%s581] %v579
    %s584 = scalar_lea.vmem [#allocation2], 424
    %v585 = vld [vmem:[%s584] sm:%s267]
    %s587 = ssub.s32 4, 1
    %s588 = scalar_lea.vmem %s1, 106
    %589 = vst [vmem:[%s588] sm:%s587] %v585
    %s590 = scalar_lea.vmem [#allocation2], 432
    %v591 = vld [vmem:[%s590] sm:%s267]
    %s593 = ssub.s32 4, 1
    %s594 = scalar_lea.vmem %s1, 108
    %595 = vst [vmem:[%s594] sm:%s593] %v591
    %s596 = scalar_lea.vmem [#allocation2], 440
    %v597 = vld [vmem:[%s596] sm:%s267]
    %s599 = ssub.s32 4, 1
    %s600 = scalar_lea.vmem %s1, 110
    %601 = vst [vmem:[%s600] sm:%s599] %v597
    %s602 = scalar_lea.vmem [#allocation2], 448
    %v603 = vld [vmem:[%s602] sm:%s267]
    %s605 = ssub.s32 4, 1
    %s606 = scalar_lea.vmem %s1, 112
    %607 = vst [vmem:[%s606] sm:%s605] %v603
    %s608 = scalar_lea.vmem [#allocation2], 456
    %v609 = vld [vmem:[%s608] sm:%s267]
    %s611 = ssub.s32 4, 1
    %s612 = scalar_lea.vmem %s1, 114
    %613 = vst [vmem:[%s612] sm:%s611] %v609
    %s614 = scalar_lea.vmem [#allocation2], 464
    %v615 = vld [vmem:[%s614] sm:%s267]
    %s617 = ssub.s32 4, 1
    %s618 = scalar_lea.vmem %s1, 116
    %619 = vst [vmem:[%s618] sm:%s617] %v615
    %s620 = scalar_lea.vmem [#allocation2], 472
    %v621 = vld [vmem:[%s620] sm:%s267]
    %s623 = ssub.s32 4, 1
    %s624 = scalar_lea.vmem %s1, 118
    %625 = vst [vmem:[%s624] sm:%s623] %v621
    %s626 = scalar_lea.vmem [#allocation2], 480
    %v627 = vld [vmem:[%s626] sm:%s267]
    %s629 = ssub.s32 4, 1
    %s630 = scalar_lea.vmem %s1, 120
    %631 = vst [vmem:[%s630] sm:%s629] %v627
    %s632 = scalar_lea.vmem [#allocation2], 488
    %v633 = vld [vmem:[%s632] sm:%s267]
    %s635 = ssub.s32 4, 1
    %s636 = scalar_lea.vmem %s1, 122
    %637 = vst [vmem:[%s636] sm:%s635] %v633
    %s638 = scalar_lea.vmem [#allocation2], 496
    %v639 = vld [vmem:[%s638] sm:%s267]
    %s641 = ssub.s32 4, 1
    %s642 = scalar_lea.vmem %s1, 124
    %643 = vst [vmem:[%s642] sm:%s641] %v639
    %s644 = scalar_lea.vmem [#allocation2], 504
    %v645 = vld [vmem:[%s644] sm:%s267]
    %s647 = ssub.s32 4, 1
    %s648 = scalar_lea.vmem %s1, 126
    %649 = vst [vmem:[%s648] sm:%s647] %v645
    %s650 = scalar_lea.vmem [#allocation2], 512
    %v651 = vld [vmem:[%s650] sm:%s267]
    %s653 = ssub.s32 4, 1
    %s654 = scalar_lea.vmem %s1, 128
    %655 = vst [vmem:[%s654] sm:%s653] %v651
    %s656 = scalar_lea.vmem [#allocation2], 520
    %v657 = vld [vmem:[%s656] sm:%s267]
    %s659 = ssub.s32 4, 1
    %s660 = scalar_lea.vmem %s1, 130
    %661 = vst [vmem:[%s660] sm:%s659] %v657
    %s662 = scalar_lea.vmem [#allocation2], 528
    %v663 = vld [vmem:[%s662] sm:%s267]
    %s665 = ssub.s32 4, 1
    %s666 = scalar_lea.vmem %s1, 132
    %667 = vst [vmem:[%s666] sm:%s665] %v663
    %s668 = scalar_lea.vmem [#allocation2], 536
    %v669 = vld [vmem:[%s668] sm:%s267]
    %s671 = ssub.s32 4, 1
    %s672 = scalar_lea.vmem %s1, 134
    %673 = vst [vmem:[%s672] sm:%s671] %v669
    %s674 = scalar_lea.vmem [#allocation2], 544
    %v675 = vld [vmem:[%s674] sm:%s267]
    %s677 = ssub.s32 4, 1
    %s678 = scalar_lea.vmem %s1, 136
    %679 = vst [vmem:[%s678] sm:%s677] %v675
    %s680 = scalar_lea.vmem [#allocation2], 552
    %v681 = vld [vmem:[%s680] sm:%s267]
    %s683 = ssub.s32 4, 1
    %s684 = scalar_lea.vmem %s1, 138
    %685 = vst [vmem:[%s684] sm:%s683] %v681
    %s686 = scalar_lea.vmem [#allocation2], 560
    %v687 = vld [vmem:[%s686] sm:%s267]
    %s689 = ssub.s32 4, 1
    %s690 = scalar_lea.vmem %s1, 140
    %691 = vst [vmem:[%s690] sm:%s689] %v687
    %s692 = scalar_lea.vmem [#allocation2], 568
    %v693 = vld [vmem:[%s692] sm:%s267]
    %s695 = ssub.s32 4, 1
    %s696 = scalar_lea.vmem %s1, 142
    %697 = vst [vmem:[%s696] sm:%s695] %v693
    %s698 = scalar_lea.vmem [#allocation2], 576
    %v699 = vld [vmem:[%s698] sm:%s267]
    %s701 = ssub.s32 4, 1
    %s702 = scalar_lea.vmem %s1, 144
    %703 = vst [vmem:[%s702] sm:%s701] %v699
    %s704 = scalar_lea.vmem [#allocation2], 584
    %v705 = vld [vmem:[%s704] sm:%s267]
    %s707 = ssub.s32 4, 1
    %s708 = scalar_lea.vmem %s1, 146
    %709 = vst [vmem:[%s708] sm:%s707] %v705
    %s710 = scalar_lea.vmem [#allocation2], 592
    %v711 = vld [vmem:[%s710] sm:%s267]
    %s713 = ssub.s32 4, 1
    %s714 = scalar_lea.vmem %s1, 148
    %715 = vst [vmem:[%s714] sm:%s713] %v711
    %s716 = scalar_lea.vmem [#allocation2], 600
    %v717 = vld [vmem:[%s716] sm:%s267]
    %s719 = ssub.s32 4, 1
    %s720 = scalar_lea.vmem %s1, 150
    %721 = vst [vmem:[%s720] sm:%s719] %v717
    %s722 = scalar_lea.vmem [#allocation2], 608
    %v723 = vld [vmem:[%s722] sm:%s267]
    %s725 = ssub.s32 4, 1
    %s726 = scalar_lea.vmem %s1, 152
    %727 = vst [vmem:[%s726] sm:%s725] %v723
    %s728 = scalar_lea.vmem [#allocation2], 616
    %v729 = vld [vmem:[%s728] sm:%s267]
    %s731 = ssub.s32 4, 1
    %s732 = scalar_lea.vmem %s1, 154
    %733 = vst [vmem:[%s732] sm:%s731] %v729
    %s734 = scalar_lea.vmem [#allocation2], 624
    %v735 = vld [vmem:[%s734] sm:%s267]
    %s737 = ssub.s32 4, 1
    %s738 = scalar_lea.vmem %s1, 156
    %739 = vst [vmem:[%s738] sm:%s737] %v735
    %s740 = scalar_lea.vmem [#allocation2], 632
    %v741 = vld [vmem:[%s740] sm:%s267]
    %s743 = ssub.s32 4, 1
    %s744 = scalar_lea.vmem %s1, 158
    %745 = vst [vmem:[%s744] sm:%s743] %v741
    %s746 = scalar_lea.vmem [#allocation2], 640
    %v747 = vld [vmem:[%s746] sm:%s267]
    %s749 = ssub.s32 4, 1
    %s750 = scalar_lea.vmem %s1, 160
    %751 = vst [vmem:[%s750] sm:%s749] %v747
    %s752 = scalar_lea.vmem [#allocation2], 648
    %v753 = vld [vmem:[%s752] sm:%s267]
    %s755 = ssub.s32 4, 1
    %s756 = scalar_lea.vmem %s1, 162
    %757 = vst [vmem:[%s756] sm:%s755] %v753
    %s758 = scalar_lea.vmem [#allocation2], 656
    %v759 = vld [vmem:[%s758] sm:%s267]
    %s761 = ssub.s32 4, 1
    %s762 = scalar_lea.vmem %s1, 164
    %763 = vst [vmem:[%s762] sm:%s761] %v759
    %s764 = scalar_lea.vmem [#allocation2], 664
    %v765 = vld [vmem:[%s764] sm:%s267]
    %s767 = ssub.s32 4, 1
    %s768 = scalar_lea.vmem %s1, 166
    %769 = vst [vmem:[%s768] sm:%s767] %v765
    %s770 = scalar_lea.vmem [#allocation2], 672
    %v771 = vld [vmem:[%s770] sm:%s267]
    %s773 = ssub.s32 4, 1
    %s774 = scalar_lea.vmem %s1, 168
    %775 = vst [vmem:[%s774] sm:%s773] %v771
    %s776 = scalar_lea.vmem [#allocation2], 680
    %v777 = vld [vmem:[%s776] sm:%s267]
    %s779 = ssub.s32 4, 1
    %s780 = scalar_lea.vmem %s1, 170
    %781 = vst [vmem:[%s780] sm:%s779] %v777
    %s782 = scalar_lea.vmem [#allocation2], 688
    %v783 = vld [vmem:[%s782] sm:%s267]
    %s785 = ssub.s32 4, 1
    %s786 = scalar_lea.vmem %s1, 172
    %787 = vst [vmem:[%s786] sm:%s785] %v783
    %s788 = scalar_lea.vmem [#allocation2], 696
    %v789 = vld [vmem:[%s788] sm:%s267]
    %s791 = ssub.s32 4, 1
    %s792 = scalar_lea.vmem %s1, 174
    %793 = vst [vmem:[%s792] sm:%s791] %v789
    %s794 = scalar_lea.vmem [#allocation2], 704
    %v795 = vld [vmem:[%s794] sm:%s267]
    %s797 = ssub.s32 4, 1
    %s798 = scalar_lea.vmem %s1, 176
    %799 = vst [vmem:[%s798] sm:%s797] %v795
    %s800 = scalar_lea.vmem [#allocation2], 712
    %v801 = vld [vmem:[%s800] sm:%s267]
    %s803 = ssub.s32 4, 1
    %s804 = scalar_lea.vmem %s1, 178
    %805 = vst [vmem:[%s804] sm:%s803] %v801
    %s806 = scalar_lea.vmem [#allocation2], 720
    %v807 = vld [vmem:[%s806] sm:%s267]
    %s809 = ssub.s32 4, 1
    %s810 = scalar_lea.vmem %s1, 180
    %811 = vst [vmem:[%s810] sm:%s809] %v807
    %s812 = scalar_lea.vmem [#allocation2], 728
    %v813 = vld [vmem:[%s812] sm:%s267]
    %s815 = ssub.s32 4, 1
    %s816 = scalar_lea.vmem %s1, 182
    %817 = vst [vmem:[%s816] sm:%s815] %v813
    %s818 = scalar_lea.vmem [#allocation2], 736
    %v819 = vld [vmem:[%s818] sm:%s267]
    %s821 = ssub.s32 4, 1
    %s822 = scalar_lea.vmem %s1, 184
    %823 = vst [vmem:[%s822] sm:%s821] %v819
    %s824 = scalar_lea.vmem [#allocation2], 744
    %v825 = vld [vmem:[%s824] sm:%s267]
    %s827 = ssub.s32 4, 1
    %s828 = scalar_lea.vmem %s1, 186
    %829 = vst [vmem:[%s828] sm:%s827] %v825
    %s830 = scalar_lea.vmem [#allocation2], 752
    %v831 = vld [vmem:[%s830] sm:%s267]
    %s833 = ssub.s32 4, 1
    %s834 = scalar_lea.vmem %s1, 188
    %835 = vst [vmem:[%s834] sm:%s833] %v831
    %s836 = scalar_lea.vmem [#allocation2], 760
    %v837 = vld [vmem:[%s836] sm:%s267]
    %s839 = ssub.s32 4, 1
    %s840 = scalar_lea.vmem %s1, 190
    %841 = vst [vmem:[%s840] sm:%s839] %v837
    %s842 = scalar_lea.vmem [#allocation2], 768
    %v843 = vld [vmem:[%s842] sm:%s267]
    %s845 = ssub.s32 4, 1
    %s846 = scalar_lea.vmem %s1, 192
    %847 = vst [vmem:[%s846] sm:%s845] %v843
    %s848 = scalar_lea.vmem [#allocation2], 776
    %v849 = vld [vmem:[%s848] sm:%s267]
    %s851 = ssub.s32 4, 1
    %s852 = scalar_lea.vmem %s1, 194
    %853 = vst [vmem:[%s852] sm:%s851] %v849
    %s854 = scalar_lea.vmem [#allocation2], 784
    %v855 = vld [vmem:[%s854] sm:%s267]
    %s857 = ssub.s32 4, 1
    %s858 = scalar_lea.vmem %s1, 196
    %859 = vst [vmem:[%s858] sm:%s857] %v855
    %s860 = scalar_lea.vmem [#allocation2], 792
    %v861 = vld [vmem:[%s860] sm:%s267]
    %s863 = ssub.s32 4, 1
    %s864 = scalar_lea.vmem %s1, 198
    %865 = vst [vmem:[%s864] sm:%s863] %v861
    %s866 = scalar_lea.vmem [#allocation2], 800
    %v867 = vld [vmem:[%s866] sm:%s267]
    %s869 = ssub.s32 4, 1
    %s870 = scalar_lea.vmem %s1, 200
    %871 = vst [vmem:[%s870] sm:%s869] %v867
    %s872 = scalar_lea.vmem [#allocation2], 808
    %v873 = vld [vmem:[%s872] sm:%s267]
    %s875 = ssub.s32 4, 1
    %s876 = scalar_lea.vmem %s1, 202
    %877 = vst [vmem:[%s876] sm:%s875] %v873
    %s878 = scalar_lea.vmem [#allocation2], 816
    %v879 = vld [vmem:[%s878] sm:%s267]
    %s881 = ssub.s32 4, 1
    %s882 = scalar_lea.vmem %s1, 204
    %883 = vst [vmem:[%s882] sm:%s881] %v879
    %s884 = scalar_lea.vmem [#allocation2], 824
    %v885 = vld [vmem:[%s884] sm:%s267]
    %s887 = ssub.s32 4, 1
    %s888 = scalar_lea.vmem %s1, 206
    %889 = vst [vmem:[%s888] sm:%s887] %v885
    %s890 = scalar_lea.vmem [#allocation2], 832
    %v891 = vld [vmem:[%s890] sm:%s267]
    %s893 = ssub.s32 4, 1
    %s894 = scalar_lea.vmem %s1, 208
    %895 = vst [vmem:[%s894] sm:%s893] %v891
    %s896 = scalar_lea.vmem [#allocation2], 840
    %v897 = vld [vmem:[%s896] sm:%s267]
    %s899 = ssub.s32 4, 1
    %s900 = scalar_lea.vmem %s1, 210
    %901 = vst [vmem:[%s900] sm:%s899] %v897
    %s902 = scalar_lea.vmem [#allocation2], 848
    %v903 = vld [vmem:[%s902] sm:%s267]
    %s905 = ssub.s32 4, 1
    %s906 = scalar_lea.vmem %s1, 212
    %907 = vst [vmem:[%s906] sm:%s905] %v903
    %s908 = scalar_lea.vmem [#allocation2], 856
    %v909 = vld [vmem:[%s908] sm:%s267]
    %s911 = ssub.s32 4, 1
    %s912 = scalar_lea.vmem %s1, 214
    %913 = vst [vmem:[%s912] sm:%s911] %v909
    %s914 = scalar_lea.vmem [#allocation2], 864
    %v915 = vld [vmem:[%s914] sm:%s267]
    %s917 = ssub.s32 4, 1
    %s918 = scalar_lea.vmem %s1, 216
    %919 = vst [vmem:[%s918] sm:%s917] %v915
    %s920 = scalar_lea.vmem [#allocation2], 872
    %v921 = vld [vmem:[%s920] sm:%s267]
    %s923 = ssub.s32 4, 1
    %s924 = scalar_lea.vmem %s1, 218
    %925 = vst [vmem:[%s924] sm:%s923] %v921
    %s926 = scalar_lea.vmem [#allocation2], 880
    %v927 = vld [vmem:[%s926] sm:%s267]
    %s929 = ssub.s32 4, 1
    %s930 = scalar_lea.vmem %s1, 220
    %931 = vst [vmem:[%s930] sm:%s929] %v927
    %s932 = scalar_lea.vmem [#allocation2], 888
    %v933 = vld [vmem:[%s932] sm:%s267]
    %s935 = ssub.s32 4, 1
    %s936 = scalar_lea.vmem %s1, 222
    %937 = vst [vmem:[%s936] sm:%s935] %v933
    %s938 = scalar_lea.vmem [#allocation2], 896
    %v939 = vld [vmem:[%s938] sm:%s267]
    %s941 = ssub.s32 4, 1
    %s942 = scalar_lea.vmem %s1, 224
    %943 = vst [vmem:[%s942] sm:%s941] %v939
    %s944 = scalar_lea.vmem [#allocation2], 904
    %v945 = vld [vmem:[%s944] sm:%s267]
    %s947 = ssub.s32 4, 1
    %s948 = scalar_lea.vmem %s1, 226
    %949 = vst [vmem:[%s948] sm:%s947] %v945
    %s950 = scalar_lea.vmem [#allocation2], 912
    %v951 = vld [vmem:[%s950] sm:%s267]
    %s953 = ssub.s32 4, 1
    %s954 = scalar_lea.vmem %s1, 228
    %955 = vst [vmem:[%s954] sm:%s953] %v951
    %s956 = scalar_lea.vmem [#allocation2], 920
    %v957 = vld [vmem:[%s956] sm:%s267]
    %s959 = ssub.s32 4, 1
    %s960 = scalar_lea.vmem %s1, 230
    %961 = vst [vmem:[%s960] sm:%s959] %v957
    %s962 = scalar_lea.vmem [#allocation2], 928
    %v963 = vld [vmem:[%s962] sm:%s267]
    %s965 = ssub.s32 4, 1
    %s966 = scalar_lea.vmem %s1, 232
    %967 = vst [vmem:[%s966] sm:%s965] %v963
    %s968 = scalar_lea.vmem [#allocation2], 936
    %v969 = vld [vmem:[%s968] sm:%s267]
    %s971 = ssub.s32 4, 1
    %s972 = scalar_lea.vmem %s1, 234
    %973 = vst [vmem:[%s972] sm:%s971] %v969
    %s974 = scalar_lea.vmem [#allocation2], 944
    %v975 = vld [vmem:[%s974] sm:%s267]
    %s977 = ssub.s32 4, 1
    %s978 = scalar_lea.vmem %s1, 236
    %979 = vst [vmem:[%s978] sm:%s977] %v975
    %s980 = scalar_lea.vmem [#allocation2], 952
    %v981 = vld [vmem:[%s980] sm:%s267]
    %s983 = ssub.s32 4, 1
    %s984 = scalar_lea.vmem %s1, 238
    %985 = vst [vmem:[%s984] sm:%s983] %v981
    %s986 = scalar_lea.vmem [#allocation2], 960
    %v987 = vld [vmem:[%s986] sm:%s267]
    %s989 = ssub.s32 4, 1
    %s990 = scalar_lea.vmem %s1, 240
    %991 = vst [vmem:[%s990] sm:%s989] %v987
    %s992 = scalar_lea.vmem [#allocation2], 968
    %v993 = vld [vmem:[%s992] sm:%s267]
    %s995 = ssub.s32 4, 1
    %s996 = scalar_lea.vmem %s1, 242
    %997 = vst [vmem:[%s996] sm:%s995] %v993
    %s998 = scalar_lea.vmem [#allocation2], 976
    %v999 = vld [vmem:[%s998] sm:%s267]
    %s1001 = ssub.s32 4, 1
    %s1002 = scalar_lea.vmem %s1, 244
    %1003 = vst [vmem:[%s1002] sm:%s1001] %v999
    %s1004 = scalar_lea.vmem [#allocation2], 984
    %v1005 = vld [vmem:[%s1004] sm:%s267]
    %s1007 = ssub.s32 4, 1
    %s1008 = scalar_lea.vmem %s1, 246
    %1009 = vst [vmem:[%s1008] sm:%s1007] %v1005
    %s1010 = scalar_lea.vmem [#allocation2], 992
    %v1011 = vld [vmem:[%s1010] sm:%s267]
    %s1013 = ssub.s32 4, 1
    %s1014 = scalar_lea.vmem %s1, 248
    %1015 = vst [vmem:[%s1014] sm:%s1013] %v1011
    %s1016 = scalar_lea.vmem [#allocation2], 1000
    %v1017 = vld [vmem:[%s1016] sm:%s267]
    %s1019 = ssub.s32 4, 1
    %s1020 = scalar_lea.vmem %s1, 250
    %1021 = vst [vmem:[%s1020] sm:%s1019] %v1017
    %s1022 = scalar_lea.vmem [#allocation2], 1008
    %v1023 = vld [vmem:[%s1022] sm:%s267]
    %s1025 = ssub.s32 4, 1
    %s1026 = scalar_lea.vmem %s1, 252
    %1027 = vst [vmem:[%s1026] sm:%s1025] %v1023
    %s1028 = scalar_lea.vmem [#allocation2], 1016
    %v1029 = vld [vmem:[%s1028] sm:%s267]
    %s1031 = ssub.s32 4, 1
    %s1032 = scalar_lea.vmem %s1, 254
    %1033 = vst [vmem:[%s1032] sm:%s1031] %v1029
    %1034 = vsyncpa [#allocation1], 1

// kernel: mask_pooling_forward.3
$region0: #{mask_pooling_forward.3}
  #allocation0 [shape = 'u32[]', space=smem, size = 0x4, offset = 0x4, fixed_abs, tag = 'smem constant byte address 0x4 - core index']
  #allocation1 [shape = 'u32[72,128]{1,0:T(1,128)}', space=vmem, size = 0x9000, scoped, tag = 'internal scratch']
  %s0 = inlined_call_operand.vmem [shape: s32[2,1,4], index: 0, kind: input, shape index: {}]
  %s1 = inlined_call_operand.vmem [shape: s32[2,16,1], index: 1, kind: input, shape index: {}]
  %s2 = inlined_call_operand.vmem [shape: f32[2,16,4], index: 2, kind: output, shape index: {}]
  %s3 = sld [smem:[#allocation0]]
  $region18: #{mask_pooling_forward.3} parent=0
    _
  %s5 = ssub.s32 1, %s3
  %s6 = scalar_select 0, %s5, %s3
  // Predicated region
  $region2: #{mask_pooling_forward.3} parent=0 // pred_check
    _
  $region3: #{mask_pooling_forward.3} parent=0 // pred_check_branch
    %8 = sbr.rel (0) target = $region5
  $region4: #{mask_pooling_forward.3} parent=0 // pred_region
    _
  $region5: #{mask_pooling_forward.3} parent=0 // pred_fallthru
    _
  // Predicated region
  $region6: #{mask_pooling_forward.3} parent=0 // pred_check
    _
  $region7: #{mask_pooling_forward.3} parent=0 // pred_check_branch
    %10 = sbr.rel (0) target = $region9
  $region8: #{mask_pooling_forward.3} parent=0 // pred_region
    _
  $region9: #{mask_pooling_forward.3} parent=0 // pred_fallthru
    _
  %v11 = vld [vmem:[%s0] sm:$0x1]
  %v12 = vld [vmem:[%s0 + $0x1] sm:$0x1]
  %v13 = vld [vmem:[%s1] sm:$0xff]
  %v14 = vld [vmem:[%s1 + $0x8] sm:$0xff]
  %v15 = vld [vmem:[%s1 + $0x10] sm:$0xff]
  %v16 = vld [vmem:[%s1 + $0x18] sm:$0xff]
  %17 = vset.pattern.permute.xlu0 0
  %18 = vperm.xlu0 %17, %v13
  %v19 = vpop.permute.xlu0 %18
  %20 = vset.pattern.permute.xlu0 0
  %21 = vperm.xlu0 %20, %v14
  %v22 = vpop.permute.xlu0 %21
  %23 = vset.pattern.permute.xlu0 0
  %24 = vperm.xlu0 %23, %v15
  %v25 = vpop.permute.xlu0 %24
  %26 = vset.pattern.permute.xlu0 0
  %27 = vperm.xlu0 %26, %v16
  %v28 = vpop.permute.xlu0 %27
  %v29 = vperm.slane %v11, 0
  %v30 = vperm.slane %v12, 0
  %vm31 = vcmp.eq.s32.totalorder %v19, %v29
  %vm32 = vcmp.eq.s32.totalorder %v22, %v29
  %vm33 = vcmp.eq.s32.totalorder %v25, %v30
  %vm34 = vcmp.eq.s32.totalorder %v28, %v30
  %v35 = vsel %vm31, 1, 0
  %v36 = vsel %vm32, 1, 0
  %v37 = vsel %vm33, 1, 0
  %v38 = vsel %vm34, 1, 0
  %v39 = vcvt.s32.f32 %v35
  %v40 = vcvt.s32.f32 %v36
  %v41 = vcvt.s32.f32 %v37
  %v42 = vcvt.s32.f32 %v38
  %vm43 = vcmask 31744
  %v44 = vsel %vm43, %v39, 0.0
  %45 = vadd.xlane.f32.xlu0 %v44
  %v46 = vpop.xlane.xlu0 %45
  %v47 = vsel %vm43, %v40, 0.0
  %48 = vadd.xlane.f32.xlu0 %v47
  %v49 = vpop.xlane.xlu0 %48
  %v50 = vsel %vm43, %v41, 0.0
  %51 = vadd.xlane.f32.xlu0 %v50
  %v52 = vpop.xlane.xlu0 %51
  %v53 = vsel %vm43, %v42, 0.0
  %54 = vadd.xlane.f32.xlu0 %v53
  %v55 = vpop.xlane.xlu0 %54
  %v56 = vmax.f32 %v46, 1.0
  %v57 = vmax.f32 %v49, 1.0
  %v58 = vmax.f32 %v52, 1.0
  %v59 = vmax.f32 %v55, 1.0
  %v60 = vrcp.pop %v56
  %v61 = vmul.f32 %v56, %v60
  %v62 = vsub.f32 1.0, %v61
  %v63 = vmul.f32 %v60, %v62
  %v64 = vadd.f32 %v60, %v63
  %vm65 = vweird.f32 %v56
  %vm66 = vweird.f32 %v60
  %vm67 = vmor %vm65, %vm66
  %v68 = vsel %vm67, %v60, %v64
  %v69 = vand.u32 2147483647, %v56
  %vm70 = vcmp.eq.f32.partialorder %v69, 8.507059e+37
  %v71 = vand.u32 %v56, 2147483648
  %v72 = vor.u32 1.1754944e-38, %v71
  %v73 = vsel %vm70, %v72, %v68
  %v74 = vmul.f32 %v39, %v73
  %v75 = vrcp.pop %v57
  %v76 = vmul.f32 %v57, %v75
  %v77 = vsub.f32 1.0, %v76
  %v78 = vmul.f32 %v75, %v77
  %v79 = vadd.f32 %v75, %v78
  %vm80 = vweird.f32 %v57
  %vm81 = vweird.f32 %v75
  %vm82 = vmor %vm80, %vm81
  %v83 = vsel %vm82, %v75, %v79
  %v84 = vand.u32 2147483647, %v57
  %vm85 = vcmp.eq.f32.partialorder %v84, 8.507059e+37
  %v86 = vand.u32 %v57, 2147483648
  %v87 = vor.u32 1.1754944e-38, %v86
  %v88 = vsel %vm85, %v87, %v83
  %v89 = vmul.f32 %v40, %v88
  %v90 = vrcp.pop %v58
  %v91 = vmul.f32 %v58, %v90
  %v92 = vsub.f32 1.0, %v91
  %v93 = vmul.f32 %v90, %v92
  %v94 = vadd.f32 %v90, %v93
  %vm95 = vweird.f32 %v58
  %vm96 = vweird.f32 %v90
  %vm97 = vmor %vm95, %vm96
  %v98 = vsel %vm97, %v90, %v94
  %v99 = vand.u32 2147483647, %v58
  %vm100 = vcmp.eq.f32.partialorder %v99, 8.507059e+37
  %v101 = vand.u32 %v58, 2147483648
  %v102 = vor.u32 1.1754944e-38, %v101
  %v103 = vsel %vm100, %v102, %v98
  %v104 = vmul.f32 %v41, %v103
  %v105 = vrcp.pop %v59
  %v106 = vmul.f32 %v59, %v105
  %v107 = vsub.f32 1.0, %v106
  %v108 = vmul.f32 %v105, %v107
  %v109 = vadd.f32 %v105, %v108
  %vm110 = vweird.f32 %v59
  %vm111 = vweird.f32 %v105
  %vm112 = vmor %vm110, %vm111
  %v113 = vsel %vm112, %v105, %v109
  %v114 = vand.u32 2147483647, %v59
  %vm115 = vcmp.eq.f32.partialorder %v114, 8.507059e+37
  %v116 = vand.u32 %v59, 2147483648
  %v117 = vor.u32 1.1754944e-38, %v116
  %v118 = vsel %vm115, %v117, %v113
  %v119 = vmul.f32 %v42, %v118
  %120 = vst.msk [vmem:[%s2] sm:$0xff] %vm43, %v74
  %121 = vst.msk [vmem:[%s2 + $0x8] sm:$0xff] %vm43, %v89
  %122 = vst.msk [vmem:[%s2 + $0x10] sm:$0xff] %vm43, %v104
  %123 = vst.msk [vmem:[%s2 + $0x18] sm:$0xff] %vm43, %v119
  // Predicated region
  $region10: #{mask_pooling_forward.3} parent=0 // pred_check
    _
  $region11: #{mask_pooling_forward.3} parent=0 // pred_check_branch
    %125 = sbr.rel (0) target = $region13
  $region12: #{mask_pooling_forward.3} parent=0 // pred_region
    _
  $region13: #{mask_pooling_forward.3} parent=0 // pred_fallthru
    _
  // Predicated region
  $region14: #{mask_pooling_forward.3} parent=0 // pred_check
    _
  $region15: #{mask_pooling_forward.3} parent=0 // pred_check_branch
    %127 = sbr.rel (0) target = $region17
  $region16: #{mask_pooling_forward.3} parent=0 // pred_region
    _
  $region17: #{mask_pooling_forward.3} parent=0 // pred_fallthru
    _

// kernel: mask_pooling_forward.2
$region0: #{mask_pooling_forward.2}
  #allocation0 [shape = 'u32[]', space=smem, size = 0x4, offset = 0x4, fixed_abs, tag = 'smem constant byte address 0x4 - core index']
  #allocation1 [shape = 'u32[72,128]{1,0:T(1,128)}', space=vmem, size = 0x9000, scoped, tag = 'internal scratch']
  %s0 = inlined_call_operand.vmem [shape: s32[2,4,1024], index: 0, kind: input, shape index: {}]
  %s1 = inlined_call_operand.vmem [shape: s32[2,4,1], index: 1, kind: output, shape index: {0}]
  %s2 = inlined_call_operand.vmem [shape: f32[2,1,23], index: 2, kind: output, shape index: {1}]
  %3 = xla_tuple %s1, %s2
  %s4 = sld [smem:[#allocation0]]
  $region22: #{mask_pooling_forward.2} parent=0
    _
  %s6 = ssub.s32 1, %s4
  %s7 = scalar_select 0, %s6, %s4
  // Predicated region
  $region2: #{mask_pooling_forward.2} parent=0 // pred_check
    _
  $region3: #{mask_pooling_forward.2} parent=0 // pred_check_branch
    %9 = sbr.rel (0) target = $region5
  $region4: #{mask_pooling_forward.2} parent=0 // pred_region
    _
  $region5: #{mask_pooling_forward.2} parent=0 // pred_fallthru
    _
  %v10 = vld [vmem:[%s0] sm:$0xff]
  %v11 = vld [vmem:[%s0 + $0x8] sm:$0xff]
  %v12 = vld [vmem:[%s0 + $0x10] sm:$0xff]
  %v13 = vld [vmem:[%s0 + $0x18] sm:$0xff]
  %v14 = vld [vmem:[%s0 + $0x20] sm:$0xff]
  %v15 = vld [vmem:[%s0 + $0x28] sm:$0xff]
  %v16 = vld [vmem:[%s0 + $0x30] sm:$0xff]
  %v17 = vld [vmem:[%s0 + $0x38] sm:$0xff]
  %vm18 = vcmp.eq.s32.totalorder %v10, 0
  %vm19 = vcmp.eq.s32.totalorder %v11, 0
  %vm20 = vcmp.eq.s32.totalorder %v12, 0
  %vm21 = vcmp.eq.s32.totalorder %v13, 0
  %vm22 = vcmp.eq.s32.totalorder %v14, 0
  %vm23 = vcmp.eq.s32.totalorder %v15, 0
  %vm24 = vcmp.eq.s32.totalorder %v16, 0
  %vm25 = vcmp.eq.s32.totalorder %v17, 0
  %v26 = vsel %vm18, 1, 0
  %v27 = vsel %vm19, 1, 0
  %v28 = vsel %vm20, 1, 0
  %v29 = vsel %vm21, 1, 0
  %v30 = vsel %vm22, 1, 0
  %v31 = vsel %vm23, 1, 0
  %v32 = vsel %vm24, 1, 0
  %v33 = vsel %vm25, 1, 0
  %v34 = vcvt.s32.f32 %v26
  %v35 = vcvt.s32.f32 %v27
  %v36 = vcvt.s32.f32 %v28
  %v37 = vcvt.s32.f32 %v29
  %v38 = vcvt.s32.f32 %v30
  %v39 = vcvt.s32.f32 %v31
  %v40 = vcvt.s32.f32 %v32
  %v41 = vcvt.s32.f32 %v33
  %50 = vst [vmem:[#allocation1] ss:$2 sm:$0xff] %v34
  %s51 = scalar_lea.vmem [#allocation1], 16
  %52 = vst [vmem:[%s51] ss:$2 sm:$0xff] %v35
  %s53 = scalar_lea.vmem [#allocation1], 32
  %54 = vst [vmem:[%s53] ss:$2 sm:$0xff] %v36
  %s55 = scalar_lea.vmem [#allocation1], 48
  %56 = vst [vmem:[%s55] ss:$2 sm:$0xff] %v37
  %v57 = vld.sshfl [vmem:[#allocation1] sm:$0xff pattern:$0x75316420]
  %v58 = vld.sshfl [vmem:[#allocation1 + $0x8] sm:$0xff pattern:$0x75316420]
  %v59 = vld.sshfl [vmem:[#allocation1 + $0x10] sm:$0xff pattern:$0x75316420]
  %v60 = vld.sshfl [vmem:[#allocation1 + $0x18] sm:$0xff pattern:$0x75316420]
  %v61 = vld.sshfl [vmem:[#allocation1 + $0x20] sm:$0xff pattern:$0x75316420]
  %v62 = vld.sshfl [vmem:[#allocation1 + $0x28] sm:$0xff pattern:$0x75316420]
  %v63 = vld.sshfl [vmem:[#allocation1 + $0x30] sm:$0xff pattern:$0x75316420]
  %v64 = vld.sshfl [vmem:[#allocation1 + $0x38] sm:$0xff pattern:$0x75316420]
  %65 = vst [vmem:[#allocation1] ss:$2 sm:$0xff] %v38
  %66 = vst [vmem:[%s51] ss:$2 sm:$0xff] %v39
  %67 = vst [vmem:[%s53] ss:$2 sm:$0xff] %v40
  %68 = vst [vmem:[%s55] ss:$2 sm:$0xff] %v41
  %v69 = vld.sshfl [vmem:[#allocation1] sm:$0xff pattern:$0x75316420]
  %v70 = vld.sshfl [vmem:[#allocation1 + $0x8] sm:$0xff pattern:$0x75316420]
  %v71 = vld.sshfl [vmem:[#allocation1 + $0x10] sm:$0xff pattern:$0x75316420]
  %v72 = vld.sshfl [vmem:[#allocation1 + $0x18] sm:$0xff pattern:$0x75316420]
  %v73 = vld.sshfl [vmem:[#allocation1 + $0x20] sm:$0xff pattern:$0x75316420]
  %v74 = vld.sshfl [vmem:[#allocation1 + $0x28] sm:$0xff pattern:$0x75316420]
  %v75 = vld.sshfl [vmem:[#allocation1 + $0x30] sm:$0xff pattern:$0x75316420]
  %v76 = vld.sshfl [vmem:[#allocation1 + $0x38] sm:$0xff pattern:$0x75316420]
  %vm93 = vcmask 1043456
  %v94 = vsel %vm93, %v57, 0.0
  %v95 = vsel %vm93, %v58, 0.0
  %v96 = vadd.f32 %v94, %v95
  %v97 = vsel %vm93, %v59, 0.0
  %v98 = vadd.f32 %v96, %v97
  %v99 = vsel %vm93, %v60, 0.0
  %v100 = vadd.f32 %v98, %v99
  %v101 = vsel %vm93, %v61, 0.0
  %v102 = vadd.f32 %v100, %v101
  %v103 = vsel %vm93, %v62, 0.0
  %v104 = vadd.f32 %v102, %v103
  %v105 = vsel %vm93, %v63, 0.0
  %v106 = vadd.f32 %v104, %v105
  %v107 = vsel %vm93, %v64, 0.0
  %v108 = vadd.f32 %v106, %v107
  %109 = vadd.xlane.f32.xlu0 %v108
  %v110 = vpop.xlane.xlu0 %109
  %v111 = vsel %vm93, %v69, 0.0
  %v112 = vsel %vm93, %v70, 0.0
  %v113 = vadd.f32 %v111, %v112
  %v114 = vsel %vm93, %v71, 0.0
  %v115 = vadd.f32 %v113, %v114
  %v116 = vsel %vm93, %v72, 0.0
  %v117 = vadd.f32 %v115, %v116
  %v118 = vsel %vm93, %v73, 0.0
  %v119 = vadd.f32 %v117, %v118
  %v120 = vsel %vm93, %v74, 0.0
  %v121 = vadd.f32 %v119, %v120
  %v122 = vsel %vm93, %v75, 0.0
  %v123 = vadd.f32 %v121, %v122
  %v124 = vsel %vm93, %v76, 0.0
  %v125 = vadd.f32 %v123, %v124
  %126 = vadd.xlane.f32.xlu0 %v125
  %v127 = vpop.xlane.xlu0 %126
  %vm128 = vcmp.gt.f32.partialorder %v110, -1.0
  %vm129 = vcmp.gt.f32.partialorder %v127, -1.0
  %v130 = vsel %vm128, %v110, -1.0
  %v131 = vsel %vm129, %v127, -1.0
  %vm132 = vcmp.eq.s32.totalorder %v10, 1
  %vm133 = vcmp.eq.s32.totalorder %v11, 1
  %vm134 = vcmp.eq.s32.totalorder %v12, 1
  %vm135 = vcmp.eq.s32.totalorder %v13, 1
  %vm136 = vcmp.eq.s32.totalorder %v14, 1
  %vm137 = vcmp.eq.s32.totalorder %v15, 1
  %vm138 = vcmp.eq.s32.totalorder %v16, 1
  %vm139 = vcmp.eq.s32.totalorder %v17, 1
  %v140 = vsel %vm132, 1, 0
  %v141 = vsel %vm133, 1, 0
  %v142 = vsel %vm134, 1, 0
  %v143 = vsel %vm135, 1, 0
  %v144 = vsel %vm136, 1, 0
  %v145 = vsel %vm137, 1, 0
  %v146 = vsel %vm138, 1, 0
  %v147 = vsel %vm139, 1, 0
  %v148 = vcvt.s32.f32 %v140
  %v149 = vcvt.s32.f32 %v141
  %v150 = vcvt.s32.f32 %v142
  %v151 = vcvt.s32.f32 %v143
  %v152 = vcvt.s32.f32 %v144
  %v153 = vcvt.s32.f32 %v145
  %v154 = vcvt.s32.f32 %v146
  %v155 = vcvt.s32.f32 %v147
  %164 = vst [vmem:[#allocation1] ss:$2 sm:$0xff] %v148
  %s165 = scalar_lea.vmem [#allocation1], 16
  %166 = vst [vmem:[%s165] ss:$2 sm:$0xff] %v149
  %s167 = scalar_lea.vmem [#allocation1], 32
  %168 = vst [vmem:[%s167] ss:$2 sm:$0xff] %v150
  %s169 = scalar_lea.vmem [#allocation1], 48
  %170 = vst [vmem:[%s169] ss:$2 sm:$0xff] %v151
  %v171 = vld.sshfl [vmem:[#allocation1] sm:$0xff pattern:$0x75316420]
  %v172 = vld.sshfl [vmem:[#allocation1 + $0x8] sm:$0xff pattern:$0x75316420]
  %v173 = vld.sshfl [vmem:[#allocation1 + $0x10] sm:$0xff pattern:$0x75316420]
  %v174 = vld.sshfl [vmem:[#allocation1 + $0x18] sm:$0xff pattern:$0x75316420]
  %v175 = vld.sshfl [vmem:[#allocation1 + $0x20] sm:$0xff pattern:$0x75316420]
  %v176 = vld.sshfl [vmem:[#allocation1 + $0x28] sm:$0xff pattern:$0x75316420]
  %v177 = vld.sshfl [vmem:[#allocation1 + $0x30] sm:$0xff pattern:$0x75316420]
  %v178 = vld.sshfl [vmem:[#allocation1 + $0x38] sm:$0xff pattern:$0x75316420]
  %179 = vst [vmem:[#allocation1] ss:$2 sm:$0xff] %v152
  %180 = vst [vmem:[%s165] ss:$2 sm:$0xff] %v153
  %181 = vst [vmem:[%s167] ss:$2 sm:$0xff] %v154
  %182 = vst [vmem:[%s169] ss:$2 sm:$0xff] %v155
  %v183 = vld.sshfl [vmem:[#allocation1] sm:$0xff pattern:$0x75316420]
  %v184 = vld.sshfl [vmem:[#allocation1 + $0x8] sm:$0xff pattern:$0x75316420]
  %v185 = vld.sshfl [vmem:[#allocation1 + $0x10] sm:$0xff pattern:$0x75316420]
  %v186 = vld.sshfl [vmem:[#allocation1 + $0x18] sm:$0xff pattern:$0x75316420]
  %v187 = vld.sshfl [vmem:[#allocation1 + $0x20] sm:$0xff pattern:$0x75316420]
  %v188 = vld.sshfl [vmem:[#allocation1 + $0x28] sm:$0xff pattern:$0x75316420]
  %v189 = vld.sshfl [vmem:[#allocation1 + $0x30] sm:$0xff pattern:$0x75316420]
  %v190 = vld.sshfl [vmem:[#allocation1 + $0x38] sm:$0xff pattern:$0x75316420]
  %v207 = vsel %vm93, %v171, 0.0
  %v208 = vsel %vm93, %v172, 0.0
  %v209 = vadd.f32 %v207, %v208
  %v210 = vsel %vm93, %v173, 0.0
  %v211 = vadd.f32 %v209, %v210
  %v212 = vsel %vm93, %v174, 0.0
  %v213 = vadd.f32 %v211, %v212
  %v214 = vsel %vm93, %v175, 0.0
  %v215 = vadd.f32 %v213, %v214
  %v216 = vsel %vm93, %v176, 0.0
  %v217 = vadd.f32 %v215, %v216
  %v218 = vsel %vm93, %v177, 0.0
  %v219 = vadd.f32 %v217, %v218
  %v220 = vsel %vm93, %v178, 0.0
  %v221 = vadd.f32 %v219, %v220
  %222 = vadd.xlane.f32.xlu0 %v221
  %v223 = vpop.xlane.xlu0 %222
  %v224 = vsel %vm93, %v183, 0.0
  %v225 = vsel %vm93, %v184, 0.0
  %v226 = vadd.f32 %v224, %v225
  %v227 = vsel %vm93, %v185, 0.0
  %v228 = vadd.f32 %v226, %v227
  %v229 = vsel %vm93, %v186, 0.0
  %v230 = vadd.f32 %v228, %v229
  %v231 = vsel %vm93, %v187, 0.0
  %v232 = vadd.f32 %v230, %v231
  %v233 = vsel %vm93, %v188, 0.0
  %v234 = vadd.f32 %v232, %v233
  %v235 = vsel %vm93, %v189, 0.0
  %v236 = vadd.f32 %v234, %v235
  %v237 = vsel %vm93, %v190, 0.0
  %v238 = vadd.f32 %v236, %v237
  %239 = vadd.xlane.f32.xlu0 %v238
  %v240 = vpop.xlane.xlu0 %239
  %vm241 = vcmp.gt.f32.partialorder %v223, %v130
  %vm242 = vcmp.gt.f32.partialorder %v240, %v131
  %v243 = vsel %vm241, %v223, %v130
  %v244 = vsel %vm242, %v240, %v131
  %v245 = vsel %vm241, 1, 0
  %v246 = vsel %vm242, 1, 0
  %vm247 = vcmp.eq.s32.totalorder %v10, 2
  %vm248 = vcmp.eq.s32.totalorder %v11, 2
  %vm249 = vcmp.eq.s32.totalorder %v12, 2
  %vm250 = vcmp.eq.s32.totalorder %v13, 2
  %vm251 = vcmp.eq.s32.totalorder %v14, 2
  %vm252 = vcmp.eq.s32.totalorder %v15, 2
  %vm253 = vcmp.eq.s32.totalorder %v16, 2
  %vm254 = vcmp.eq.s32.totalorder %v17, 2
  %v255 = vsel %vm247, 1, 0
  %v256 = vsel %vm248, 1, 0
  %v257 = vsel %vm249, 1, 0
  %v258 = vsel %vm250, 1, 0
  %v259 = vsel %vm251, 1, 0
  %v260 = vsel %vm252, 1, 0
  %v261 = vsel %vm253, 1, 0
  %v262 = vsel %vm254, 1, 0
  %v263 = vcvt.s32.f32 %v255
  %v264 = vcvt.s32.f32 %v256
  %v265 = vcvt.s32.f32 %v257
  %v266 = vcvt.s32.f32 %v258
  %v267 = vcvt.s32.f32 %v259
  %v268 = vcvt.s32.f32 %v260
  %v269 = vcvt.s32.f32 %v261
  %v270 = vcvt.s32.f32 %v262
  %279 = vst [vmem:[#allocation1] ss:$2 sm:$0xff] %v263
  %s280 = scalar_lea.vmem [#allocation1], 16
  %281 = vst [vmem:[%s280] ss:$2 sm:$0xff] %v264
  %s282 = scalar_lea.vmem [#allocation1], 32
  %283 = vst [vmem:[%s282] ss:$2 sm:$0xff] %v265
  %s284 = scalar_lea.vmem [#allocation1], 48
  %285 = vst [vmem:[%s284] ss:$2 sm:$0xff] %v266
  %v286 = vld.sshfl [vmem:[#allocation1] sm:$0xff pattern:$0x75316420]
  %v287 = vld.sshfl [vmem:[#allocation1 + $0x8] sm:$0xff pattern:$0x75316420]
  %v288 = vld.sshfl [vmem:[#allocation1 + $0x10] sm:$0xff pattern:$0x75316420]
  %v289 = vld.sshfl [vmem:[#allocation1 + $0x18] sm:$0xff pattern:$0x75316420]
  %v290 = vld.sshfl [vmem:[#allocation1 + $0x20] sm:$0xff pattern:$0x75316420]
  %v291 = vld.sshfl [vmem:[#allocation1 + $0x28] sm:$0xff pattern:$0x75316420]
  %v292 = vld.sshfl [vmem:[#allocation1 + $0x30] sm:$0xff pattern:$0x75316420]
  %v293 = vld.sshfl [vmem:[#allocation1 + $0x38] sm:$0xff pattern:$0x75316420]
  %294 = vst [vmem:[#allocation1] ss:$2 sm:$0xff] %v267
  %295 = vst [vmem:[%s280] ss:$2 sm:$0xff] %v268
  %296 = vst [vmem:[%s282] ss:$2 sm:$0xff] %v269
  %297 = vst [vmem:[%s284] ss:$2 sm:$0xff] %v270
  %v298 = vld.sshfl [vmem:[#allocation1] sm:$0xff pattern:$0x75316420]
  %v299 = vld.sshfl [vmem:[#allocation1 + $0x8] sm:$0xff pattern:$0x75316420]
  %v300 = vld.sshfl [vmem:[#allocation1 + $0x10] sm:$0xff pattern:$0x75316420]
  %v301 = vld.sshfl [vmem:[#allocation1 + $0x18] sm:$0xff pattern:$0x75316420]
  %v302 = vld.sshfl [vmem:[#allocation1 + $0x20] sm:$0xff pattern:$0x75316420]
  %v303 = vld.sshfl [vmem:[#allocation1 + $0x28] sm:$0xff pattern:$0x75316420]
  %v304 = vld.sshfl [vmem:[#allocation1 + $0x30] sm:$0xff pattern:$0x75316420]
  %v305 = vld.sshfl [vmem:[#allocation1 + $0x38] sm:$0xff pattern:$0x75316420]
  %v322 = vsel %vm93, %v286, 0.0
  %v323 = vsel %vm93, %v287, 0.0
  %v324 = vadd.f32 %v322, %v323
  %v325 = vsel %vm93, %v288, 0.0
  %v326 = vadd.f32 %v324, %v325
  %v327 = vsel %vm93, %v289, 0.0
  %v328 = vadd.f32 %v326, %v327
  %v329 = vsel %vm93, %v290, 0.0
  %v330 = vadd.f32 %v328, %v329
  %v331 = vsel %vm93, %v291, 0.0
  %v332 = vadd.f32 %v330, %v331
  %v333 = vsel %vm93, %v292, 0.0
  %v334 = vadd.f32 %v332, %v333
  %v335 = vsel %vm93, %v293, 0.0
  %v336 = vadd.f32 %v334, %v335
  %337 = vadd.xlane.f32.xlu0 %v336
  %v338 = vpop.xlane.xlu0 %337
  %v339 = vsel %vm93, %v298, 0.0
  %v340 = vsel %vm93, %v299, 0.0
  %v341 = vadd.f32 %v339, %v340
  %v342 = vsel %vm93, %v300, 0.0
  %v343 = vadd.f32 %v341, %v342
  %v344 = vsel %vm93, %v301, 0.0
  %v345 = vadd.f32 %v343, %v344
  %v346 = vsel %vm93, %v302, 0.0
  %v347 = vadd.f32 %v345, %v346
  %v348 = vsel %vm93, %v303, 0.0
  %v349 = vadd.f32 %v347, %v348
  %v350 = vsel %vm93, %v304, 0.0
  %v351 = vadd.f32 %v349, %v350
  %v352 = vsel %vm93, %v305, 0.0
  %v353 = vadd.f32 %v351, %v352
  %354 = vadd.xlane.f32.xlu0 %v353
  %v355 = vpop.xlane.xlu0 %354
  %vm356 = vcmp.gt.f32.partialorder %v338, %v243
  %vm357 = vcmp.gt.f32.partialorder %v355, %v244
  %v358 = vsel %vm356, %v338, %v243
  %v359 = vsel %vm357, %v355, %v244
  %v360 = vsel %vm356, 2, %v245
  %v361 = vsel %vm357, 2, %v246
  %vm362 = vcmp.eq.s32.totalorder %v10, 3
  %vm363 = vcmp.eq.s32.totalorder %v11, 3
  %vm364 = vcmp.eq.s32.totalorder %v12, 3
  %vm365 = vcmp.eq.s32.totalorder %v13, 3
  %vm366 = vcmp.eq.s32.totalorder %v14, 3
  %vm367 = vcmp.eq.s32.totalorder %v15, 3
  %vm368 = vcmp.eq.s32.totalorder %v16, 3
  %vm369 = vcmp.eq.s32.totalorder %v17, 3
  %v370 = vsel %vm362, 1, 0
  %v371 = vsel %vm363, 1, 0
  %v372 = vsel %vm364, 1, 0
  %v373 = vsel %vm365, 1, 0
  %v374 = vsel %vm366, 1, 0
  %v375 = vsel %vm367, 1, 0
  %v376 = vsel %vm368, 1, 0
  %v377 = vsel %vm369, 1, 0
  %v378 = vcvt.s32.f32 %v370
  %v379 = vcvt.s32.f32 %v371
  %v380 = vcvt.s32.f32 %v372
  %v381 = vcvt.s32.f32 %v373
  %v382 = vcvt.s32.f32 %v374
  %v383 = vcvt.s32.f32 %v375
  %v384 = vcvt.s32.f32 %v376
  %v385 = vcvt.s32.f32 %v377
  %394 = vst [vmem:[#allocation1] ss:$2 sm:$0xff] %v378
  %s395 = scalar_lea.vmem [#allocation1], 16
  %396 = vst [vmem:[%s395] ss:$2 sm:$0xff] %v379
  %s397 = scalar_lea.vmem [#allocation1], 32
  %398 = vst [vmem:[%s397] ss:$2 sm:$0xff] %v380
  %s399 = scalar_lea.vmem [#allocation1], 48
  %400 = vst [vmem:[%s399] ss:$2 sm:$0xff] %v381
  %v401 = vld.sshfl [vmem:[#allocation1] sm:$0xff pattern:$0x75316420]
  %v402 = vld.sshfl [vmem:[#allocation1 + $0x8] sm:$0xff pattern:$0x75316420]
  %v403 = vld.sshfl [vmem:[#allocation1 + $0x10] sm:$0xff pattern:$0x75316420]
  %v404 = vld.sshfl [vmem:[#allocation1 + $0x18] sm:$0xff pattern:$0x75316420]
  %v405 = vld.sshfl [vmem:[#allocation1 + $0x20] sm:$0xff pattern:$0x75316420]
  %v406 = vld.sshfl [vmem:[#allocation1 + $0x28] sm:$0xff pattern:$0x75316420]
  %v407 = vld.sshfl [vmem:[#allocation1 + $0x30] sm:$0xff pattern:$0x75316420]
  %v408 = vld.sshfl [vmem:[#allocation1 + $0x38] sm:$0xff pattern:$0x75316420]
  %409 = vst [vmem:[#allocation1] ss:$2 sm:$0xff] %v382
  %410 = vst [vmem:[%s395] ss:$2 sm:$0xff] %v383
  %411 = vst [vmem:[%s397] ss:$2 sm:$0xff] %v384
  %412 = vst [vmem:[%s399] ss:$2 sm:$0xff] %v385
  %v413 = vld.sshfl [vmem:[#allocation1] sm:$0xff pattern:$0x75316420]
  %v414 = vld.sshfl [vmem:[#allocation1 + $0x8] sm:$0xff pattern:$0x75316420]
  %v415 = vld.sshfl [vmem:[#allocation1 + $0x10] sm:$0xff pattern:$0x75316420]
  %v416 = vld.sshfl [vmem:[#allocation1 + $0x18] sm:$0xff pattern:$0x75316420]
  %v417 = vld.sshfl [vmem:[#allocation1 + $0x20] sm:$0xff pattern:$0x75316420]
  %v418 = vld.sshfl [vmem:[#allocation1 + $0x28] sm:$0xff pattern:$0x75316420]
  %v419 = vld.sshfl [vmem:[#allocation1 + $0x30] sm:$0xff pattern:$0x75316420]
  %v420 = vld.sshfl [vmem:[#allocation1 + $0x38] sm:$0xff pattern:$0x75316420]
  %v437 = vsel %vm93, %v401, 0.0
  %v438 = vsel %vm93, %v402, 0.0
  %v439 = vadd.f32 %v437, %v438
  %v440 = vsel %vm93, %v403, 0.0
  %v441 = vadd.f32 %v439, %v440
  %v442 = vsel %vm93, %v404, 0.0
  %v443 = vadd.f32 %v441, %v442
  %v444 = vsel %vm93, %v405, 0.0
  %v445 = vadd.f32 %v443, %v444
  %v446 = vsel %vm93, %v406, 0.0
  %v447 = vadd.f32 %v445, %v446
  %v448 = vsel %vm93, %v407, 0.0
  %v449 = vadd.f32 %v447, %v448
  %v450 = vsel %vm93, %v408, 0.0
  %v451 = vadd.f32 %v449, %v450
  %452 = vadd.xlane.f32.xlu0 %v451
  %v453 = vpop.xlane.xlu0 %452
  %v454 = vsel %vm93, %v413, 0.0
  %v455 = vsel %vm93, %v414, 0.0
  %v456 = vadd.f32 %v454, %v455
  %v457 = vsel %vm93, %v415, 0.0
  %v458 = vadd.f32 %v456, %v457
  %v459 = vsel %vm93, %v416, 0.0
  %v460 = vadd.f32 %v458, %v459
  %v461 = vsel %vm93, %v417, 0.0
  %v462 = vadd.f32 %v460, %v461
  %v463 = vsel %vm93, %v418, 0.0
  %v464 = vadd.f32 %v462, %v463
  %v465 = vsel %vm93, %v419, 0.0
  %v466 = vadd.f32 %v464, %v465
  %v467 = vsel %vm93, %v420, 0.0
  %v468 = vadd.f32 %v466, %v467
  %469 = vadd.xlane.f32.xlu0 %v468
  %v470 = vpop.xlane.xlu0 %469
  %vm471 = vcmp.gt.f32.partialorder %v453, %v358
  %vm472 = vcmp.gt.f32.partialorder %v470, %v359
  %v473 = vsel %vm471, %v453, %v358
  %v474 = vsel %vm472, %v470, %v359
  %v475 = vsel %vm471, 3, %v360
  %v476 = vsel %vm472, 3, %v361
  %vm477 = vcmp.eq.s32.totalorder %v10, 4
  %vm478 = vcmp.eq.s32.totalorder %v11, 4
  %vm479 = vcmp.eq.s32.totalorder %v12, 4
  %vm480 = vcmp.eq.s32.totalorder %v13, 4
  %vm481 = vcmp.eq.s32.totalorder %v14, 4
  %vm482 = vcmp.eq.s32.totalorder %v15, 4
  %vm483 = vcmp.eq.s32.totalorder %v16, 4
  %vm484 = vcmp.eq.s32.totalorder %v17, 4
  %v485 = vsel %vm477, 1, 0
  %v486 = vsel %vm478, 1, 0
  %v487 = vsel %vm479, 1, 0
  %v488 = vsel %vm480, 1, 0
  %v489 = vsel %vm481, 1, 0
  %v490 = vsel %vm482, 1, 0
  %v491 = vsel %vm483, 1, 0
  %v492 = vsel %vm484, 1, 0
  %v493 = vcvt.s32.f32 %v485
  %v494 = vcvt.s32.f32 %v486
  %v495 = vcvt.s32.f32 %v487
  %v496 = vcvt.s32.f32 %v488
  %v497 = vcvt.s32.f32 %v489
  %v498 = vcvt.s32.f32 %v490
  %v499 = vcvt.s32.f32 %v491
  %v500 = vcvt.s32.f32 %v492
  %509 = vst [vmem:[#allocation1] ss:$2 sm:$0xff] %v493
  %s510 = scalar_lea.vmem [#allocation1], 16
  %511 = vst [vmem:[%s510] ss:$2 sm:$0xff] %v494
  %s512 = scalar_lea.vmem [#allocation1], 32
  %513 = vst [vmem:[%s512] ss:$2 sm:$0xff] %v495
  %s514 = scalar_lea.vmem [#allocation1], 48
  %515 = vst [vmem:[%s514] ss:$2 sm:$0xff] %v496
  %v516 = vld.sshfl [vmem:[#allocation1] sm:$0xff pattern:$0x75316420]
  %v517 = vld.sshfl [vmem:[#allocation1 + $0x8] sm:$0xff pattern:$0x75316420]
  %v518 = vld.sshfl [vmem:[#allocation1 + $0x10] sm:$0xff pattern:$0x75316420]
  %v519 = vld.sshfl [vmem:[#allocation1 + $0x18] sm:$0xff pattern:$0x75316420]
  %v520 = vld.sshfl [vmem:[#allocation1 + $0x20] sm:$0xff pattern:$0x75316420]
  %v521 = vld.sshfl [vmem:[#allocation1 + $0x28] sm:$0xff pattern:$0x75316420]
  %v522 = vld.sshfl [vmem:[#allocation1 + $0x30] sm:$0xff pattern:$0x75316420]
  %v523 = vld.sshfl [vmem:[#allocation1 + $0x38] sm:$0xff pattern:$0x75316420]
  %524 = vst [vmem:[#allocation1] ss:$2 sm:$0xff] %v497
  %525 = vst [vmem:[%s510] ss:$2 sm:$0xff] %v498
  %526 = vst [vmem:[%s512] ss:$2 sm:$0xff] %v499
  %527 = vst [vmem:[%s514] ss:$2 sm:$0xff] %v500
  %v528 = vld.sshfl [vmem:[#allocation1] sm:$0xff pattern:$0x75316420]
  %v529 = vld.sshfl [vmem:[#allocation1 + $0x8] sm:$0xff pattern:$0x75316420]
  %v530 = vld.sshfl [vmem:[#allocation1 + $0x10] sm:$0xff pattern:$0x75316420]
  %v531 = vld.sshfl [vmem:[#allocation1 + $0x18] sm:$0xff pattern:$0x75316420]
  %v532 = vld.sshfl [vmem:[#allocation1 + $0x20] sm:$0xff pattern:$0x75316420]
  %v533 = vld.sshfl [vmem:[#allocation1 + $0x28] sm:$0xff pattern:$0x75316420]
  %v534 = vld.sshfl [vmem:[#allocation1 + $0x30] sm:$0xff pattern:$0x75316420]
  %v535 = vld.sshfl [vmem:[#allocation1 + $0x38] sm:$0xff pattern:$0x75316420]
  %v552 = vsel %vm93, %v516, 0.0
  %v553 = vsel %vm93, %v517, 0.0
  %v554 = vadd.f32 %v552, %v553
  %v555 = vsel %vm93, %v518, 0.0
  %v556 = vadd.f32 %v554, %v555
  %v557 = vsel %vm93, %v519, 0.0
  %v558 = vadd.f32 %v556, %v557
  %v559 = vsel %vm93, %v520, 0.0
  %v560 = vadd.f32 %v558, %v559
  %v561 = vsel %vm93, %v521, 0.0
  %v562 = vadd.f32 %v560, %v561
  %v563 = vsel %vm93, %v522, 0.0
  %v564 = vadd.f32 %v562, %v563
  %v565 = vsel %vm93, %v523, 0.0
  %v566 = vadd.f32 %v564, %v565
  %567 = vadd.xlane.f32.xlu0 %v566
  %v568 = vpop.xlane.xlu0 %567
  %v569 = vsel %vm93, %v528, 0.0
  %v570 = vsel %vm93, %v529, 0.0
  %v571 = vadd.f32 %v569, %v570
  %v572 = vsel %vm93, %v530, 0.0
  %v573 = vadd.f32 %v571, %v572
  %v574 = vsel %vm93, %v531, 0.0
  %v575 = vadd.f32 %v573, %v574
  %v576 = vsel %vm93, %v532, 0.0
  %v577 = vadd.f32 %v575, %v576
  %v578 = vsel %vm93, %v533, 0.0
  %v579 = vadd.f32 %v577, %v578
  %v580 = vsel %vm93, %v534, 0.0
  %v581 = vadd.f32 %v579, %v580
  %v582 = vsel %vm93, %v535, 0.0
  %v583 = vadd.f32 %v581, %v582
  %584 = vadd.xlane.f32.xlu0 %v583
  %v585 = vpop.xlane.xlu0 %584
  %vm586 = vcmp.gt.f32.partialorder %v568, %v473
  %vm587 = vcmp.gt.f32.partialorder %v585, %v474
  %v588 = vsel %vm586, %v568, %v473
  %v589 = vsel %vm587, %v585, %v474
  %v590 = vsel %vm586, 4, %v475
  %v591 = vsel %vm587, 4, %v476
  %vm592 = vcmp.eq.s32.totalorder %v10, 5
  %vm593 = vcmp.eq.s32.totalorder %v11, 5
  %vm594 = vcmp.eq.s32.totalorder %v12, 5
  %vm595 = vcmp.eq.s32.totalorder %v13, 5
  %vm596 = vcmp.eq.s32.totalorder %v14, 5
  %vm597 = vcmp.eq.s32.totalorder %v15, 5
  %vm598 = vcmp.eq.s32.totalorder %v16, 5
  %vm599 = vcmp.eq.s32.totalorder %v17, 5
  %v600 = vsel %vm592, 1, 0
  %v601 = vsel %vm593, 1, 0
  %v602 = vsel %vm594, 1, 0
  %v603 = vsel %vm595, 1, 0
  %v604 = vsel %vm596, 1, 0
  %v605 = vsel %vm597, 1, 0
  %v606 = vsel %vm598, 1, 0
  %v607 = vsel %vm599, 1, 0
  %v608 = vcvt.s32.f32 %v600
  %v609 = vcvt.s32.f32 %v601
  %v610 = vcvt.s32.f32 %v602
  %v611 = vcvt.s32.f32 %v603
  %v612 = vcvt.s32.f32 %v604
  %v613 = vcvt.s32.f32 %v605
  %v614 = vcvt.s32.f32 %v606
  %v615 = vcvt.s32.f32 %v607
  %624 = vst [vmem:[#allocation1] ss:$2 sm:$0xff] %v608
  %s625 = scalar_lea.vmem [#allocation1], 16
  %626 = vst [vmem:[%s625] ss:$2 sm:$0xff] %v609
  %s627 = scalar_lea.vmem [#allocation1], 32
  %628 = vst [vmem:[%s627] ss:$2 sm:$0xff] %v610
  %s629 = scalar_lea.vmem [#allocation1], 48
  %630 = vst [vmem:[%s629] ss:$2 sm:$0xff] %v611
  %v631 = vld.sshfl [vmem:[#allocation1] sm:$0xff pattern:$0x75316420]
  %v632 = vld.sshfl [vmem:[#allocation1 + $0x8] sm:$0xff pattern:$0x75316420]
  %v633 = vld.sshfl [vmem:[#allocation1 + $0x10] sm:$0xff pattern:$0x75316420]
  %v634 = vld.sshfl [vmem:[#allocation1 + $0x18] sm:$0xff pattern:$0x75316420]
  %v635 = vld.sshfl [vmem:[#allocation1 + $0x20] sm:$0xff pattern:$0x75316420]
  %v636 = vld.sshfl [vmem:[#allocation1 + $0x28] sm:$0xff pattern:$0x75316420]
  %v637 = vld.sshfl [vmem:[#allocation1 + $0x30] sm:$0xff pattern:$0x75316420]
  %v638 = vld.sshfl [vmem:[#allocation1 + $0x38] sm:$0xff pattern:$0x75316420]
  %639 = vst [vmem:[#allocation1] ss:$2 sm:$0xff] %v612
  %640 = vst [vmem:[%s625] ss:$2 sm:$0xff] %v613
  %641 = vst [vmem:[%s627] ss:$2 sm:$0xff] %v614
  %642 = vst [vmem:[%s629] ss:$2 sm:$0xff] %v615
  %v643 = vld.sshfl [vmem:[#allocation1] sm:$0xff pattern:$0x75316420]
  %v644 = vld.sshfl [vmem:[#allocation1 + $0x8] sm:$0xff pattern:$0x75316420]
  %v645 = vld.sshfl [vmem:[#allocation1 + $0x10] sm:$0xff pattern:$0x75316420]
  %v646 = vld.sshfl [vmem:[#allocation1 + $0x18] sm:$0xff pattern:$0x75316420]
  %v647 = vld.sshfl [vmem:[#allocation1 + $0x20] sm:$0xff pattern:$0x75316420]
  %v648 = vld.sshfl [vmem:[#allocation1 + $0x28] sm:$0xff pattern:$0x75316420]
  %v649 = vld.sshfl [vmem:[#allocation1 + $0x30] sm:$0xff pattern:$0x75316420]
  %v650 = vld.sshfl [vmem:[#allocation1 + $0x38] sm:$0xff pattern:$0x75316420]
  %v667 = vsel %vm93, %v631, 0.0
  %v668 = vsel %vm93, %v632, 0.0
  %v669 = vadd.f32 %v667, %v668
  %v670 = vsel %vm93, %v633, 0.0
  %v671 = vadd.f32 %v669, %v670
  %v672 = vsel %vm93, %v634, 0.0
  %v673 = vadd.f32 %v671, %v672
  %v674 = vsel %vm93, %v635, 0.0
  %v675 = vadd.f32 %v673, %v674
  %v676 = vsel %vm93, %v636, 0.0
  %v677 = vadd.f32 %v675, %v676
  %v678 = vsel %vm93, %v637, 0.0
  %v679 = vadd.f32 %v677, %v678
  %v680 = vsel %vm93, %v638, 0.0
  %v681 = vadd.f32 %v679, %v680
  %682 = vadd.xlane.f32.xlu0 %v681
  %v683 = vpop.xlane.xlu0 %682
  %v684 = vsel %vm93, %v643, 0.0
  %v685 = vsel %vm93, %v644, 0.0
  %v686 = vadd.f32 %v684, %v685
  %v687 = vsel %vm93, %v645, 0.0
  %v688 = vadd.f32 %v686, %v687
  %v689 = vsel %vm93, %v646, 0.0
  %v690 = vadd.f32 %v688, %v689
  %v691 = vsel %vm93, %v647, 0.0
  %v692 = vadd.f32 %v690, %v691
  %v693 = vsel %vm93, %v648, 0.0
  %v694 = vadd.f32 %v692, %v693
  %v695 = vsel %vm93, %v649, 0.0
  %v696 = vadd.f32 %v694, %v695
  %v697 = vsel %vm93, %v650, 0.0
  %v698 = vadd.f32 %v696, %v697
  %699 = vadd.xlane.f32.xlu0 %v698
  %v700 = vpop.xlane.xlu0 %699
  %vm701 = vcmp.gt.f32.partialorder %v683, %v588
  %vm702 = vcmp.gt.f32.partialorder %v700, %v589
  %v703 = vsel %vm701, %v683, %v588
  %v704 = vsel %vm702, %v700, %v589
  %v705 = vsel %vm701, 5, %v590
  %v706 = vsel %vm702, 5, %v591
  %vm707 = vcmp.eq.s32.totalorder %v10, 6
  %vm708 = vcmp.eq.s32.totalorder %v11, 6
  %vm709 = vcmp.eq.s32.totalorder %v12, 6
  %vm710 = vcmp.eq.s32.totalorder %v13, 6
  %vm711 = vcmp.eq.s32.totalorder %v14, 6
  %vm712 = vcmp.eq.s32.totalorder %v15, 6
  %vm713 = vcmp.eq.s32.totalorder %v16, 6
  %vm714 = vcmp.eq.s32.totalorder %v17, 6
  %v715 = vsel %vm707, 1, 0
  %v716 = vsel %vm708, 1, 0
  %v717 = vsel %vm709, 1, 0
  %v718 = vsel %vm710, 1, 0
  %v719 = vsel %vm711, 1, 0
  %v720 = vsel %vm712, 1, 0
  %v721 = vsel %vm713, 1, 0
  %v722 = vsel %vm714, 1, 0
  %v723 = vcvt.s32.f32 %v715
  %v724 = vcvt.s32.f32 %v716
  %v725 = vcvt.s32.f32 %v717
  %v726 = vcvt.s32.f32 %v718
  %v727 = vcvt.s32.f32 %v719
  %v728 = vcvt.s32.f32 %v720
  %v729 = vcvt.s32.f32 %v721
  %v730 = vcvt.s32.f32 %v722
  %739 = vst [vmem:[#allocation1] ss:$2 sm:$0xff] %v723
  %s740 = scalar_lea.vmem [#allocation1], 16
  %741 = vst [vmem:[%s740] ss:$2 sm:$0xff] %v724
  %s742 = scalar_lea.vmem [#allocation1], 32
  %743 = vst [vmem:[%s742] ss:$2 sm:$0xff] %v725
  %s744 = scalar_lea.vmem [#allocation1], 48
  %745 = vst [vmem:[%s744] ss:$2 sm:$0xff] %v726
  %v746 = vld.sshfl [vmem:[#allocation1] sm:$0xff pattern:$0x75316420]
  %v747 = vld.sshfl [vmem:[#allocation1 + $0x8] sm:$0xff pattern:$0x75316420]
  %v748 = vld.sshfl [vmem:[#allocation1 + $0x10] sm:$0xff pattern:$0x75316420]
  %v749 = vld.sshfl [vmem:[#allocation1 + $0x18] sm:$0xff pattern:$0x75316420]
  %v750 = vld.sshfl [vmem:[#allocation1 + $0x20] sm:$0xff pattern:$0x75316420]
  %v751 = vld.sshfl [vmem:[#allocation1 + $0x28] sm:$0xff pattern:$0x75316420]
  %v752 = vld.sshfl [vmem:[#allocation1 + $0x30] sm:$0xff pattern:$0x75316420]
  %v753 = vld.sshfl [vmem:[#allocation1 + $0x38] sm:$0xff pattern:$0x75316420]
  %754 = vst [vmem:[#allocation1] ss:$2 sm:$0xff] %v727
  %755 = vst [vmem:[%s740] ss:$2 sm:$0xff] %v728
  %756 = vst [vmem:[%s742] ss:$2 sm:$0xff] %v729
  %757 = vst [vmem:[%s744] ss:$2 sm:$0xff] %v730
  %v758 = vld.sshfl [vmem:[#allocation1] sm:$0xff pattern:$0x75316420]
  %v759 = vld.sshfl [vmem:[#allocation1 + $0x8] sm:$0xff pattern:$0x75316420]
  %v760 = vld.sshfl [vmem:[#allocation1 + $0x10] sm:$0xff pattern:$0x75316420]
  %v761 = vld.sshfl [vmem:[#allocation1 + $0x18] sm:$0xff pattern:$0x75316420]
  %v762 = vld.sshfl [vmem:[#allocation1 + $0x20] sm:$0xff pattern:$0x75316420]
  %v763 = vld.sshfl [vmem:[#allocation1 + $0x28] sm:$0xff pattern:$0x75316420]
  %v764 = vld.sshfl [vmem:[#allocation1 + $0x30] sm:$0xff pattern:$0x75316420]
  %v765 = vld.sshfl [vmem:[#allocation1 + $0x38] sm:$0xff pattern:$0x75316420]
  %v782 = vsel %vm93, %v746, 0.0
  %v783 = vsel %vm93, %v747, 0.0
  %v784 = vadd.f32 %v782, %v783
  %v785 = vsel %vm93, %v748, 0.0
  %v786 = vadd.f32 %v784, %v785
  %v787 = vsel %vm93, %v749, 0.0
  %v788 = vadd.f32 %v786, %v787
  %v789 = vsel %vm93, %v750, 0.0
  %v790 = vadd.f32 %v788, %v789
  %v791 = vsel %vm93, %v751, 0.0
  %v792 = vadd.f32 %v790, %v791
  %v793 = vsel %vm93, %v752, 0.0
  %v794 = vadd.f32 %v792, %v793
  %v795 = vsel %vm93, %v753, 0.0
  %v796 = vadd.f32 %v794, %v795
  %797 = vadd.xlane.f32.xlu0 %v796
  %v798 = vpop.xlane.xlu0 %797
  %v799 = vsel %vm93, %v758, 0.0
  %v800 = vsel %vm93, %v759, 0.0
  %v801 = vadd.f32 %v799, %v800
  %v802 = vsel %vm93, %v760, 0.0
  %v803 = vadd.f32 %v801, %v802
  %v804 = vsel %vm93, %v761, 0.0
  %v805 = vadd.f32 %v803, %v804
  %v806 = vsel %vm93, %v762, 0.0
  %v807 = vadd.f32 %v805, %v806
  %v808 = vsel %vm93, %v763, 0.0
  %v809 = vadd.f32 %v807, %v808
  %v810 = vsel %vm93, %v764, 0.0
  %v811 = vadd.f32 %v809, %v810
  %v812 = vsel %vm93, %v765, 0.0
  %v813 = vadd.f32 %v811, %v812
  %814 = vadd.xlane.f32.xlu0 %v813
  %v815 = vpop.xlane.xlu0 %814
  %vm816 = vcmp.gt.f32.partialorder %v798, %v703
  %vm817 = vcmp.gt.f32.partialorder %v815, %v704
  %v818 = vsel %vm816, %v798, %v703
  %v819 = vsel %vm817, %v815, %v704
  %v820 = vsel %vm816, 6, %v705
  %v821 = vsel %vm817, 6, %v706
  %vm822 = vcmp.eq.s32.totalorder %v10, 7
  %vm823 = vcmp.eq.s32.totalorder %v11, 7
  %vm824 = vcmp.eq.s32.totalorder %v12, 7
  %vm825 = vcmp.eq.s32.totalorder %v13, 7
  %vm826 = vcmp.eq.s32.totalorder %v14, 7
  %vm827 = vcmp.eq.s32.totalorder %v15, 7
  %vm828 = vcmp.eq.s32.totalorder %v16, 7
  %vm829 = vcmp.eq.s32.totalorder %v17, 7
  %v830 = vsel %vm822, 1, 0
  %v831 = vsel %vm823, 1, 0
  %v832 = vsel %vm824, 1, 0
  %v833 = vsel %vm825, 1, 0
  %v834 = vsel %vm826, 1, 0
  %v835 = vsel %vm827, 1, 0
  %v836 = vsel %vm828, 1, 0
  %v837 = vsel %vm829, 1, 0
  %v838 = vcvt.s32.f32 %v830
  %v839 = vcvt.s32.f32 %v831
  %v840 = vcvt.s32.f32 %v832
  %v841 = vcvt.s32.f32 %v833
  %v842 = vcvt.s32.f32 %v834
  %v843 = vcvt.s32.f32 %v835
  %v844 = vcvt.s32.f32 %v836
  %v845 = vcvt.s32.f32 %v837
  %854 = vst [vmem:[#allocation1] ss:$2 sm:$0xff] %v838
  %s855 = scalar_lea.vmem [#allocation1], 16
  %856 = vst [vmem:[%s855] ss:$2 sm:$0xff] %v839
  %s857 = scalar_lea.vmem [#allocation1], 32
  %858 = vst [vmem:[%s857] ss:$2 sm:$0xff] %v840
  %s859 = scalar_lea.vmem [#allocation1], 48
  %860 = vst [vmem:[%s859] ss:$2 sm:$0xff] %v841
  %v861 = vld.sshfl [vmem:[#allocation1] sm:$0xff pattern:$0x75316420]
  %v862 = vld.sshfl [vmem:[#allocation1 + $0x8] sm:$0xff pattern:$0x75316420]
  %v863 = vld.sshfl [vmem:[#allocation1 + $0x10] sm:$0xff pattern:$0x75316420]
  %v864 = vld.sshfl [vmem:[#allocation1 + $0x18] sm:$0xff pattern:$0x75316420]
  %v865 = vld.sshfl [vmem:[#allocation1 + $0x20] sm:$0xff pattern:$0x75316420]
  %v866 = vld.sshfl [vmem:[#allocation1 + $0x28] sm:$0xff pattern:$0x75316420]
  %v867 = vld.sshfl [vmem:[#allocation1 + $0x30] sm:$0xff pattern:$0x75316420]
  %v868 = vld.sshfl [vmem:[#allocation1 + $0x38] sm:$0xff pattern:$0x75316420]
  %869 = vst [vmem:[#allocation1] ss:$2 sm:$0xff] %v842
  %870 = vst [vmem:[%s855] ss:$2 sm:$0xff] %v843
  %871 = vst [vmem:[%s857] ss:$2 sm:$0xff] %v844
  %872 = vst [vmem:[%s859] ss:$2 sm:$0xff] %v845
  %v873 = vld.sshfl [vmem:[#allocation1] sm:$0xff pattern:$0x75316420]
  %v874 = vld.sshfl [vmem:[#allocation1 + $0x8] sm:$0xff pattern:$0x75316420]
  %v875 = vld.sshfl [vmem:[#allocation1 + $0x10] sm:$0xff pattern:$0x75316420]
  %v876 = vld.sshfl [vmem:[#allocation1 + $0x18] sm:$0xff pattern:$0x75316420]
  %v877 = vld.sshfl [vmem:[#allocation1 + $0x20] sm:$0xff pattern:$0x75316420]
  %v878 = vld.sshfl [vmem:[#allocation1 + $0x28] sm:$0xff pattern:$0x75316420]
  %v879 = vld.sshfl [vmem:[#allocation1 + $0x30] sm:$0xff pattern:$0x75316420]
  %v880 = vld.sshfl [vmem:[#allocation1 + $0x38] sm:$0xff pattern:$0x75316420]
  %v897 = vsel %vm93, %v861, 0.0
  %v898 = vsel %vm93, %v862, 0.0
  %v899 = vadd.f32 %v897, %v898
  %v900 = vsel %vm93, %v863, 0.0
  %v901 = vadd.f32 %v899, %v900
  %v902 = vsel %vm93, %v864, 0.0
  %v903 = vadd.f32 %v901, %v902
  %v904 = vsel %vm93, %v865, 0.0
  %v905 = vadd.f32 %v903, %v904
  %v906 = vsel %vm93, %v866, 0.0
  %v907 = vadd.f32 %v905, %v906
  %v908 = vsel %vm93, %v867, 0.0
  %v909 = vadd.f32 %v907, %v908
  %v910 = vsel %vm93, %v868, 0.0
  %v911 = vadd.f32 %v909, %v910
  %912 = vadd.xlane.f32.xlu0 %v911
  %v913 = vpop.xlane.xlu0 %912
  %v914 = vsel %vm93, %v873, 0.0
  %v915 = vsel %vm93, %v874, 0.0
  %v916 = vadd.f32 %v914, %v915
  %v917 = vsel %vm93, %v875, 0.0
  %v918 = vadd.f32 %v916, %v917
  %v919 = vsel %vm93, %v876, 0.0
  %v920 = vadd.f32 %v918, %v919
  %v921 = vsel %vm93, %v877, 0.0
  %v922 = vadd.f32 %v920, %v921
  %v923 = vsel %vm93, %v878, 0.0
  %v924 = vadd.f32 %v922, %v923
  %v925 = vsel %vm93, %v879, 0.0
  %v926 = vadd.f32 %v924, %v925
  %v927 = vsel %vm93, %v880, 0.0
  %v928 = vadd.f32 %v926, %v927
  %929 = vadd.xlane.f32.xlu0 %v928
  %v930 = vpop.xlane.xlu0 %929
  %vm931 = vcmp.gt.f32.partialorder %v913, %v818
  %vm932 = vcmp.gt.f32.partialorder %v930, %v819
  %v933 = vsel %vm931, %v913, %v818
  %v934 = vsel %vm932, %v930, %v819
  %v935 = vsel %vm931, 7, %v820
  %v936 = vsel %vm932, 7, %v821
  %vm937 = vcmp.eq.s32.totalorder %v10, 8
  %vm938 = vcmp.eq.s32.totalorder %v11, 8
  %vm939 = vcmp.eq.s32.totalorder %v12, 8
  %vm940 = vcmp.eq.s32.totalorder %v13, 8
  %vm941 = vcmp.eq.s32.totalorder %v14, 8
  %vm942 = vcmp.eq.s32.totalorder %v15, 8
  %vm943 = vcmp.eq.s32.totalorder %v16, 8
  %vm944 = vcmp.eq.s32.totalorder %v17, 8
  %v945 = vsel %vm937, 1, 0
  %v946 = vsel %vm938, 1, 0
  %v947 = vsel %vm939, 1, 0
  %v948 = vsel %vm940, 1, 0
  %v949 = vsel %vm941, 1, 0
  %v950 = vsel %vm942, 1, 0
  %v951 = vsel %vm943, 1, 0
  %v952 = vsel %vm944, 1, 0
  %v953 = vcvt.s32.f32 %v945
  %v954 = vcvt.s32.f32 %v946
  %v955 = vcvt.s32.f32 %v947
  %v956 = vcvt.s32.f32 %v948
  %v957 = vcvt.s32.f32 %v949
  %v958 = vcvt.s32.f32 %v950
  %v959 = vcvt.s32.f32 %v951
  %v960 = vcvt.s32.f32 %v952
  %969 = vst [vmem:[#allocation1] ss:$2 sm:$0xff] %v953
  %s970 = scalar_lea.vmem [#allocation1], 16
  %971 = vst [vmem:[%s970] ss:$2 sm:$0xff] %v954
  %s972 = scalar_lea.vmem [#allocation1], 32
  %973 = vst [vmem:[%s972] ss:$2 sm:$0xff] %v955
  %s974 = scalar_lea.vmem [#allocation1], 48
  %975 = vst [vmem:[%s974] ss:$2 sm:$0xff] %v956
  %v976 = vld.sshfl [vmem:[#allocation1] sm:$0xff pattern:$0x75316420]
  %v977 = vld.sshfl [vmem:[#allocation1 + $0x8] sm:$0xff pattern:$0x75316420]
  %v978 = vld.sshfl [vmem:[#allocation1 + $0x10] sm:$0xff pattern:$0x75316420]
  %v979 = vld.sshfl [vmem:[#allocation1 + $0x18] sm:$0xff pattern:$0x75316420]
  %v980 = vld.sshfl [vmem:[#allocation1 + $0x20] sm:$0xff pattern:$0x75316420]
  %v981 = vld.sshfl [vmem:[#allocation1 + $0x28] sm:$0xff pattern:$0x75316420]
  %v982 = vld.sshfl [vmem:[#allocation1 + $0x30] sm:$0xff pattern:$0x75316420]
  %v983 = vld.sshfl [vmem:[#allocation1 + $0x38] sm:$0xff pattern:$0x75316420]
  %984 = vst [vmem:[#allocation1] ss:$2 sm:$0xff] %v957
  %985 = vst [vmem:[%s970] ss:$2 sm:$0xff] %v958
  %986 = vst [vmem:[%s972] ss:$2 sm:$0xff] %v959
  %987 = vst [vmem:[%s974] ss:$2 sm:$0xff] %v960
  %v988 = vld.sshfl [vmem:[#allocation1] sm:$0xff pattern:$0x75316420]
  %v989 = vld.sshfl [vmem:[#allocation1 + $0x8] sm:$0xff pattern:$0x75316420]
  %v990 = vld.sshfl [vmem:[#allocation1 + $0x10] sm:$0xff pattern:$0x75316420]
  %v991 = vld.sshfl [vmem:[#allocation1 + $0x18] sm:$0xff pattern:$0x75316420]
  %v992 = vld.sshfl [vmem:[#allocation1 + $0x20] sm:$0xff pattern:$0x75316420]
  %v993 = vld.sshfl [vmem:[#allocation1 + $0x28] sm:$0xff pattern:$0x75316420]
  %v994 = vld.sshfl [vmem:[#allocation1 + $0x30] sm:$0xff pattern:$0x75316420]
  %v995 = vld.sshfl [vmem:[#allocation1 + $0x38] sm:$0xff pattern:$0x75316420]
  %v1012 = vsel %vm93, %v976, 0.0
  %v1013 = vsel %vm93, %v977, 0.0
  %v1014 = vadd.f32 %v1012, %v1013
  %v1015 = vsel %vm93, %v978, 0.0
  %v1016 = vadd.f32 %v1014, %v1015
  %v1017 = vsel %vm93, %v979, 0.0
  %v1018 = vadd.f32 %v1016, %v1017
  %v1019 = vsel %vm93, %v980, 0.0
  %v1020 = vadd.f32 %v1018, %v1019
  %v1021 = vsel %vm93, %v981, 0.0
  %v1022 = vadd.f32 %v1020, %v1021
  %v1023 = vsel %vm93, %v982, 0.0
  %v1024 = vadd.f32 %v1022, %v1023
  %v1025 = vsel %vm93, %v983, 0.0
  %v1026 = vadd.f32 %v1024, %v1025
  %1027 = vadd.xlane.f32.xlu0 %v1026
  %v1028 = vpop.xlane.xlu0 %1027
  %v1029 = vsel %vm93, %v988, 0.0
  %v1030 = vsel %vm93, %v989, 0.0
  %v1031 = vadd.f32 %v1029, %v1030
  %v1032 = vsel %vm93, %v990, 0.0
  %v1033 = vadd.f32 %v1031, %v1032
  %v1034 = vsel %vm93, %v991, 0.0
  %v1035 = vadd.f32 %v1033, %v1034
  %v1036 = vsel %vm93, %v992, 0.0
  %v1037 = vadd.f32 %v1035, %v1036
  %v1038 = vsel %vm93, %v993, 0.0
  %v1039 = vadd.f32 %v1037, %v1038
  %v1040 = vsel %vm93, %v994, 0.0
  %v1041 = vadd.f32 %v1039, %v1040
  %v1042 = vsel %vm93, %v995, 0.0
  %v1043 = vadd.f32 %v1041, %v1042
  %1044 = vadd.xlane.f32.xlu0 %v1043
  %v1045 = vpop.xlane.xlu0 %1044
  %vm1046 = vcmp.gt.f32.partialorder %v1028, %v933
  %vm1047 = vcmp.gt.f32.partialorder %v1045, %v934
  %v1048 = vsel %vm1046, %v1028, %v933
  %v1049 = vsel %vm1047, %v1045, %v934
  %v1050 = vsel %vm1046, 8, %v935
  %v1051 = vsel %vm1047, 8, %v936
  %vm1052 = vcmp.eq.s32.totalorder %v10, 9
  %vm1053 = vcmp.eq.s32.totalorder %v11, 9
  %vm1054 = vcmp.eq.s32.totalorder %v12, 9
  %vm1055 = vcmp.eq.s32.totalorder %v13, 9
  %vm1056 = vcmp.eq.s32.totalorder %v14, 9
  %vm1057 = vcmp.eq.s32.totalorder %v15, 9
  %vm1058 = vcmp.eq.s32.totalorder %v16, 9
  %vm1059 = vcmp.eq.s32.totalorder %v17, 9
  %v1060 = vsel %vm1052, 1, 0
  %v1061 = vsel %vm1053, 1, 0
  %v1062 = vsel %vm1054, 1, 0
  %v1063 = vsel %vm1055, 1, 0
  %v1064 = vsel %vm1056, 1, 0
  %v1065 = vsel %vm1057, 1, 0
  %v1066 = vsel %vm1058, 1, 0
  %v1067 = vsel %vm1059, 1, 0
  %v1068 = vcvt.s32.f32 %v1060
  %v1069 = vcvt.s32.f32 %v1061
  %v1070 = vcvt.s32.f32 %v1062
  %v1071 = vcvt.s32.f32 %v1063
  %v1072 = vcvt.s32.f32 %v1064
  %v1073 = vcvt.s32.f32 %v1065
  %v1074 = vcvt.s32.f32 %v1066
  %v1075 = vcvt.s32.f32 %v1067
  %1084 = vst [vmem:[#allocation1] ss:$2 sm:$0xff] %v1068
  %s1085 = scalar_lea.vmem [#allocation1], 16
  %1086 = vst [vmem:[%s1085] ss:$2 sm:$0xff] %v1069
  %s1087 = scalar_lea.vmem [#allocation1], 32
  %1088 = vst [vmem:[%s1087] ss:$2 sm:$0xff] %v1070
  %s1089 = scalar_lea.vmem [#allocation1], 48
  %1090 = vst [vmem:[%s1089] ss:$2 sm:$0xff] %v1071
  %v1091 = vld.sshfl [vmem:[#allocation1] sm:$0xff pattern:$0x75316420]
  %v1092 = vld.sshfl [vmem:[#allocation1 + $0x8] sm:$0xff pattern:$0x75316420]
  %v1093 = vld.sshfl [vmem:[#allocation1 + $0x10] sm:$0xff pattern:$0x75316420]
  %v1094 = vld.sshfl [vmem:[#allocation1 + $0x18] sm:$0xff pattern:$0x75316420]
  %v1095 = vld.sshfl [vmem:[#allocation1 + $0x20] sm:$0xff pattern:$0x75316420]
  %v1096 = vld.sshfl [vmem:[#allocation1 + $0x28] sm:$0xff pattern:$0x75316420]
  %v1097 = vld.sshfl [vmem:[#allocation1 + $0x30] sm:$0xff pattern:$0x75316420]
  %v1098 = vld.sshfl [vmem:[#allocation1 + $0x38] sm:$0xff pattern:$0x75316420]
  %1099 = vst [vmem:[#allocation1] ss:$2 sm:$0xff] %v1072
  %1100 = vst [vmem:[%s1085] ss:$2 sm:$0xff] %v1073
  %1101 = vst [vmem:[%s1087] ss:$2 sm:$0xff] %v1074
  %1102 = vst [vmem:[%s1089] ss:$2 sm:$0xff] %v1075
  %v1103 = vld.sshfl [vmem:[#allocation1] sm:$0xff pattern:$0x75316420]
  %v1104 = vld.sshfl [vmem:[#allocation1 + $0x8] sm:$0xff pattern:$0x75316420]
  %v1105 = vld.sshfl [vmem:[#allocation1 + $0x10] sm:$0xff pattern:$0x75316420]
  %v1106 = vld.sshfl [vmem:[#allocation1 + $0x18] sm:$0xff pattern:$0x75316420]
  %v1107 = vld.sshfl [vmem:[#allocation1 + $0x20] sm:$0xff pattern:$0x75316420]
  %v1108 = vld.sshfl [vmem:[#allocation1 + $0x28] sm:$0xff pattern:$0x75316420]
  %v1109 = vld.sshfl [vmem:[#allocation1 + $0x30] sm:$0xff pattern:$0x75316420]
  %v1110 = vld.sshfl [vmem:[#allocation1 + $0x38] sm:$0xff pattern:$0x75316420]
  %v1127 = vsel %vm93, %v1091, 0.0
  %v1128 = vsel %vm93, %v1092, 0.0
  %v1129 = vadd.f32 %v1127, %v1128
  %v1130 = vsel %vm93, %v1093, 0.0
  %v1131 = vadd.f32 %v1129, %v1130
  %v1132 = vsel %vm93, %v1094, 0.0
  %v1133 = vadd.f32 %v1131, %v1132
  %v1134 = vsel %vm93, %v1095, 0.0
  %v1135 = vadd.f32 %v1133, %v1134
  %v1136 = vsel %vm93, %v1096, 0.0
  %v1137 = vadd.f32 %v1135, %v1136
  %v1138 = vsel %vm93, %v1097, 0.0
  %v1139 = vadd.f32 %v1137, %v1138
  %v1140 = vsel %vm93, %v1098, 0.0
  %v1141 = vadd.f32 %v1139, %v1140
  %1142 = vadd.xlane.f32.xlu0 %v1141
  %v1143 = vpop.xlane.xlu0 %1142
  %v1144 = vsel %vm93, %v1103, 0.0
  %v1145 = vsel %vm93, %v1104, 0.0
  %v1146 = vadd.f32 %v1144, %v1145
  %v1147 = vsel %vm93, %v1105, 0.0
  %v1148 = vadd.f32 %v1146, %v1147
  %v1149 = vsel %vm93, %v1106, 0.0
  %v1150 = vadd.f32 %v1148, %v1149
  %v1151 = vsel %vm93, %v1107, 0.0
  %v1152 = vadd.f32 %v1150, %v1151
  %v1153 = vsel %vm93, %v1108, 0.0
  %v1154 = vadd.f32 %v1152, %v1153
  %v1155 = vsel %vm93, %v1109, 0.0
  %v1156 = vadd.f32 %v1154, %v1155
  %v1157 = vsel %vm93, %v1110, 0.0
  %v1158 = vadd.f32 %v1156, %v1157
  %1159 = vadd.xlane.f32.xlu0 %v1158
  %v1160 = vpop.xlane.xlu0 %1159
  %vm1161 = vcmp.gt.f32.partialorder %v1143, %v1048
  %vm1162 = vcmp.gt.f32.partialorder %v1160, %v1049
  %v1163 = vsel %vm1161, %v1143, %v1048
  %v1164 = vsel %vm1162, %v1160, %v1049
  %v1165 = vsel %vm1161, 9, %v1050
  %v1166 = vsel %vm1162, 9, %v1051
  %vm1167 = vcmp.eq.s32.totalorder %v10, 10
  %vm1168 = vcmp.eq.s32.totalorder %v11, 10
  %vm1169 = vcmp.eq.s32.totalorder %v12, 10
  %vm1170 = vcmp.eq.s32.totalorder %v13, 10
  %vm1171 = vcmp.eq.s32.totalorder %v14, 10
  %vm1172 = vcmp.eq.s32.totalorder %v15, 10
  %vm1173 = vcmp.eq.s32.totalorder %v16, 10
  %vm1174 = vcmp.eq.s32.totalorder %v17, 10
  %v1175 = vsel %vm1167, 1, 0
  %v1176 = vsel %vm1168, 1, 0
  %v1177 = vsel %vm1169, 1, 0
  %v1178 = vsel %vm1170, 1, 0
  %v1179 = vsel %vm1171, 1, 0
  %v1180 = vsel %vm1172, 1, 0
  %v1181 = vsel %vm1173, 1, 0
  %v1182 = vsel %vm1174, 1, 0
  %v1183 = vcvt.s32.f32 %v1175
  %v1184 = vcvt.s32.f32 %v1176
  %v1185 = vcvt.s32.f32 %v1177
  %v1186 = vcvt.s32.f32 %v1178
  %v1187 = vcvt.s32.f32 %v1179
  %v1188 = vcvt.s32.f32 %v1180
  %v1189 = vcvt.s32.f32 %v1181
  %v1190 = vcvt.s32.f32 %v1182
  %1199 = vst [vmem:[#allocation1] ss:$2 sm:$0xff] %v1183
  %s1200 = scalar_lea.vmem [#allocation1], 16
  %1201 = vst [vmem:[%s1200] ss:$2 sm:$0xff] %v1184
  %s1202 = scalar_lea.vmem [#allocation1], 32
  %1203 = vst [vmem:[%s1202] ss:$2 sm:$0xff] %v1185
  %s1204 = scalar_lea.vmem [#allocation1], 48
  %1205 = vst [vmem:[%s1204] ss:$2 sm:$0xff] %v1186
  %v1206 = vld.sshfl [vmem:[#allocation1] sm:$0xff pattern:$0x75316420]
  %v1207 = vld.sshfl [vmem:[#allocation1 + $0x8] sm:$0xff pattern:$0x75316420]
  %v1208 = vld.sshfl [vmem:[#allocation1 + $0x10] sm:$0xff pattern:$0x75316420]
  %v1209 = vld.sshfl [vmem:[#allocation1 + $0x18] sm:$0xff pattern:$0x75316420]
  %v1210 = vld.sshfl [vmem:[#allocation1 + $0x20] sm:$0xff pattern:$0x75316420]
  %v1211 = vld.sshfl [vmem:[#allocation1 + $0x28] sm:$0xff pattern:$0x75316420]
  %v1212 = vld.sshfl [vmem:[#allocation1 + $0x30] sm:$0xff pattern:$0x75316420]
  %v1213 = vld.sshfl [vmem:[#allocation1 + $0x38] sm:$0xff pattern:$0x75316420]
  %1214 = vst [vmem:[#allocation1] ss:$2 sm:$0xff] %v1187
  %1215 = vst [vmem:[%s1200] ss:$2 sm:$0xff] %v1188
  %1216 = vst [vmem:[%s1202] ss:$2 sm:$0xff] %v1189
  %1217 = vst [vmem:[%s1204] ss:$2 sm:$0xff] %v1190
  %v1218 = vld.sshfl [vmem:[#allocation1] sm:$0xff pattern:$0x75316420]
  %v1219 = vld.sshfl [vmem:[#allocation1 + $0x8] sm:$0xff pattern:$0x75316420]
  %v1220 = vld.sshfl [vmem:[#allocation1 + $0x10] sm:$0xff pattern:$0x75316420]
  %v1221 = vld.sshfl [vmem:[#allocation1 + $0x18] sm:$0xff pattern:$0x75316420]
  %v1222 = vld.sshfl [vmem:[#allocation1 + $0x20] sm:$0xff pattern:$0x75316420]
  %v1223 = vld.sshfl [vmem:[#allocation1 + $0x28] sm:$0xff pattern:$0x75316420]
  %v1224 = vld.sshfl [vmem:[#allocation1 + $0x30] sm:$0xff pattern:$0x75316420]
  %v1225 = vld.sshfl [vmem:[#allocation1 + $0x38] sm:$0xff pattern:$0x75316420]
  %v1242 = vsel %vm93, %v1206, 0.0
  %v1243 = vsel %vm93, %v1207, 0.0
  %v1244 = vadd.f32 %v1242, %v1243
  %v1245 = vsel %vm93, %v1208, 0.0
  %v1246 = vadd.f32 %v1244, %v1245
  %v1247 = vsel %vm93, %v1209, 0.0
  %v1248 = vadd.f32 %v1246, %v1247
  %v1249 = vsel %vm93, %v1210, 0.0
  %v1250 = vadd.f32 %v1248, %v1249
  %v1251 = vsel %vm93, %v1211, 0.0
  %v1252 = vadd.f32 %v1250, %v1251
  %v1253 = vsel %vm93, %v1212, 0.0
  %v1254 = vadd.f32 %v1252, %v1253
  %v1255 = vsel %vm93, %v1213, 0.0
  %v1256 = vadd.f32 %v1254, %v1255
  %1257 = vadd.xlane.f32.xlu0 %v1256
  %v1258 = vpop.xlane.xlu0 %1257
  %v1259 = vsel %vm93, %v1218, 0.0
  %v1260 = vsel %vm93, %v1219, 0.0
  %v1261 = vadd.f32 %v1259, %v1260
  %v1262 = vsel %vm93, %v1220, 0.0
  %v1263 = vadd.f32 %v1261, %v1262
  %v1264 = vsel %vm93, %v1221, 0.0
  %v1265 = vadd.f32 %v1263, %v1264
  %v1266 = vsel %vm93, %v1222, 0.0
  %v1267 = vadd.f32 %v1265, %v1266
  %v1268 = vsel %vm93, %v1223, 0.0
  %v1269 = vadd.f32 %v1267, %v1268
  %v1270 = vsel %vm93, %v1224, 0.0
  %v1271 = vadd.f32 %v1269, %v1270
  %v1272 = vsel %vm93, %v1225, 0.0
  %v1273 = vadd.f32 %v1271, %v1272
  %1274 = vadd.xlane.f32.xlu0 %v1273
  %v1275 = vpop.xlane.xlu0 %1274
  %vm1276 = vcmp.gt.f32.partialorder %v1258, %v1163
  %vm1277 = vcmp.gt.f32.partialorder %v1275, %v1164
  %v1278 = vsel %vm1276, %v1258, %v1163
  %v1279 = vsel %vm1277, %v1275, %v1164
  %v1280 = vsel %vm1276, 10, %v1165
  %v1281 = vsel %vm1277, 10, %v1166
  %vm1282 = vcmp.eq.s32.totalorder %v10, 11
  %vm1283 = vcmp.eq.s32.totalorder %v11, 11
  %vm1284 = vcmp.eq.s32.totalorder %v12, 11
  %vm1285 = vcmp.eq.s32.totalorder %v13, 11
  %vm1286 = vcmp.eq.s32.totalorder %v14, 11
  %vm1287 = vcmp.eq.s32.totalorder %v15, 11
  %vm1288 = vcmp.eq.s32.totalorder %v16, 11
  %vm1289 = vcmp.eq.s32.totalorder %v17, 11
  %v1290 = vsel %vm1282, 1, 0
  %v1291 = vsel %vm1283, 1, 0
  %v1292 = vsel %vm1284, 1, 0
  %v1293 = vsel %vm1285, 1, 0
  %v1294 = vsel %vm1286, 1, 0
  %v1295 = vsel %vm1287, 1, 0
  %v1296 = vsel %vm1288, 1, 0
  %v1297 = vsel %vm1289, 1, 0
  %v1298 = vcvt.s32.f32 %v1290
  %v1299 = vcvt.s32.f32 %v1291
  %v1300 = vcvt.s32.f32 %v1292
  %v1301 = vcvt.s32.f32 %v1293
  %v1302 = vcvt.s32.f32 %v1294
  %v1303 = vcvt.s32.f32 %v1295
  %v1304 = vcvt.s32.f32 %v1296
  %v1305 = vcvt.s32.f32 %v1297
  %1314 = vst [vmem:[#allocation1] ss:$2 sm:$0xff] %v1298
  %s1315 = scalar_lea.vmem [#allocation1], 16
  %1316 = vst [vmem:[%s1315] ss:$2 sm:$0xff] %v1299
  %s1317 = scalar_lea.vmem [#allocation1], 32
  %1318 = vst [vmem:[%s1317] ss:$2 sm:$0xff] %v1300
  %s1319 = scalar_lea.vmem [#allocation1], 48
  %1320 = vst [vmem:[%s1319] ss:$2 sm:$0xff] %v1301
  %v1321 = vld.sshfl [vmem:[#allocation1] sm:$0xff pattern:$0x75316420]
  %v1322 = vld.sshfl [vmem:[#allocation1 + $0x8] sm:$0xff pattern:$0x75316420]
  %v1323 = vld.sshfl [vmem:[#allocation1 + $0x10] sm:$0xff pattern:$0x75316420]
  %v1324 = vld.sshfl [vmem:[#allocation1 + $0x18] sm:$0xff pattern:$0x75316420]
  %v1325 = vld.sshfl [vmem:[#allocation1 + $0x20] sm:$0xff pattern:$0x75316420]
  %v1326 = vld.sshfl [vmem:[#allocation1 + $0x28] sm:$0xff pattern:$0x75316420]
  %v1327 = vld.sshfl [vmem:[#allocation1 + $0x30] sm:$0xff pattern:$0x75316420]
  %v1328 = vld.sshfl [vmem:[#allocation1 + $0x38] sm:$0xff pattern:$0x75316420]
  %1329 = vst [vmem:[#allocation1] ss:$2 sm:$0xff] %v1302
  %1330 = vst [vmem:[%s1315] ss:$2 sm:$0xff] %v1303
  %1331 = vst [vmem:[%s1317] ss:$2 sm:$0xff] %v1304
  %1332 = vst [vmem:[%s1319] ss:$2 sm:$0xff] %v1305
  %v1333 = vld.sshfl [vmem:[#allocation1] sm:$0xff pattern:$0x75316420]
  %v1334 = vld.sshfl [vmem:[#allocation1 + $0x8] sm:$0xff pattern:$0x75316420]
  %v1335 = vld.sshfl [vmem:[#allocation1 + $0x10] sm:$0xff pattern:$0x75316420]
  %v1336 = vld.sshfl [vmem:[#allocation1 + $0x18] sm:$0xff pattern:$0x75316420]
  %v1337 = vld.sshfl [vmem:[#allocation1 + $0x20] sm:$0xff pattern:$0x75316420]
  %v1338 = vld.sshfl [vmem:[#allocation1 + $0x28] sm:$0xff pattern:$0x75316420]
  %v1339 = vld.sshfl [vmem:[#allocation1 + $0x30] sm:$0xff pattern:$0x75316420]
  %v1340 = vld.sshfl [vmem:[#allocation1 + $0x38] sm:$0xff pattern:$0x75316420]
  %v1357 = vsel %vm93, %v1321, 0.0
  %v1358 = vsel %vm93, %v1322, 0.0
  %v1359 = vadd.f32 %v1357, %v1358
  %v1360 = vsel %vm93, %v1323, 0.0
  %v1361 = vadd.f32 %v1359, %v1360
  %v1362 = vsel %vm93, %v1324, 0.0
  %v1363 = vadd.f32 %v1361, %v1362
  %v1364 = vsel %vm93, %v1325, 0.0
  %v1365 = vadd.f32 %v1363, %v1364
  %v1366 = vsel %vm93, %v1326, 0.0
  %v1367 = vadd.f32 %v1365, %v1366
  %v1368 = vsel %vm93, %v1327, 0.0
  %v1369 = vadd.f32 %v1367, %v1368
  %v1370 = vsel %vm93, %v1328, 0.0
  %v1371 = vadd.f32 %v1369, %v1370
  %1372 = vadd.xlane.f32.xlu0 %v1371
  %v1373 = vpop.xlane.xlu0 %1372
  %v1374 = vsel %vm93, %v1333, 0.0
  %v1375 = vsel %vm93, %v1334, 0.0
  %v1376 = vadd.f32 %v1374, %v1375
  %v1377 = vsel %vm93, %v1335, 0.0
  %v1378 = vadd.f32 %v1376, %v1377
  %v1379 = vsel %vm93, %v1336, 0.0
  %v1380 = vadd.f32 %v1378, %v1379
  %v1381 = vsel %vm93, %v1337, 0.0
  %v1382 = vadd.f32 %v1380, %v1381
  %v1383 = vsel %vm93, %v1338, 0.0
  %v1384 = vadd.f32 %v1382, %v1383
  %v1385 = vsel %vm93, %v1339, 0.0
  %v1386 = vadd.f32 %v1384, %v1385
  %v1387 = vsel %vm93, %v1340, 0.0
  %v1388 = vadd.f32 %v1386, %v1387
  %1389 = vadd.xlane.f32.xlu0 %v1388
  %v1390 = vpop.xlane.xlu0 %1389
  %vm1391 = vcmp.gt.f32.partialorder %v1373, %v1278
  %vm1392 = vcmp.gt.f32.partialorder %v1390, %v1279
  %v1393 = vsel %vm1391, %v1373, %v1278
  %v1394 = vsel %vm1392, %v1390, %v1279
  %v1395 = vsel %vm1391, 11, %v1280
  %v1396 = vsel %vm1392, 11, %v1281
  %vm1397 = vcmp.eq.s32.totalorder %v10, 12
  %vm1398 = vcmp.eq.s32.totalorder %v11, 12
  %vm1399 = vcmp.eq.s32.totalorder %v12, 12
  %vm1400 = vcmp.eq.s32.totalorder %v13, 12
  %vm1401 = vcmp.eq.s32.totalorder %v14, 12
  %vm1402 = vcmp.eq.s32.totalorder %v15, 12
  %vm1403 = vcmp.eq.s32.totalorder %v16, 12
  %vm1404 = vcmp.eq.s32.totalorder %v17, 12
  %v1405 = vsel %vm1397, 1, 0
  %v1406 = vsel %vm1398, 1, 0
  %v1407 = vsel %vm1399, 1, 0
  %v1408 = vsel %vm1400, 1, 0
  %v1409 = vsel %vm1401, 1, 0
  %v1410 = vsel %vm1402, 1, 0
  %v1411 = vsel %vm1403, 1, 0
  %v1412 = vsel %vm1404, 1, 0
  %v1413 = vcvt.s32.f32 %v1405
  %v1414 = vcvt.s32.f32 %v1406
  %v1415 = vcvt.s32.f32 %v1407
  %v1416 = vcvt.s32.f32 %v1408
  %v1417 = vcvt.s32.f32 %v1409
  %v1418 = vcvt.s32.f32 %v1410
  %v1419 = vcvt.s32.f32 %v1411
  %v1420 = vcvt.s32.f32 %v1412
  %1429 = vst [vmem:[#allocation1] ss:$2 sm:$0xff] %v1413
  %s1430 = scalar_lea.vmem [#allocation1], 16
  %1431 = vst [vmem:[%s1430] ss:$2 sm:$0xff] %v1414
  %s1432 = scalar_lea.vmem [#allocation1], 32
  %1433 = vst [vmem:[%s1432] ss:$2 sm:$0xff] %v1415
  %s1434 = scalar_lea.vmem [#allocation1], 48
  %1435 = vst [vmem:[%s1434] ss:$2 sm:$0xff] %v1416
  %v1436 = vld.sshfl [vmem:[#allocation1] sm:$0xff pattern:$0x75316420]
  %v1437 = vld.sshfl [vmem:[#allocation1 + $0x8] sm:$0xff pattern:$0x75316420]
  %v1438 = vld.sshfl [vmem:[#allocation1 + $0x10] sm:$0xff pattern:$0x75316420]
  %v1439 = vld.sshfl [vmem:[#allocation1 + $0x18] sm:$0xff pattern:$0x75316420]
  %v1440 = vld.sshfl [vmem:[#allocation1 + $0x20] sm:$0xff pattern:$0x75316420]
  %v1441 = vld.sshfl [vmem:[#allocation1 + $0x28] sm:$0xff pattern:$0x75316420]
  %v1442 = vld.sshfl [vmem:[#allocation1 + $0x30] sm:$0xff pattern:$0x75316420]
  %v1443 = vld.sshfl [vmem:[#allocation1 + $0x38] sm:$0xff pattern:$0x75316420]
  %1444 = vst [vmem:[#allocation1] ss:$2 sm:$0xff] %v1417
  %1445 = vst [vmem:[%s1430] ss:$2 sm:$0xff] %v1418
  %1446 = vst [vmem:[%s1432] ss:$2 sm:$0xff] %v1419
  %1447 = vst [vmem:[%s1434] ss:$2 sm:$0xff] %v1420
  %v1448 = vld.sshfl [vmem:[#allocation1] sm:$0xff pattern:$0x75316420]
  %v1449 = vld.sshfl [vmem:[#allocation1 + $0x8] sm:$0xff pattern:$0x75316420]
  %v1450 = vld.sshfl [vmem:[#allocation1 + $0x10] sm:$0xff pattern:$0x75316420]
  %v1451 = vld.sshfl [vmem:[#allocation1 + $0x18] sm:$0xff pattern:$0x75316420]
  %v1452 = vld.sshfl [vmem:[#allocation1 + $0x20] sm:$0xff pattern:$0x75316420]
  %v1453 = vld.sshfl [vmem:[#allocation1 + $0x28] sm:$0xff pattern:$0x75316420]
  %v1454 = vld.sshfl [vmem:[#allocation1 + $0x30] sm:$0xff pattern:$0x75316420]
  %v1455 = vld.sshfl [vmem:[#allocation1 + $0x38] sm:$0xff pattern:$0x75316420]
  %v1472 = vsel %vm93, %v1436, 0.0
  %v1473 = vsel %vm93, %v1437, 0.0
  %v1474 = vadd.f32 %v1472, %v1473
  %v1475 = vsel %vm93, %v1438, 0.0
  %v1476 = vadd.f32 %v1474, %v1475
  %v1477 = vsel %vm93, %v1439, 0.0
  %v1478 = vadd.f32 %v1476, %v1477
  %v1479 = vsel %vm93, %v1440, 0.0
  %v1480 = vadd.f32 %v1478, %v1479
  %v1481 = vsel %vm93, %v1441, 0.0
  %v1482 = vadd.f32 %v1480, %v1481
  %v1483 = vsel %vm93, %v1442, 0.0
  %v1484 = vadd.f32 %v1482, %v1483
  %v1485 = vsel %vm93, %v1443, 0.0
  %v1486 = vadd.f32 %v1484, %v1485
  %1487 = vadd.xlane.f32.xlu0 %v1486
  %v1488 = vpop.xlane.xlu0 %1487
  %v1489 = vsel %vm93, %v1448, 0.0
  %v1490 = vsel %vm93, %v1449, 0.0
  %v1491 = vadd.f32 %v1489, %v1490
  %v1492 = vsel %vm93, %v1450, 0.0
  %v1493 = vadd.f32 %v1491, %v1492
  %v1494 = vsel %vm93, %v1451, 0.0
  %v1495 = vadd.f32 %v1493, %v1494
  %v1496 = vsel %vm93, %v1452, 0.0
  %v1497 = vadd.f32 %v1495, %v1496
  %v1498 = vsel %vm93, %v1453, 0.0
  %v1499 = vadd.f32 %v1497, %v1498
  %v1500 = vsel %vm93, %v1454, 0.0
  %v1501 = vadd.f32 %v1499, %v1500
  %v1502 = vsel %vm93, %v1455, 0.0
  %v1503 = vadd.f32 %v1501, %v1502
  %1504 = vadd.xlane.f32.xlu0 %v1503
  %v1505 = vpop.xlane.xlu0 %1504
  %vm1506 = vcmp.gt.f32.partialorder %v1488, %v1393
  %vm1507 = vcmp.gt.f32.partialorder %v1505, %v1394
  %v1508 = vsel %vm1506, %v1488, %v1393
  %v1509 = vsel %vm1507, %v1505, %v1394
  %v1510 = vsel %vm1506, 12, %v1395
  %v1511 = vsel %vm1507, 12, %v1396
  %vm1512 = vcmp.eq.s32.totalorder %v10, 13
  %vm1513 = vcmp.eq.s32.totalorder %v11, 13
  %vm1514 = vcmp.eq.s32.totalorder %v12, 13
  %vm1515 = vcmp.eq.s32.totalorder %v13, 13
  %vm1516 = vcmp.eq.s32.totalorder %v14, 13
  %vm1517 = vcmp.eq.s32.totalorder %v15, 13
  %vm1518 = vcmp.eq.s32.totalorder %v16, 13
  %vm1519 = vcmp.eq.s32.totalorder %v17, 13
  %v1520 = vsel %vm1512, 1, 0
  %v1521 = vsel %vm1513, 1, 0
  %v1522 = vsel %vm1514, 1, 0
  %v1523 = vsel %vm1515, 1, 0
  %v1524 = vsel %vm1516, 1, 0
  %v1525 = vsel %vm1517, 1, 0
  %v1526 = vsel %vm1518, 1, 0
  %v1527 = vsel %vm1519, 1, 0
  %v1528 = vcvt.s32.f32 %v1520
  %v1529 = vcvt.s32.f32 %v1521
  %v1530 = vcvt.s32.f32 %v1522
  %v1531 = vcvt.s32.f32 %v1523
  %v1532 = vcvt.s32.f32 %v1524
  %v1533 = vcvt.s32.f32 %v1525
  %v1534 = vcvt.s32.f32 %v1526
  %v1535 = vcvt.s32.f32 %v1527
  %1544 = vst [vmem:[#allocation1] ss:$2 sm:$0xff] %v1528
  %s1545 = scalar_lea.vmem [#allocation1], 16
  %1546 = vst [vmem:[%s1545] ss:$2 sm:$0xff] %v1529
  %s1547 = scalar_lea.vmem [#allocation1], 32
  %1548 = vst [vmem:[%s1547] ss:$2 sm:$0xff] %v1530
  %s1549 = scalar_lea.vmem [#allocation1], 48
  %1550 = vst [vmem:[%s1549] ss:$2 sm:$0xff] %v1531
  %v1551 = vld.sshfl [vmem:[#allocation1] sm:$0xff pattern:$0x75316420]
  %v1552 = vld.sshfl [vmem:[#allocation1 + $0x8] sm:$0xff pattern:$0x75316420]
  %v1553 = vld.sshfl [vmem:[#allocation1 + $0x10] sm:$0xff pattern:$0x75316420]
  %v1554 = vld.sshfl [vmem:[#allocation1 + $0x18] sm:$0xff pattern:$0x75316420]
  %v1555 = vld.sshfl [vmem:[#allocation1 + $0x20] sm:$0xff pattern:$0x75316420]
  %v1556 = vld.sshfl [vmem:[#allocation1 + $0x28] sm:$0xff pattern:$0x75316420]
  %v1557 = vld.sshfl [vmem:[#allocation1 + $0x30] sm:$0xff pattern:$0x75316420]
  %v1558 = vld.sshfl [vmem:[#allocation1 + $0x38] sm:$0xff pattern:$0x75316420]
  %1559 = vst [vmem:[#allocation1] ss:$2 sm:$0xff] %v1532
  %1560 = vst [vmem:[%s1545] ss:$2 sm:$0xff] %v1533
  %1561 = vst [vmem:[%s1547] ss:$2 sm:$0xff] %v1534
  %1562 = vst [vmem:[%s1549] ss:$2 sm:$0xff] %v1535
  %v1563 = vld.sshfl [vmem:[#allocation1] sm:$0xff pattern:$0x75316420]
  %v1564 = vld.sshfl [vmem:[#allocation1 + $0x8] sm:$0xff pattern:$0x75316420]
  %v1565 = vld.sshfl [vmem:[#allocation1 + $0x10] sm:$0xff pattern:$0x75316420]
  %v1566 = vld.sshfl [vmem:[#allocation1 + $0x18] sm:$0xff pattern:$0x75316420]
  %v1567 = vld.sshfl [vmem:[#allocation1 + $0x20] sm:$0xff pattern:$0x75316420]
  %v1568 = vld.sshfl [vmem:[#allocation1 + $0x28] sm:$0xff pattern:$0x75316420]
  %v1569 = vld.sshfl [vmem:[#allocation1 + $0x30] sm:$0xff pattern:$0x75316420]
  %v1570 = vld.sshfl [vmem:[#allocation1 + $0x38] sm:$0xff pattern:$0x75316420]
  %v1587 = vsel %vm93, %v1551, 0.0
  %v1588 = vsel %vm93, %v1552, 0.0
  %v1589 = vadd.f32 %v1587, %v1588
  %v1590 = vsel %vm93, %v1553, 0.0
  %v1591 = vadd.f32 %v1589, %v1590
  %v1592 = vsel %vm93, %v1554, 0.0
  %v1593 = vadd.f32 %v1591, %v1592
  %v1594 = vsel %vm93, %v1555, 0.0
  %v1595 = vadd.f32 %v1593, %v1594
  %v1596 = vsel %vm93, %v1556, 0.0
  %v1597 = vadd.f32 %v1595, %v1596
  %v1598 = vsel %vm93, %v1557, 0.0
  %v1599 = vadd.f32 %v1597, %v1598
  %v1600 = vsel %vm93, %v1558, 0.0
  %v1601 = vadd.f32 %v1599, %v1600
  %1602 = vadd.xlane.f32.xlu0 %v1601
  %v1603 = vpop.xlane.xlu0 %1602
  %v1604 = vsel %vm93, %v1563, 0.0
  %v1605 = vsel %vm93, %v1564, 0.0
  %v1606 = vadd.f32 %v1604, %v1605
  %v1607 = vsel %vm93, %v1565, 0.0
  %v1608 = vadd.f32 %v1606, %v1607
  %v1609 = vsel %vm93, %v1566, 0.0
  %v1610 = vadd.f32 %v1608, %v1609
  %v1611 = vsel %vm93, %v1567, 0.0
  %v1612 = vadd.f32 %v1610, %v1611
  %v1613 = vsel %vm93, %v1568, 0.0
  %v1614 = vadd.f32 %v1612, %v1613
  %v1615 = vsel %vm93, %v1569, 0.0
  %v1616 = vadd.f32 %v1614, %v1615
  %v1617 = vsel %vm93, %v1570, 0.0
  %v1618 = vadd.f32 %v1616, %v1617
  %1619 = vadd.xlane.f32.xlu0 %v1618
  %v1620 = vpop.xlane.xlu0 %1619
  %vm1621 = vcmp.gt.f32.partialorder %v1603, %v1508
  %vm1622 = vcmp.gt.f32.partialorder %v1620, %v1509
  %v1623 = vsel %vm1621, %v1603, %v1508
  %v1624 = vsel %vm1622, %v1620, %v1509
  %v1625 = vsel %vm1621, 13, %v1510
  %v1626 = vsel %vm1622, 13, %v1511
  %vm1627 = vcmp.eq.s32.totalorder %v10, 14
  %vm1628 = vcmp.eq.s32.totalorder %v11, 14
  %vm1629 = vcmp.eq.s32.totalorder %v12, 14
  %vm1630 = vcmp.eq.s32.totalorder %v13, 14
  %vm1631 = vcmp.eq.s32.totalorder %v14, 14
  %vm1632 = vcmp.eq.s32.totalorder %v15, 14
  %vm1633 = vcmp.eq.s32.totalorder %v16, 14
  %vm1634 = vcmp.eq.s32.totalorder %v17, 14
  %v1635 = vsel %vm1627, 1, 0
  %v1636 = vsel %vm1628, 1, 0
  %v1637 = vsel %vm1629, 1, 0
  %v1638 = vsel %vm1630, 1, 0
  %v1639 = vsel %vm1631, 1, 0
  %v1640 = vsel %vm1632, 1, 0
  %v1641 = vsel %vm1633, 1, 0
  %v1642 = vsel %vm1634, 1, 0
  %v1643 = vcvt.s32.f32 %v1635
  %v1644 = vcvt.s32.f32 %v1636
  %v1645 = vcvt.s32.f32 %v1637
  %v1646 = vcvt.s32.f32 %v1638
  %v1647 = vcvt.s32.f32 %v1639
  %v1648 = vcvt.s32.f32 %v1640
  %v1649 = vcvt.s32.f32 %v1641
  %v1650 = vcvt.s32.f32 %v1642
  %1659 = vst [vmem:[#allocation1] ss:$2 sm:$0xff] %v1643
  %s1660 = scalar_lea.vmem [#allocation1], 16
  %1661 = vst [vmem:[%s1660] ss:$2 sm:$0xff] %v1644
  %s1662 = scalar_lea.vmem [#allocation1], 32
  %1663 = vst [vmem:[%s1662] ss:$2 sm:$0xff] %v1645
  %s1664 = scalar_lea.vmem [#allocation1], 48
  %1665 = vst [vmem:[%s1664] ss:$2 sm:$0xff] %v1646
  %v1666 = vld.sshfl [vmem:[#allocation1] sm:$0xff pattern:$0x75316420]
  %v1667 = vld.sshfl [vmem:[#allocation1 + $0x8] sm:$0xff pattern:$0x75316420]
  %v1668 = vld.sshfl [vmem:[#allocation1 + $0x10] sm:$0xff pattern:$0x75316420]
  %v1669 = vld.sshfl [vmem:[#allocation1 + $0x18] sm:$0xff pattern:$0x75316420]
  %v1670 = vld.sshfl [vmem:[#allocation1 + $0x20] sm:$0xff pattern:$0x75316420]
  %v1671 = vld.sshfl [vmem:[#allocation1 + $0x28] sm:$0xff pattern:$0x75316420]
  %v1672 = vld.sshfl [vmem:[#allocation1 + $0x30] sm:$0xff pattern:$0x75316420]
  %v1673 = vld.sshfl [vmem:[#allocation1 + $0x38] sm:$0xff pattern:$0x75316420]
  %1674 = vst [vmem:[#allocation1] ss:$2 sm:$0xff] %v1647
  %1675 = vst [vmem:[%s1660] ss:$2 sm:$0xff] %v1648
  %1676 = vst [vmem:[%s1662] ss:$2 sm:$0xff] %v1649
  %1677 = vst [vmem:[%s1664] ss:$2 sm:$0xff] %v1650
  %v1678 = vld.sshfl [vmem:[#allocation1] sm:$0xff pattern:$0x75316420]
  %v1679 = vld.sshfl [vmem:[#allocation1 + $0x8] sm:$0xff pattern:$0x75316420]
  %v1680 = vld.sshfl [vmem:[#allocation1 + $0x10] sm:$0xff pattern:$0x75316420]
  %v1681 = vld.sshfl [vmem:[#allocation1 + $0x18] sm:$0xff pattern:$0x75316420]
  %v1682 = vld.sshfl [vmem:[#allocation1 + $0x20] sm:$0xff pattern:$0x75316420]
  %v1683 = vld.sshfl [vmem:[#allocation1 + $0x28] sm:$0xff pattern:$0x75316420]
  %v1684 = vld.sshfl [vmem:[#allocation1 + $0x30] sm:$0xff pattern:$0x75316420]
  %v1685 = vld.sshfl [vmem:[#allocation1 + $0x38] sm:$0xff pattern:$0x75316420]
  %v1702 = vsel %vm93, %v1666, 0.0
  %v1703 = vsel %vm93, %v1667, 0.0
  %v1704 = vadd.f32 %v1702, %v1703
  %v1705 = vsel %vm93, %v1668, 0.0
  %v1706 = vadd.f32 %v1704, %v1705
  %v1707 = vsel %vm93, %v1669, 0.0
  %v1708 = vadd.f32 %v1706, %v1707
  %v1709 = vsel %vm93, %v1670, 0.0
  %v1710 = vadd.f32 %v1708, %v1709
  %v1711 = vsel %vm93, %v1671, 0.0
  %v1712 = vadd.f32 %v1710, %v1711
  %v1713 = vsel %vm93, %v1672, 0.0
  %v1714 = vadd.f32 %v1712, %v1713
  %v1715 = vsel %vm93, %v1673, 0.0
  %v1716 = vadd.f32 %v1714, %v1715
  %1717 = vadd.xlane.f32.xlu0 %v1716
  %v1718 = vpop.xlane.xlu0 %1717
  %v1719 = vsel %vm93, %v1678, 0.0
  %v1720 = vsel %vm93, %v1679, 0.0
  %v1721 = vadd.f32 %v1719, %v1720
  %v1722 = vsel %vm93, %v1680, 0.0
  %v1723 = vadd.f32 %v1721, %v1722
  %v1724 = vsel %vm93, %v1681, 0.0
  %v1725 = vadd.f32 %v1723, %v1724
  %v1726 = vsel %vm93, %v1682, 0.0
  %v1727 = vadd.f32 %v1725, %v1726
  %v1728 = vsel %vm93, %v1683, 0.0
  %v1729 = vadd.f32 %v1727, %v1728
  %v1730 = vsel %vm93, %v1684, 0.0
  %v1731 = vadd.f32 %v1729, %v1730
  %v1732 = vsel %vm93, %v1685, 0.0
  %v1733 = vadd.f32 %v1731, %v1732
  %1734 = vadd.xlane.f32.xlu0 %v1733
  %v1735 = vpop.xlane.xlu0 %1734
  %vm1736 = vcmp.gt.f32.partialorder %v1718, %v1623
  %vm1737 = vcmp.gt.f32.partialorder %v1735, %v1624
  %v1738 = vsel %vm1736, %v1718, %v1623
  %v1739 = vsel %vm1737, %v1735, %v1624
  %v1740 = vsel %vm1736, 14, %v1625
  %v1741 = vsel %vm1737, 14, %v1626
  %vm1742 = vcmp.eq.s32.totalorder %v10, 15
  %vm1743 = vcmp.eq.s32.totalorder %v11, 15
  %vm1744 = vcmp.eq.s32.totalorder %v12, 15
  %vm1745 = vcmp.eq.s32.totalorder %v13, 15
  %vm1746 = vcmp.eq.s32.totalorder %v14, 15
  %vm1747 = vcmp.eq.s32.totalorder %v15, 15
  %vm1748 = vcmp.eq.s32.totalorder %v16, 15
  %vm1749 = vcmp.eq.s32.totalorder %v17, 15
  %v1750 = vsel %vm1742, 1, 0
  %v1751 = vsel %vm1743, 1, 0
  %v1752 = vsel %vm1744, 1, 0
  %v1753 = vsel %vm1745, 1, 0
  %v1754 = vsel %vm1746, 1, 0
  %v1755 = vsel %vm1747, 1, 0
  %v1756 = vsel %vm1748, 1, 0
  %v1757 = vsel %vm1749, 1, 0
  %v1758 = vcvt.s32.f32 %v1750
  %v1759 = vcvt.s32.f32 %v1751
  %v1760 = vcvt.s32.f32 %v1752
  %v1761 = vcvt.s32.f32 %v1753
  %v1762 = vcvt.s32.f32 %v1754
  %v1763 = vcvt.s32.f32 %v1755
  %v1764 = vcvt.s32.f32 %v1756
  %v1765 = vcvt.s32.f32 %v1757
  %1774 = vst [vmem:[#allocation1] ss:$2 sm:$0xff] %v1758
  %s1775 = scalar_lea.vmem [#allocation1], 16
  %1776 = vst [vmem:[%s1775] ss:$2 sm:$0xff] %v1759
  %s1777 = scalar_lea.vmem [#allocation1], 32
  %1778 = vst [vmem:[%s1777] ss:$2 sm:$0xff] %v1760
  %s1779 = scalar_lea.vmem [#allocation1], 48
  %1780 = vst [vmem:[%s1779] ss:$2 sm:$0xff] %v1761
  %v1781 = vld.sshfl [vmem:[#allocation1] sm:$0xff pattern:$0x75316420]
  %v1782 = vld.sshfl [vmem:[#allocation1 + $0x8] sm:$0xff pattern:$0x75316420]
  %v1783 = vld.sshfl [vmem:[#allocation1 + $0x10] sm:$0xff pattern:$0x75316420]
  %v1784 = vld.sshfl [vmem:[#allocation1 + $0x18] sm:$0xff pattern:$0x75316420]
  %v1785 = vld.sshfl [vmem:[#allocation1 + $0x20] sm:$0xff pattern:$0x75316420]
  %v1786 = vld.sshfl [vmem:[#allocation1 + $0x28] sm:$0xff pattern:$0x75316420]
  %v1787 = vld.sshfl [vmem:[#allocation1 + $0x30] sm:$0xff pattern:$0x75316420]
  %v1788 = vld.sshfl [vmem:[#allocation1 + $0x38] sm:$0xff pattern:$0x75316420]
  %1789 = vst [vmem:[#allocation1] ss:$2 sm:$0xff] %v1762
  %1790 = vst [vmem:[%s1775] ss:$2 sm:$0xff] %v1763
  %1791 = vst [vmem:[%s1777] ss:$2 sm:$0xff] %v1764
  %1792 = vst [vmem:[%s1779] ss:$2 sm:$0xff] %v1765
  %v1793 = vld.sshfl [vmem:[#allocation1] sm:$0xff pattern:$0x75316420]
  %v1794 = vld.sshfl [vmem:[#allocation1 + $0x8] sm:$0xff pattern:$0x75316420]
  %v1795 = vld.sshfl [vmem:[#allocation1 + $0x10] sm:$0xff pattern:$0x75316420]
  %v1796 = vld.sshfl [vmem:[#allocation1 + $0x18] sm:$0xff pattern:$0x75316420]
  %v1797 = vld.sshfl [vmem:[#allocation1 + $0x20] sm:$0xff pattern:$0x75316420]
  %v1798 = vld.sshfl [vmem:[#allocation1 + $0x28] sm:$0xff pattern:$0x75316420]
  %v1799 = vld.sshfl [vmem:[#allocation1 + $0x30] sm:$0xff pattern:$0x75316420]
  %v1800 = vld.sshfl [vmem:[#allocation1 + $0x38] sm:$0xff pattern:$0x75316420]
  %v1817 = vsel %vm93, %v1781, 0.0
  %v1818 = vsel %vm93, %v1782, 0.0
  %v1819 = vadd.f32 %v1817, %v1818
  %v1820 = vsel %vm93, %v1783, 0.0
  %v1821 = vadd.f32 %v1819, %v1820
  %v1822 = vsel %vm93, %v1784, 0.0
  %v1823 = vadd.f32 %v1821, %v1822
  %v1824 = vsel %vm93, %v1785, 0.0
  %v1825 = vadd.f32 %v1823, %v1824
  %v1826 = vsel %vm93, %v1786, 0.0
  %v1827 = vadd.f32 %v1825, %v1826
  %v1828 = vsel %vm93, %v1787, 0.0
  %v1829 = vadd.f32 %v1827, %v1828
  %v1830 = vsel %vm93, %v1788, 0.0
  %v1831 = vadd.f32 %v1829, %v1830
  %1832 = vadd.xlane.f32.xlu0 %v1831
  %v1833 = vpop.xlane.xlu0 %1832
  %v1834 = vsel %vm93, %v1793, 0.0
  %v1835 = vsel %vm93, %v1794, 0.0
  %v1836 = vadd.f32 %v1834, %v1835
  %v1837 = vsel %vm93, %v1795, 0.0
  %v1838 = vadd.f32 %v1836, %v1837
  %v1839 = vsel %vm93, %v1796, 0.0
  %v1840 = vadd.f32 %v1838, %v1839
  %v1841 = vsel %vm93, %v1797, 0.0
  %v1842 = vadd.f32 %v1840, %v1841
  %v1843 = vsel %vm93, %v1798, 0.0
  %v1844 = vadd.f32 %v1842, %v1843
  %v1845 = vsel %vm93, %v1799, 0.0
  %v1846 = vadd.f32 %v1844, %v1845
  %v1847 = vsel %vm93, %v1800, 0.0
  %v1848 = vadd.f32 %v1846, %v1847
  %1849 = vadd.xlane.f32.xlu0 %v1848
  %v1850 = vpop.xlane.xlu0 %1849
  %vm1851 = vcmp.gt.f32.partialorder %v1833, %v1738
  %vm1852 = vcmp.gt.f32.partialorder %v1850, %v1739
  %v1853 = vsel %vm1851, %v1833, %v1738
  %v1854 = vsel %vm1852, %v1850, %v1739
  %v1855 = vsel %vm1851, 15, %v1740
  %v1856 = vsel %vm1852, 15, %v1741
  %vm1857 = vcmp.eq.s32.totalorder %v10, 16
  %vm1858 = vcmp.eq.s32.totalorder %v11, 16
  %vm1859 = vcmp.eq.s32.totalorder %v12, 16
  %vm1860 = vcmp.eq.s32.totalorder %v13, 16
  %vm1861 = vcmp.eq.s32.totalorder %v14, 16
  %vm1862 = vcmp.eq.s32.totalorder %v15, 16
  %vm1863 = vcmp.eq.s32.totalorder %v16, 16
  %vm1864 = vcmp.eq.s32.totalorder %v17, 16
  %v1865 = vsel %vm1857, 1, 0
  %v1866 = vsel %vm1858, 1, 0
  %v1867 = vsel %vm1859, 1, 0
  %v1868 = vsel %vm1860, 1, 0
  %v1869 = vsel %vm1861, 1, 0
  %v1870 = vsel %vm1862, 1, 0
  %v1871 = vsel %vm1863, 1, 0
  %v1872 = vsel %vm1864, 1, 0
  %v1873 = vcvt.s32.f32 %v1865
  %v1874 = vcvt.s32.f32 %v1866
  %v1875 = vcvt.s32.f32 %v1867
  %v1876 = vcvt.s32.f32 %v1868
  %v1877 = vcvt.s32.f32 %v1869
  %v1878 = vcvt.s32.f32 %v1870
  %v1879 = vcvt.s32.f32 %v1871
  %v1880 = vcvt.s32.f32 %v1872
  %1889 = vst [vmem:[#allocation1] ss:$2 sm:$0xff] %v1873
  %s1890 = scalar_lea.vmem [#allocation1], 16
  %1891 = vst [vmem:[%s1890] ss:$2 sm:$0xff] %v1874
  %s1892 = scalar_lea.vmem [#allocation1], 32
  %1893 = vst [vmem:[%s1892] ss:$2 sm:$0xff] %v1875
  %s1894 = scalar_lea.vmem [#allocation1], 48
  %1895 = vst [vmem:[%s1894] ss:$2 sm:$0xff] %v1876
  %v1896 = vld.sshfl [vmem:[#allocation1] sm:$0xff pattern:$0x75316420]
  %v1897 = vld.sshfl [vmem:[#allocation1 + $0x8] sm:$0xff pattern:$0x75316420]
  %v1898 = vld.sshfl [vmem:[#allocation1 + $0x10] sm:$0xff pattern:$0x75316420]
  %v1899 = vld.sshfl [vmem:[#allocation1 + $0x18] sm:$0xff pattern:$0x75316420]
  %v1900 = vld.sshfl [vmem:[#allocation1 + $0x20] sm:$0xff pattern:$0x75316420]
  %v1901 = vld.sshfl [vmem:[#allocation1 + $0x28] sm:$0xff pattern:$0x75316420]
  %v1902 = vld.sshfl [vmem:[#allocation1 + $0x30] sm:$0xff pattern:$0x75316420]
  %v1903 = vld.sshfl [vmem:[#allocation1 + $0x38] sm:$0xff pattern:$0x75316420]
  %1904 = vst [vmem:[#allocation1] ss:$2 sm:$0xff] %v1877
  %1905 = vst [vmem:[%s1890] ss:$2 sm:$0xff] %v1878
  %1906 = vst [vmem:[%s1892] ss:$2 sm:$0xff] %v1879
  %1907 = vst [vmem:[%s1894] ss:$2 sm:$0xff] %v1880
  %v1908 = vld.sshfl [vmem:[#allocation1] sm:$0xff pattern:$0x75316420]
  %v1909 = vld.sshfl [vmem:[#allocation1 + $0x8] sm:$0xff pattern:$0x75316420]
  %v1910 = vld.sshfl [vmem:[#allocation1 + $0x10] sm:$0xff pattern:$0x75316420]
  %v1911 = vld.sshfl [vmem:[#allocation1 + $0x18] sm:$0xff pattern:$0x75316420]
  %v1912 = vld.sshfl [vmem:[#allocation1 + $0x20] sm:$0xff pattern:$0x75316420]
  %v1913 = vld.sshfl [vmem:[#allocation1 + $0x28] sm:$0xff pattern:$0x75316420]
  %v1914 = vld.sshfl [vmem:[#allocation1 + $0x30] sm:$0xff pattern:$0x75316420]
  %v1915 = vld.sshfl [vmem:[#allocation1 + $0x38] sm:$0xff pattern:$0x75316420]
  %v1932 = vsel %vm93, %v1896, 0.0
  %v1933 = vsel %vm93, %v1897, 0.0
  %v1934 = vadd.f32 %v1932, %v1933
  %v1935 = vsel %vm93, %v1898, 0.0
  %v1936 = vadd.f32 %v1934, %v1935
  %v1937 = vsel %vm93, %v1899, 0.0
  %v1938 = vadd.f32 %v1936, %v1937
  %v1939 = vsel %vm93, %v1900, 0.0
  %v1940 = vadd.f32 %v1938, %v1939
  %v1941 = vsel %vm93, %v1901, 0.0
  %v1942 = vadd.f32 %v1940, %v1941
  %v1943 = vsel %vm93, %v1902, 0.0
  %v1944 = vadd.f32 %v1942, %v1943
  %v1945 = vsel %vm93, %v1903, 0.0
  %v1946 = vadd.f32 %v1944, %v1945
  %1947 = vadd.xlane.f32.xlu0 %v1946
  %v1948 = vpop.xlane.xlu0 %1947
  %v1949 = vsel %vm93, %v1908, 0.0
  %v1950 = vsel %vm93, %v1909, 0.0
  %v1951 = vadd.f32 %v1949, %v1950
  %v1952 = vsel %vm93, %v1910, 0.0
  %v1953 = vadd.f32 %v1951, %v1952
  %v1954 = vsel %vm93, %v1911, 0.0
  %v1955 = vadd.f32 %v1953, %v1954
  %v1956 = vsel %vm93, %v1912, 0.0
  %v1957 = vadd.f32 %v1955, %v1956
  %v1958 = vsel %vm93, %v1913, 0.0
  %v1959 = vadd.f32 %v1957, %v1958
  %v1960 = vsel %vm93, %v1914, 0.0
  %v1961 = vadd.f32 %v1959, %v1960
  %v1962 = vsel %vm93, %v1915, 0.0
  %v1963 = vadd.f32 %v1961, %v1962
  %1964 = vadd.xlane.f32.xlu0 %v1963
  %v1965 = vpop.xlane.xlu0 %1964
  %vm1966 = vcmp.gt.f32.partialorder %v1948, %v1853
  %vm1967 = vcmp.gt.f32.partialorder %v1965, %v1854
  %v1968 = vsel %vm1966, %v1948, %v1853
  %v1969 = vsel %vm1967, %v1965, %v1854
  %v1970 = vsel %vm1966, 16, %v1855
  %v1971 = vsel %vm1967, 16, %v1856
  %vm1972 = vcmp.eq.s32.totalorder %v10, 17
  %vm1973 = vcmp.eq.s32.totalorder %v11, 17
  %vm1974 = vcmp.eq.s32.totalorder %v12, 17
  %vm1975 = vcmp.eq.s32.totalorder %v13, 17
  %vm1976 = vcmp.eq.s32.totalorder %v14, 17
  %vm1977 = vcmp.eq.s32.totalorder %v15, 17
  %vm1978 = vcmp.eq.s32.totalorder %v16, 17
  %vm1979 = vcmp.eq.s32.totalorder %v17, 17
  %v1980 = vsel %vm1972, 1, 0
  %v1981 = vsel %vm1973, 1, 0
  %v1982 = vsel %vm1974, 1, 0
  %v1983 = vsel %vm1975, 1, 0
  %v1984 = vsel %vm1976, 1, 0
  %v1985 = vsel %vm1977, 1, 0
  %v1986 = vsel %vm1978, 1, 0
  %v1987 = vsel %vm1979, 1, 0
  %v1988 = vcvt.s32.f32 %v1980
  %v1989 = vcvt.s32.f32 %v1981
  %v1990 = vcvt.s32.f32 %v1982
  %v1991 = vcvt.s32.f32 %v1983
  %v1992 = vcvt.s32.f32 %v1984
  %v1993 = vcvt.s32.f32 %v1985
  %v1994 = vcvt.s32.f32 %v1986
  %v1995 = vcvt.s32.f32 %v1987
  %2004 = vst [vmem:[#allocation1] ss:$2 sm:$0xff] %v1988
  %s2005 = scalar_lea.vmem [#allocation1], 16
  %2006 = vst [vmem:[%s2005] ss:$2 sm:$0xff] %v1989
  %s2007 = scalar_lea.vmem [#allocation1], 32
  %2008 = vst [vmem:[%s2007] ss:$2 sm:$0xff] %v1990
  %s2009 = scalar_lea.vmem [#allocation1], 48
  %2010 = vst [vmem:[%s2009] ss:$2 sm:$0xff] %v1991
  %v2011 = vld.sshfl [vmem:[#allocation1] sm:$0xff pattern:$0x75316420]
  %v2012 = vld.sshfl [vmem:[#allocation1 + $0x8] sm:$0xff pattern:$0x75316420]
  %v2013 = vld.sshfl [vmem:[#allocation1 + $0x10] sm:$0xff pattern:$0x75316420]
  %v2014 = vld.sshfl [vmem:[#allocation1 + $0x18] sm:$0xff pattern:$0x75316420]
  %v2015 = vld.sshfl [vmem:[#allocation1 + $0x20] sm:$0xff pattern:$0x75316420]
  %v2016 = vld.sshfl [vmem:[#allocation1 + $0x28] sm:$0xff pattern:$0x75316420]
  %v2017 = vld.sshfl [vmem:[#allocation1 + $0x30] sm:$0xff pattern:$0x75316420]
  %v2018 = vld.sshfl [vmem:[#allocation1 + $0x38] sm:$0xff pattern:$0x75316420]
  %2019 = vst [vmem:[#allocation1] ss:$2 sm:$0xff] %v1992
  %2020 = vst [vmem:[%s2005] ss:$2 sm:$0xff] %v1993
  %2021 = vst [vmem:[%s2007] ss:$2 sm:$0xff] %v1994
  %2022 = vst [vmem:[%s2009] ss:$2 sm:$0xff] %v1995
  %v2023 = vld.sshfl [vmem:[#allocation1] sm:$0xff pattern:$0x75316420]
  %v2024 = vld.sshfl [vmem:[#allocation1 + $0x8] sm:$0xff pattern:$0x75316420]
  %v2025 = vld.sshfl [vmem:[#allocation1 + $0x10] sm:$0xff pattern:$0x75316420]
  %v2026 = vld.sshfl [vmem:[#allocation1 + $0x18] sm:$0xff pattern:$0x75316420]
  %v2027 = vld.sshfl [vmem:[#allocation1 + $0x20] sm:$0xff pattern:$0x75316420]
  %v2028 = vld.sshfl [vmem:[#allocation1 + $0x28] sm:$0xff pattern:$0x75316420]
  %v2029 = vld.sshfl [vmem:[#allocation1 + $0x30] sm:$0xff pattern:$0x75316420]
  %v2030 = vld.sshfl [vmem:[#allocation1 + $0x38] sm:$0xff pattern:$0x75316420]
  %v2047 = vsel %vm93, %v2011, 0.0
  %v2048 = vsel %vm93, %v2012, 0.0
  %v2049 = vadd.f32 %v2047, %v2048
  %v2050 = vsel %vm93, %v2013, 0.0
  %v2051 = vadd.f32 %v2049, %v2050
  %v2052 = vsel %vm93, %v2014, 0.0
  %v2053 = vadd.f32 %v2051, %v2052
  %v2054 = vsel %vm93, %v2015, 0.0
  %v2055 = vadd.f32 %v2053, %v2054
  %v2056 = vsel %vm93, %v2016, 0.0
  %v2057 = vadd.f32 %v2055, %v2056
  %v2058 = vsel %vm93, %v2017, 0.0
  %v2059 = vadd.f32 %v2057, %v2058
  %v2060 = vsel %vm93, %v2018, 0.0
  %v2061 = vadd.f32 %v2059, %v2060
  %2062 = vadd.xlane.f32.xlu0 %v2061
  %v2063 = vpop.xlane.xlu0 %2062
  %v2064 = vsel %vm93, %v2023, 0.0
  %v2065 = vsel %vm93, %v2024, 0.0
  %v2066 = vadd.f32 %v2064, %v2065
  %v2067 = vsel %vm93, %v2025, 0.0
  %v2068 = vadd.f32 %v2066, %v2067
  %v2069 = vsel %vm93, %v2026, 0.0
  %v2070 = vadd.f32 %v2068, %v2069
  %v2071 = vsel %vm93, %v2027, 0.0
  %v2072 = vadd.f32 %v2070, %v2071
  %v2073 = vsel %vm93, %v2028, 0.0
  %v2074 = vadd.f32 %v2072, %v2073
  %v2075 = vsel %vm93, %v2029, 0.0
  %v2076 = vadd.f32 %v2074, %v2075
  %v2077 = vsel %vm93, %v2030, 0.0
  %v2078 = vadd.f32 %v2076, %v2077
  %2079 = vadd.xlane.f32.xlu0 %v2078
  %v2080 = vpop.xlane.xlu0 %2079
  %vm2081 = vcmp.gt.f32.partialorder %v2063, %v1968
  %vm2082 = vcmp.gt.f32.partialorder %v2080, %v1969
  %v2083 = vsel %vm2081, %v2063, %v1968
  %v2084 = vsel %vm2082, %v2080, %v1969
  %v2085 = vsel %vm2081, 17, %v1970
  %v2086 = vsel %vm2082, 17, %v1971
  %vm2087 = vcmp.eq.s32.totalorder %v10, 18
  %vm2088 = vcmp.eq.s32.totalorder %v11, 18
  %vm2089 = vcmp.eq.s32.totalorder %v12, 18
  %vm2090 = vcmp.eq.s32.totalorder %v13, 18
  %vm2091 = vcmp.eq.s32.totalorder %v14, 18
  %vm2092 = vcmp.eq.s32.totalorder %v15, 18
  %vm2093 = vcmp.eq.s32.totalorder %v16, 18
  %vm2094 = vcmp.eq.s32.totalorder %v17, 18
  %v2095 = vsel %vm2087, 1, 0
  %v2096 = vsel %vm2088, 1, 0
  %v2097 = vsel %vm2089, 1, 0
  %v2098 = vsel %vm2090, 1, 0
  %v2099 = vsel %vm2091, 1, 0
  %v2100 = vsel %vm2092, 1, 0
  %v2101 = vsel %vm2093, 1, 0
  %v2102 = vsel %vm2094, 1, 0
  %v2103 = vcvt.s32.f32 %v2095
  %v2104 = vcvt.s32.f32 %v2096
  %v2105 = vcvt.s32.f32 %v2097
  %v2106 = vcvt.s32.f32 %v2098
  %v2107 = vcvt.s32.f32 %v2099
  %v2108 = vcvt.s32.f32 %v2100
  %v2109 = vcvt.s32.f32 %v2101
  %v2110 = vcvt.s32.f32 %v2102
  %2119 = vst [vmem:[#allocation1] ss:$2 sm:$0xff] %v2103
  %s2120 = scalar_lea.vmem [#allocation1], 16
  %2121 = vst [vmem:[%s2120] ss:$2 sm:$0xff] %v2104
  %s2122 = scalar_lea.vmem [#allocation1], 32
  %2123 = vst [vmem:[%s2122] ss:$2 sm:$0xff] %v2105
  %s2124 = scalar_lea.vmem [#allocation1], 48
  %2125 = vst [vmem:[%s2124] ss:$2 sm:$0xff] %v2106
  %v2126 = vld.sshfl [vmem:[#allocation1] sm:$0xff pattern:$0x75316420]
  %v2127 = vld.sshfl [vmem:[#allocation1 + $0x8] sm:$0xff pattern:$0x75316420]
  %v2128 = vld.sshfl [vmem:[#allocation1 + $0x10] sm:$0xff pattern:$0x75316420]
  %v2129 = vld.sshfl [vmem:[#allocation1 + $0x18] sm:$0xff pattern:$0x75316420]
  %v2130 = vld.sshfl [vmem:[#allocation1 + $0x20] sm:$0xff pattern:$0x75316420]
  %v2131 = vld.sshfl [vmem:[#allocation1 + $0x28] sm:$0xff pattern:$0x75316420]
  %v2132 = vld.sshfl [vmem:[#allocation1 + $0x30] sm:$0xff pattern:$0x75316420]
  %v2133 = vld.sshfl [vmem:[#allocation1 + $0x38] sm:$0xff pattern:$0x75316420]
  %2134 = vst [vmem:[#allocation1] ss:$2 sm:$0xff] %v2107
  %2135 = vst [vmem:[%s2120] ss:$2 sm:$0xff] %v2108
  %2136 = vst [vmem:[%s2122] ss:$2 sm:$0xff] %v2109
  %2137 = vst [vmem:[%s2124] ss:$2 sm:$0xff] %v2110
  %v2138 = vld.sshfl [vmem:[#allocation1] sm:$0xff pattern:$0x75316420]
  %v2139 = vld.sshfl [vmem:[#allocation1 + $0x8] sm:$0xff pattern:$0x75316420]
  %v2140 = vld.sshfl [vmem:[#allocation1 + $0x10] sm:$0xff pattern:$0x75316420]
  %v2141 = vld.sshfl [vmem:[#allocation1 + $0x18] sm:$0xff pattern:$0x75316420]
  %v2142 = vld.sshfl [vmem:[#allocation1 + $0x20] sm:$0xff pattern:$0x75316420]
  %v2143 = vld.sshfl [vmem:[#allocation1 + $0x28] sm:$0xff pattern:$0x75316420]
  %v2144 = vld.sshfl [vmem:[#allocation1 + $0x30] sm:$0xff pattern:$0x75316420]
  %v2145 = vld.sshfl [vmem:[#allocation1 + $0x38] sm:$0xff pattern:$0x75316420]
  %v2162 = vsel %vm93, %v2126, 0.0
  %v2163 = vsel %vm93, %v2127, 0.0
  %v2164 = vadd.f32 %v2162, %v2163
  %v2165 = vsel %vm93, %v2128, 0.0
  %v2166 = vadd.f32 %v2164, %v2165
  %v2167 = vsel %vm93, %v2129, 0.0
  %v2168 = vadd.f32 %v2166, %v2167
  %v2169 = vsel %vm93, %v2130, 0.0
  %v2170 = vadd.f32 %v2168, %v2169
  %v2171 = vsel %vm93, %v2131, 0.0
  %v2172 = vadd.f32 %v2170, %v2171
  %v2173 = vsel %vm93, %v2132, 0.0
  %v2174 = vadd.f32 %v2172, %v2173
  %v2175 = vsel %vm93, %v2133, 0.0
  %v2176 = vadd.f32 %v2174, %v2175
  %2177 = vadd.xlane.f32.xlu0 %v2176
  %v2178 = vpop.xlane.xlu0 %2177
  %v2179 = vsel %vm93, %v2138, 0.0
  %v2180 = vsel %vm93, %v2139, 0.0
  %v2181 = vadd.f32 %v2179, %v2180
  %v2182 = vsel %vm93, %v2140, 0.0
  %v2183 = vadd.f32 %v2181, %v2182
  %v2184 = vsel %vm93, %v2141, 0.0
  %v2185 = vadd.f32 %v2183, %v2184
  %v2186 = vsel %vm93, %v2142, 0.0
  %v2187 = vadd.f32 %v2185, %v2186
  %v2188 = vsel %vm93, %v2143, 0.0
  %v2189 = vadd.f32 %v2187, %v2188
  %v2190 = vsel %vm93, %v2144, 0.0
  %v2191 = vadd.f32 %v2189, %v2190
  %v2192 = vsel %vm93, %v2145, 0.0
  %v2193 = vadd.f32 %v2191, %v2192
  %2194 = vadd.xlane.f32.xlu0 %v2193
  %v2195 = vpop.xlane.xlu0 %2194
  %vm2196 = vcmp.gt.f32.partialorder %v2178, %v2083
  %vm2197 = vcmp.gt.f32.partialorder %v2195, %v2084
  %v2198 = vsel %vm2196, %v2178, %v2083
  %v2199 = vsel %vm2197, %v2195, %v2084
  %v2200 = vsel %vm2196, 18, %v2085
  %v2201 = vsel %vm2197, 18, %v2086
  %vm2202 = vcmp.eq.s32.totalorder %v10, 19
  %vm2203 = vcmp.eq.s32.totalorder %v11, 19
  %vm2204 = vcmp.eq.s32.totalorder %v12, 19
  %vm2205 = vcmp.eq.s32.totalorder %v13, 19
  %vm2206 = vcmp.eq.s32.totalorder %v14, 19
  %vm2207 = vcmp.eq.s32.totalorder %v15, 19
  %vm2208 = vcmp.eq.s32.totalorder %v16, 19
  %vm2209 = vcmp.eq.s32.totalorder %v17, 19
  %v2210 = vsel %vm2202, 1, 0
  %v2211 = vsel %vm2203, 1, 0
  %v2212 = vsel %vm2204, 1, 0
  %v2213 = vsel %vm2205, 1, 0
  %v2214 = vsel %vm2206, 1, 0
  %v2215 = vsel %vm2207, 1, 0
  %v2216 = vsel %vm2208, 1, 0
  %v2217 = vsel %vm2209, 1, 0
  %v2218 = vcvt.s32.f32 %v2210
  %v2219 = vcvt.s32.f32 %v2211
  %v2220 = vcvt.s32.f32 %v2212
  %v2221 = vcvt.s32.f32 %v2213
  %v2222 = vcvt.s32.f32 %v2214
  %v2223 = vcvt.s32.f32 %v2215
  %v2224 = vcvt.s32.f32 %v2216
  %v2225 = vcvt.s32.f32 %v2217
  %2234 = vst [vmem:[#allocation1] ss:$2 sm:$0xff] %v2218
  %s2235 = scalar_lea.vmem [#allocation1], 16
  %2236 = vst [vmem:[%s2235] ss:$2 sm:$0xff] %v2219
  %s2237 = scalar_lea.vmem [#allocation1], 32
  %2238 = vst [vmem:[%s2237] ss:$2 sm:$0xff] %v2220
  %s2239 = scalar_lea.vmem [#allocation1], 48
  %2240 = vst [vmem:[%s2239] ss:$2 sm:$0xff] %v2221
  %v2241 = vld.sshfl [vmem:[#allocation1] sm:$0xff pattern:$0x75316420]
  %v2242 = vld.sshfl [vmem:[#allocation1 + $0x8] sm:$0xff pattern:$0x75316420]
  %v2243 = vld.sshfl [vmem:[#allocation1 + $0x10] sm:$0xff pattern:$0x75316420]
  %v2244 = vld.sshfl [vmem:[#allocation1 + $0x18] sm:$0xff pattern:$0x75316420]
  %v2245 = vld.sshfl [vmem:[#allocation1 + $0x20] sm:$0xff pattern:$0x75316420]
  %v2246 = vld.sshfl [vmem:[#allocation1 + $0x28] sm:$0xff pattern:$0x75316420]
  %v2247 = vld.sshfl [vmem:[#allocation1 + $0x30] sm:$0xff pattern:$0x75316420]
  %v2248 = vld.sshfl [vmem:[#allocation1 + $0x38] sm:$0xff pattern:$0x75316420]
  %2249 = vst [vmem:[#allocation1] ss:$2 sm:$0xff] %v2222
  %2250 = vst [vmem:[%s2235] ss:$2 sm:$0xff] %v2223
  %2251 = vst [vmem:[%s2237] ss:$2 sm:$0xff] %v2224
  %2252 = vst [vmem:[%s2239] ss:$2 sm:$0xff] %v2225
  %v2253 = vld.sshfl [vmem:[#allocation1] sm:$0xff pattern:$0x75316420]
  %v2254 = vld.sshfl [vmem:[#allocation1 + $0x8] sm:$0xff pattern:$0x75316420]
  %v2255 = vld.sshfl [vmem:[#allocation1 + $0x10] sm:$0xff pattern:$0x75316420]
  %v2256 = vld.sshfl [vmem:[#allocation1 + $0x18] sm:$0xff pattern:$0x75316420]
  %v2257 = vld.sshfl [vmem:[#allocation1 + $0x20] sm:$0xff pattern:$0x75316420]
  %v2258 = vld.sshfl [vmem:[#allocation1 + $0x28] sm:$0xff pattern:$0x75316420]
  %v2259 = vld.sshfl [vmem:[#allocation1 + $0x30] sm:$0xff pattern:$0x75316420]
  %v2260 = vld.sshfl [vmem:[#allocation1 + $0x38] sm:$0xff pattern:$0x75316420]
  %v2277 = vsel %vm93, %v2241, 0.0
  %v2278 = vsel %vm93, %v2242, 0.0
  %v2279 = vadd.f32 %v2277, %v2278
  %v2280 = vsel %vm93, %v2243, 0.0
  %v2281 = vadd.f32 %v2279, %v2280
  %v2282 = vsel %vm93, %v2244, 0.0
  %v2283 = vadd.f32 %v2281, %v2282
  %v2284 = vsel %vm93, %v2245, 0.0
  %v2285 = vadd.f32 %v2283, %v2284
  %v2286 = vsel %vm93, %v2246, 0.0
  %v2287 = vadd.f32 %v2285, %v2286
  %v2288 = vsel %vm93, %v2247, 0.0
  %v2289 = vadd.f32 %v2287, %v2288
  %v2290 = vsel %vm93, %v2248, 0.0
  %v2291 = vadd.f32 %v2289, %v2290
  %2292 = vadd.xlane.f32.xlu0 %v2291
  %v2293 = vpop.xlane.xlu0 %2292
  %v2294 = vsel %vm93, %v2253, 0.0
  %v2295 = vsel %vm93, %v2254, 0.0
  %v2296 = vadd.f32 %v2294, %v2295
  %v2297 = vsel %vm93, %v2255, 0.0
  %v2298 = vadd.f32 %v2296, %v2297
  %v2299 = vsel %vm93, %v2256, 0.0
  %v2300 = vadd.f32 %v2298, %v2299
  %v2301 = vsel %vm93, %v2257, 0.0
  %v2302 = vadd.f32 %v2300, %v2301
  %v2303 = vsel %vm93, %v2258, 0.0
  %v2304 = vadd.f32 %v2302, %v2303
  %v2305 = vsel %vm93, %v2259, 0.0
  %v2306 = vadd.f32 %v2304, %v2305
  %v2307 = vsel %vm93, %v2260, 0.0
  %v2308 = vadd.f32 %v2306, %v2307
  %2309 = vadd.xlane.f32.xlu0 %v2308
  %v2310 = vpop.xlane.xlu0 %2309
  %vm2311 = vcmp.gt.f32.partialorder %v2293, %v2198
  %vm2312 = vcmp.gt.f32.partialorder %v2310, %v2199
  %v2313 = vsel %vm2311, %v2293, %v2198
  %v2314 = vsel %vm2312, %v2310, %v2199
  %v2315 = vsel %vm2311, 19, %v2200
  %v2316 = vsel %vm2312, 19, %v2201
  %vm2317 = vcmp.eq.s32.totalorder %v10, 20
  %vm2318 = vcmp.eq.s32.totalorder %v11, 20
  %vm2319 = vcmp.eq.s32.totalorder %v12, 20
  %vm2320 = vcmp.eq.s32.totalorder %v13, 20
  %vm2321 = vcmp.eq.s32.totalorder %v14, 20
  %vm2322 = vcmp.eq.s32.totalorder %v15, 20
  %vm2323 = vcmp.eq.s32.totalorder %v16, 20
  %vm2324 = vcmp.eq.s32.totalorder %v17, 20
  %v2325 = vsel %vm2317, 1, 0
  %v2326 = vsel %vm2318, 1, 0
  %v2327 = vsel %vm2319, 1, 0
  %v2328 = vsel %vm2320, 1, 0
  %v2329 = vsel %vm2321, 1, 0
  %v2330 = vsel %vm2322, 1, 0
  %v2331 = vsel %vm2323, 1, 0
  %v2332 = vsel %vm2324, 1, 0
  %v2333 = vcvt.s32.f32 %v2325
  %v2334 = vcvt.s32.f32 %v2326
  %v2335 = vcvt.s32.f32 %v2327
  %v2336 = vcvt.s32.f32 %v2328
  %v2337 = vcvt.s32.f32 %v2329
  %v2338 = vcvt.s32.f32 %v2330
  %v2339 = vcvt.s32.f32 %v2331
  %v2340 = vcvt.s32.f32 %v2332
  %2349 = vst [vmem:[#allocation1] ss:$2 sm:$0xff] %v2333
  %s2350 = scalar_lea.vmem [#allocation1], 16
  %2351 = vst [vmem:[%s2350] ss:$2 sm:$0xff] %v2334
  %s2352 = scalar_lea.vmem [#allocation1], 32
  %2353 = vst [vmem:[%s2352] ss:$2 sm:$0xff] %v2335
  %s2354 = scalar_lea.vmem [#allocation1], 48
  %2355 = vst [vmem:[%s2354] ss:$2 sm:$0xff] %v2336
  %v2356 = vld.sshfl [vmem:[#allocation1] sm:$0xff pattern:$0x75316420]
  %v2357 = vld.sshfl [vmem:[#allocation1 + $0x8] sm:$0xff pattern:$0x75316420]
  %v2358 = vld.sshfl [vmem:[#allocation1 + $0x10] sm:$0xff pattern:$0x75316420]
  %v2359 = vld.sshfl [vmem:[#allocation1 + $0x18] sm:$0xff pattern:$0x75316420]
  %v2360 = vld.sshfl [vmem:[#allocation1 + $0x20] sm:$0xff pattern:$0x75316420]
  %v2361 = vld.sshfl [vmem:[#allocation1 + $0x28] sm:$0xff pattern:$0x75316420]
  %v2362 = vld.sshfl [vmem:[#allocation1 + $0x30] sm:$0xff pattern:$0x75316420]
  %v2363 = vld.sshfl [vmem:[#allocation1 + $0x38] sm:$0xff pattern:$0x75316420]
  %2364 = vst [vmem:[#allocation1] ss:$2 sm:$0xff] %v2337
  %2365 = vst [vmem:[%s2350] ss:$2 sm:$0xff] %v2338
  %2366 = vst [vmem:[%s2352] ss:$2 sm:$0xff] %v2339
  %2367 = vst [vmem:[%s2354] ss:$2 sm:$0xff] %v2340
  %v2368 = vld.sshfl [vmem:[#allocation1] sm:$0xff pattern:$0x75316420]
  %v2369 = vld.sshfl [vmem:[#allocation1 + $0x8] sm:$0xff pattern:$0x75316420]
  %v2370 = vld.sshfl [vmem:[#allocation1 + $0x10] sm:$0xff pattern:$0x75316420]
  %v2371 = vld.sshfl [vmem:[#allocation1 + $0x18] sm:$0xff pattern:$0x75316420]
  %v2372 = vld.sshfl [vmem:[#allocation1 + $0x20] sm:$0xff pattern:$0x75316420]
  %v2373 = vld.sshfl [vmem:[#allocation1 + $0x28] sm:$0xff pattern:$0x75316420]
  %v2374 = vld.sshfl [vmem:[#allocation1 + $0x30] sm:$0xff pattern:$0x75316420]
  %v2375 = vld.sshfl [vmem:[#allocation1 + $0x38] sm:$0xff pattern:$0x75316420]
  %v2392 = vsel %vm93, %v2356, 0.0
  %v2393 = vsel %vm93, %v2357, 0.0
  %v2394 = vadd.f32 %v2392, %v2393
  %v2395 = vsel %vm93, %v2358, 0.0
  %v2396 = vadd.f32 %v2394, %v2395
  %v2397 = vsel %vm93, %v2359, 0.0
  %v2398 = vadd.f32 %v2396, %v2397
  %v2399 = vsel %vm93, %v2360, 0.0
  %v2400 = vadd.f32 %v2398, %v2399
  %v2401 = vsel %vm93, %v2361, 0.0
  %v2402 = vadd.f32 %v2400, %v2401
  %v2403 = vsel %vm93, %v2362, 0.0
  %v2404 = vadd.f32 %v2402, %v2403
  %v2405 = vsel %vm93, %v2363, 0.0
  %v2406 = vadd.f32 %v2404, %v2405
  %2407 = vadd.xlane.f32.xlu0 %v2406
  %v2408 = vpop.xlane.xlu0 %2407
  %v2409 = vsel %vm93, %v2368, 0.0
  %v2410 = vsel %vm93, %v2369, 0.0
  %v2411 = vadd.f32 %v2409, %v2410
  %v2412 = vsel %vm93, %v2370, 0.0
  %v2413 = vadd.f32 %v2411, %v2412
  %v2414 = vsel %vm93, %v2371, 0.0
  %v2415 = vadd.f32 %v2413, %v2414
  %v2416 = vsel %vm93, %v2372, 0.0
  %v2417 = vadd.f32 %v2415, %v2416
  %v2418 = vsel %vm93, %v2373, 0.0
  %v2419 = vadd.f32 %v2417, %v2418
  %v2420 = vsel %vm93, %v2374, 0.0
  %v2421 = vadd.f32 %v2419, %v2420
  %v2422 = vsel %vm93, %v2375, 0.0
  %v2423 = vadd.f32 %v2421, %v2422
  %2424 = vadd.xlane.f32.xlu0 %v2423
  %v2425 = vpop.xlane.xlu0 %2424
  %vm2426 = vcmp.gt.f32.partialorder %v2408, %v2313
  %vm2427 = vcmp.gt.f32.partialorder %v2425, %v2314
  %v2428 = vsel %vm2426, %v2408, %v2313
  %v2429 = vsel %vm2427, %v2425, %v2314
  %v2430 = vsel %vm2426, 20, %v2315
  %v2431 = vsel %vm2427, 20, %v2316
  %vm2432 = vcmp.eq.s32.totalorder %v10, 21
  %vm2433 = vcmp.eq.s32.totalorder %v11, 21
  %vm2434 = vcmp.eq.s32.totalorder %v12, 21
  %vm2435 = vcmp.eq.s32.totalorder %v13, 21
  %vm2436 = vcmp.eq.s32.totalorder %v14, 21
  %vm2437 = vcmp.eq.s32.totalorder %v15, 21
  %vm2438 = vcmp.eq.s32.totalorder %v16, 21
  %vm2439 = vcmp.eq.s32.totalorder %v17, 21
  %v2440 = vsel %vm2432, 1, 0
  %v2441 = vsel %vm2433, 1, 0
  %v2442 = vsel %vm2434, 1, 0
  %v2443 = vsel %vm2435, 1, 0
  %v2444 = vsel %vm2436, 1, 0
  %v2445 = vsel %vm2437, 1, 0
  %v2446 = vsel %vm2438, 1, 0
  %v2447 = vsel %vm2439, 1, 0
  %v2448 = vcvt.s32.f32 %v2440
  %v2449 = vcvt.s32.f32 %v2441
  %v2450 = vcvt.s32.f32 %v2442
  %v2451 = vcvt.s32.f32 %v2443
  %v2452 = vcvt.s32.f32 %v2444
  %v2453 = vcvt.s32.f32 %v2445
  %v2454 = vcvt.s32.f32 %v2446
  %v2455 = vcvt.s32.f32 %v2447
  %2464 = vst [vmem:[#allocation1] ss:$2 sm:$0xff] %v2448
  %s2465 = scalar_lea.vmem [#allocation1], 16
  %2466 = vst [vmem:[%s2465] ss:$2 sm:$0xff] %v2449
  %s2467 = scalar_lea.vmem [#allocation1], 32
  %2468 = vst [vmem:[%s2467] ss:$2 sm:$0xff] %v2450
  %s2469 = scalar_lea.vmem [#allocation1], 48
  %2470 = vst [vmem:[%s2469] ss:$2 sm:$0xff] %v2451
  %v2471 = vld.sshfl [vmem:[#allocation1] sm:$0xff pattern:$0x75316420]
  %v2472 = vld.sshfl [vmem:[#allocation1 + $0x8] sm:$0xff pattern:$0x75316420]
  %v2473 = vld.sshfl [vmem:[#allocation1 + $0x10] sm:$0xff pattern:$0x75316420]
  %v2474 = vld.sshfl [vmem:[#allocation1 + $0x18] sm:$0xff pattern:$0x75316420]
  %v2475 = vld.sshfl [vmem:[#allocation1 + $0x20] sm:$0xff pattern:$0x75316420]
  %v2476 = vld.sshfl [vmem:[#allocation1 + $0x28] sm:$0xff pattern:$0x75316420]
  %v2477 = vld.sshfl [vmem:[#allocation1 + $0x30] sm:$0xff pattern:$0x75316420]
  %v2478 = vld.sshfl [vmem:[#allocation1 + $0x38] sm:$0xff pattern:$0x75316420]
  %2479 = vst [vmem:[#allocation1] ss:$2 sm:$0xff] %v2452
  %2480 = vst [vmem:[%s2465] ss:$2 sm:$0xff] %v2453
  %2481 = vst [vmem:[%s2467] ss:$2 sm:$0xff] %v2454
  %2482 = vst [vmem:[%s2469] ss:$2 sm:$0xff] %v2455
  %v2483 = vld.sshfl [vmem:[#allocation1] sm:$0xff pattern:$0x75316420]
  %v2484 = vld.sshfl [vmem:[#allocation1 + $0x8] sm:$0xff pattern:$0x75316420]
  %v2485 = vld.sshfl [vmem:[#allocation1 + $0x10] sm:$0xff pattern:$0x75316420]
  %v2486 = vld.sshfl [vmem:[#allocation1 + $0x18] sm:$0xff pattern:$0x75316420]
  %v2487 = vld.sshfl [vmem:[#allocation1 + $0x20] sm:$0xff pattern:$0x75316420]
  %v2488 = vld.sshfl [vmem:[#allocation1 + $0x28] sm:$0xff pattern:$0x75316420]
  %v2489 = vld.sshfl [vmem:[#allocation1 + $0x30] sm:$0xff pattern:$0x75316420]
  %v2490 = vld.sshfl [vmem:[#allocation1 + $0x38] sm:$0xff pattern:$0x75316420]
  %v2507 = vsel %vm93, %v2471, 0.0
  %v2508 = vsel %vm93, %v2472, 0.0
  %v2509 = vadd.f32 %v2507, %v2508
  %v2510 = vsel %vm93, %v2473, 0.0
  %v2511 = vadd.f32 %v2509, %v2510
  %v2512 = vsel %vm93, %v2474, 0.0
  %v2513 = vadd.f32 %v2511, %v2512
  %v2514 = vsel %vm93, %v2475, 0.0
  %v2515 = vadd.f32 %v2513, %v2514
  %v2516 = vsel %vm93, %v2476, 0.0
  %v2517 = vadd.f32 %v2515, %v2516
  %v2518 = vsel %vm93, %v2477, 0.0
  %v2519 = vadd.f32 %v2517, %v2518
  %v2520 = vsel %vm93, %v2478, 0.0
  %v2521 = vadd.f32 %v2519, %v2520
  %2522 = vadd.xlane.f32.xlu0 %v2521
  %v2523 = vpop.xlane.xlu0 %2522
  %v2524 = vsel %vm93, %v2483, 0.0
  %v2525 = vsel %vm93, %v2484, 0.0
  %v2526 = vadd.f32 %v2524, %v2525
  %v2527 = vsel %vm93, %v2485, 0.0
  %v2528 = vadd.f32 %v2526, %v2527
  %v2529 = vsel %vm93, %v2486, 0.0
  %v2530 = vadd.f32 %v2528, %v2529
  %v2531 = vsel %vm93, %v2487, 0.0
  %v2532 = vadd.f32 %v2530, %v2531
  %v2533 = vsel %vm93, %v2488, 0.0
  %v2534 = vadd.f32 %v2532, %v2533
  %v2535 = vsel %vm93, %v2489, 0.0
  %v2536 = vadd.f32 %v2534, %v2535
  %v2537 = vsel %vm93, %v2490, 0.0
  %v2538 = vadd.f32 %v2536, %v2537
  %2539 = vadd.xlane.f32.xlu0 %v2538
  %v2540 = vpop.xlane.xlu0 %2539
  %vm2541 = vcmp.gt.f32.partialorder %v2523, %v2428
  %vm2542 = vcmp.gt.f32.partialorder %v2540, %v2429
  %v2543 = vsel %vm2541, %v2523, %v2428
  %v2544 = vsel %vm2542, %v2540, %v2429
  %v2545 = vsel %vm2541, 21, %v2430
  %v2546 = vsel %vm2542, 21, %v2431
  %vm2547 = vcmp.eq.s32.totalorder %v10, 22
  %vm2548 = vcmp.eq.s32.totalorder %v11, 22
  %vm2549 = vcmp.eq.s32.totalorder %v12, 22
  %vm2550 = vcmp.eq.s32.totalorder %v13, 22
  %vm2551 = vcmp.eq.s32.totalorder %v14, 22
  %vm2552 = vcmp.eq.s32.totalorder %v15, 22
  %vm2553 = vcmp.eq.s32.totalorder %v16, 22
  %vm2554 = vcmp.eq.s32.totalorder %v17, 22
  %v2555 = vsel %vm2547, 1, 0
  %v2556 = vsel %vm2548, 1, 0
  %v2557 = vsel %vm2549, 1, 0
  %v2558 = vsel %vm2550, 1, 0
  %v2559 = vsel %vm2551, 1, 0
  %v2560 = vsel %vm2552, 1, 0
  %v2561 = vsel %vm2553, 1, 0
  %v2562 = vsel %vm2554, 1, 0
  %v2563 = vcvt.s32.f32 %v2555
  %v2564 = vcvt.s32.f32 %v2556
  %v2565 = vcvt.s32.f32 %v2557
  %v2566 = vcvt.s32.f32 %v2558
  %v2567 = vcvt.s32.f32 %v2559
  %v2568 = vcvt.s32.f32 %v2560
  %v2569 = vcvt.s32.f32 %v2561
  %v2570 = vcvt.s32.f32 %v2562
  %2579 = vst [vmem:[#allocation1] ss:$2 sm:$0xff] %v2563
  %s2580 = scalar_lea.vmem [#allocation1], 16
  %2581 = vst [vmem:[%s2580] ss:$2 sm:$0xff] %v2564
  %s2582 = scalar_lea.vmem [#allocation1], 32
  %2583 = vst [vmem:[%s2582] ss:$2 sm:$0xff] %v2565
  %s2584 = scalar_lea.vmem [#allocation1], 48
  %2585 = vst [vmem:[%s2584] ss:$2 sm:$0xff] %v2566
  %v2586 = vld.sshfl [vmem:[#allocation1] sm:$0xff pattern:$0x75316420]
  %v2587 = vld.sshfl [vmem:[#allocation1 + $0x8] sm:$0xff pattern:$0x75316420]
  %v2588 = vld.sshfl [vmem:[#allocation1 + $0x10] sm:$0xff pattern:$0x75316420]
  %v2589 = vld.sshfl [vmem:[#allocation1 + $0x18] sm:$0xff pattern:$0x75316420]
  %v2590 = vld.sshfl [vmem:[#allocation1 + $0x20] sm:$0xff pattern:$0x75316420]
  %v2591 = vld.sshfl [vmem:[#allocation1 + $0x28] sm:$0xff pattern:$0x75316420]
  %v2592 = vld.sshfl [vmem:[#allocation1 + $0x30] sm:$0xff pattern:$0x75316420]
  %v2593 = vld.sshfl [vmem:[#allocation1 + $0x38] sm:$0xff pattern:$0x75316420]
  %2594 = vst [vmem:[#allocation1] ss:$2 sm:$0xff] %v2567
  %2595 = vst [vmem:[%s2580] ss:$2 sm:$0xff] %v2568
  %2596 = vst [vmem:[%s2582] ss:$2 sm:$0xff] %v2569
  %2597 = vst [vmem:[%s2584] ss:$2 sm:$0xff] %v2570
  %v2598 = vld.sshfl [vmem:[#allocation1] sm:$0xff pattern:$0x75316420]
  %v2599 = vld.sshfl [vmem:[#allocation1 + $0x8] sm:$0xff pattern:$0x75316420]
  %v2600 = vld.sshfl [vmem:[#allocation1 + $0x10] sm:$0xff pattern:$0x75316420]
  %v2601 = vld.sshfl [vmem:[#allocation1 + $0x18] sm:$0xff pattern:$0x75316420]
  %v2602 = vld.sshfl [vmem:[#allocation1 + $0x20] sm:$0xff pattern:$0x75316420]
  %v2603 = vld.sshfl [vmem:[#allocation1 + $0x28] sm:$0xff pattern:$0x75316420]
  %v2604 = vld.sshfl [vmem:[#allocation1 + $0x30] sm:$0xff pattern:$0x75316420]
  %v2605 = vld.sshfl [vmem:[#allocation1 + $0x38] sm:$0xff pattern:$0x75316420]
  %v2622 = vsel %vm93, %v2586, 0.0
  %v2623 = vsel %vm93, %v2587, 0.0
  %v2624 = vadd.f32 %v2622, %v2623
  %v2625 = vsel %vm93, %v2588, 0.0
  %v2626 = vadd.f32 %v2624, %v2625
  %v2627 = vsel %vm93, %v2589, 0.0
  %v2628 = vadd.f32 %v2626, %v2627
  %v2629 = vsel %vm93, %v2590, 0.0
  %v2630 = vadd.f32 %v2628, %v2629
  %v2631 = vsel %vm93, %v2591, 0.0
  %v2632 = vadd.f32 %v2630, %v2631
  %v2633 = vsel %vm93, %v2592, 0.0
  %v2634 = vadd.f32 %v2632, %v2633
  %v2635 = vsel %vm93, %v2593, 0.0
  %v2636 = vadd.f32 %v2634, %v2635
  %2637 = vadd.xlane.f32.xlu0 %v2636
  %v2638 = vpop.xlane.xlu0 %2637
  %v2639 = vsel %vm93, %v2598, 0.0
  %v2640 = vsel %vm93, %v2599, 0.0
  %v2641 = vadd.f32 %v2639, %v2640
  %v2642 = vsel %vm93, %v2600, 0.0
  %v2643 = vadd.f32 %v2641, %v2642
  %v2644 = vsel %vm93, %v2601, 0.0
  %v2645 = vadd.f32 %v2643, %v2644
  %v2646 = vsel %vm93, %v2602, 0.0
  %v2647 = vadd.f32 %v2645, %v2646
  %v2648 = vsel %vm93, %v2603, 0.0
  %v2649 = vadd.f32 %v2647, %v2648
  %v2650 = vsel %vm93, %v2604, 0.0
  %v2651 = vadd.f32 %v2649, %v2650
  %v2652 = vsel %vm93, %v2605, 0.0
  %v2653 = vadd.f32 %v2651, %v2652
  %2654 = vadd.xlane.f32.xlu0 %v2653
  %v2655 = vpop.xlane.xlu0 %2654
  %vm2656 = vcmp.gt.f32.partialorder %v2638, %v2543
  %vm2657 = vcmp.gt.f32.partialorder %v2655, %v2544
  %v2658 = vsel %vm2656, 22, %v2545
  %v2659 = vsel %vm2657, 22, %v2546
  %vm2660 = vcmask 3072
  %2661 = vst.msk [vmem:[%s1] sm:$0xf] %vm2660, %v2658
  %2662 = vst.msk [vmem:[%s1 + $0x4] sm:$0xf] %vm2660, %v2659
  %v2663 = vlaneseq
  %v2664 = vand.u32 %v2663, 127
  %vm2665 = vcmp.eq.s32.totalorder %v2658, %v2664
  %vm2666 = vcmp.eq.s32.totalorder %v2659, %v2664
  %v2667 = vsel %vm2665, 1, 0
  %v2668 = vsel %vm2666, 1, 0
  %v2669 = vcvt.s32.f32 %v2667
  %v2670 = vcvt.s32.f32 %v2668
  %vm2671 = vcmask 183296
  %v2672 = vsel %vm2671, %v2669, -inf
  %v2673 = vrot.slane %v2672, 4
  %v2674 = vmax.f32 %v2672, %v2673
  %v2675 = vrot.slane %v2674, 2
  %v2676 = vmax.f32 %v2674, %v2675
  %v2677 = vrot.slane %v2676, 1
  %v2678 = vmax.f32 %v2676, %v2677
  %v2679 = vsel %vm2671, %v2670, -inf
  %v2680 = vrot.slane %v2679, 4
  %v2681 = vmax.f32 %v2679, %v2680
  %v2682 = vrot.slane %v2681, 2
  %v2683 = vmax.f32 %v2681, %v2682
  %v2684 = vrot.slane %v2683, 1
  %v2685 = vmax.f32 %v2683, %v2684
  %vm2686 = vcmask 180224
  %2687 = vst.msk [vmem:[%s2] sm:$0x1] %vm2686, %v2678
  %2688 = vst.msk [vmem:[%s2 + $0x1] sm:$0x1] %vm2686, %v2685
  // Predicated region
  $region6: #{mask_pooling_forward.2} parent=0 // pred_check
    _
  $region7: #{mask_pooling_forward.2} parent=0 // pred_check_branch
    %2690 = sbr.rel (0) target = $region9
  $region8: #{mask_pooling_forward.2} parent=0 // pred_region
    _
  $region9: #{mask_pooling_forward.2} parent=0 // pred_fallthru
    _
  // Predicated region
  $region10: #{mask_pooling_forward.2} parent=0 // pred_check
    _
  $region11: #{mask_pooling_forward.2} parent=0 // pred_check_branch
    %2692 = sbr.rel (0) target = $region13
  $region12: #{mask_pooling_forward.2} parent=0 // pred_region
    _
  $region13: #{mask_pooling_forward.2} parent=0 // pred_fallthru
    _
  // Predicated region
  $region14: #{mask_pooling_forward.2} parent=0 // pred_check
    _
  $region15: #{mask_pooling_forward.2} parent=0 // pred_check_branch
    %2694 = sbr.rel (0) target = $region17
  $region16: #{mask_pooling_forward.2} parent=0 // pred_region
    _
  $region17: #{mask_pooling_forward.2} parent=0 // pred_fallthru
    _
  // Predicated region
  $region18: #{mask_pooling_forward.2} parent=0 // pred_check
    _
  $region19: #{mask_pooling_forward.2} parent=0 // pred_check_branch
    %2696 = sbr.rel (0) target = $region21
  $region20: #{mask_pooling_forward.2} parent=0 // pred_region
    _
  $region21: #{mask_pooling_forward.2} parent=0 // pred_fallthru
    _

</llo_original>
